<compile_context>
chip_gen: v6e
topology: v6e:2x2x1
jax: 0.10.0
libtpu: 0.0.40
codegen_flags: <defaults>
</compile_context>

<pallas_src>
import jax
import jax.numpy as jnp
from jax import lax
from jax.experimental import pallas as pl
from jax.experimental.pallas import tpu as pltpu


def fold_bn(gamma, beta, mean, var, eps=1e-5):
    scale = gamma / jnp.sqrt(var + eps)
    shift = beta - mean * scale
    return scale, shift


def _round_up(x, m):
    return (x + m - 1) // m * m


def basic_block_forward(x_nchw, w1_oihw, w2_oihw, bn1, bn2, *,
                        row_tile=8,
                        compute_dtype=jnp.bfloat16,
                        out_dtype=jnp.bfloat16):
    """Pallas BasicBlock forward (stride=1, identity shortcut, eval-mode BN)."""
    N, C, H, W = x_nchw.shape
    # Supported path only: stride=1, no downsample, inplanes == planes.
    assert w1_oihw.shape == (C, C, 3, 3) and w2_oihw.shape == (C, C, 3, 3), (
        "identity shortcut requires inplanes == planes and 3x3 kernels")

    # Largest divisor of H that is <= row_tile (never a full-image band).
    TH = max(d for d in range(1, min(row_tile, H) + 1) if H % d == 0)
    nb = H // TH

    # Interior columns live at sublane offset 8 (left halo at column 7) so the
    # interior stores and center-tap loads are (8,128)-aligned; total width is
    # rounded up to a multiple of 8.
    W_pad = 8 + _round_up(W + 1, 8)

    f32 = jnp.float32

    # NCHW -> NHWC; activations travel as bf16 (half the DMA bytes).
    x = jnp.transpose(x_nchw, (0, 2, 3, 1)).astype(compute_dtype)

    # Fold the BN scale into the conv weights and flatten the 3x3 taps into
    # the contraction dim: OIHW -> HWIO -> (9*Cin, Cout), row = (kh*3+kw)*C+cin.
    s1, b1 = fold_bn(*bn1)
    s2, b2 = fold_bn(*bn2)

    def prep_w(w_oihw, scale):
        w = jnp.transpose(w_oihw, (2, 3, 1, 0)).astype(f32)   # HWIO
        w = w * scale[None, None, None, :]                    # fold BN scale
        return w.reshape(9 * C, C).astype(compute_dtype)

    w1m = prep_w(w1_oihw, s1)
    w2m = prep_w(w2_oihw, s2)
    b1 = b1.reshape(1, C).astype(f32)
    b2 = b2.reshape(1, C).astype(f32)

    def kernel(x_ref, w1_ref, w2_ref, b1_ref, b2_ref, o_ref, pad1, pad2):
        # x_ref : (1, H, W, C)       bf16  one image, unpadded
        # w*_ref: (9*C, C)           bf16  BN-scale-folded conv weights
        # b*_ref: (1, C)             f32   folded BN shift
        # o_ref : (1, H, W, C)       bf16
        # pad1  : (H+2, W_pad, C)    bf16  padded input (also residual source)
        # pad2  : (H+2, W_pad, C)    bf16  padded conv1 output
        cdt = pad1.dtype

        # Zero only the halo, as aligned strips; the interior is always fully
        # overwritten.  Re-done every grid step so nothing is assumed about
        # scratch contents across (megacore-split) steps.
        zrow = jnp.zeros((1, W_pad, C), cdt)
        zleft = jnp.zeros((H + 2, 8, C), cdt)
        zright = jnp.zeros((H + 2, W_pad - (8 + W), C), cdt)
        for pad in (pad1, pad2):
            pad[0:1, :, :] = zrow                       # top halo row
            pad[H + 1:H + 2, :, :] = zrow               # bottom halo row
            pad[:, 0:8, :] = zleft                      # left halo strip
            pad[:, 8 + W:W_pad, :] = zright             # right halo strip

        # Stage the image once (bf16); reused by conv1 and the residual add.
        pad1[1:1 + H, 8:8 + W, :] = x_ref[0]

        w1 = w1_ref[...]
        w2 = w2_ref[...]
        # BN-shift broadcasts hoisted out of the band loops.
        shift1 = jnp.broadcast_to(b1_ref[...], (TH * W, C))
        shift2 = jnp.broadcast_to(b2_ref[...], (TH * W, C))

        def im2col(src, r0):
            # (TH*W, 9*C) bf16 patch for output rows [r0, r0+TH): all 9 taps
            # fused into the contraction dim -> one MXU matmul with K = 9*C.
            # TODO(synk): handle the +/-1 kw taps via pltpu.roll (XLU) instead
            #             of the sublane-misaligned slices.
            cols = []
            for kh in range(3):
                for kw in range(3):
                    cols.append(
                        src[pl.ds(r0 + kh, TH), 7 + kw:7 + kw + W, :]
                        .reshape(TH * W, C))
            return jnp.concatenate(cols, axis=1)

        unroll = nb <= 4

        # ---- conv1 + bn1-shift + relu -> padded bf16 scratch for conv2 ----
        def conv1_band(band, carry):
            r0 = pl.multiple_of(band * TH, TH)
            y = jnp.dot(im2col(pad1, r0), w1, preferred_element_type=f32)
            y = jnp.maximum(y + shift1, 0.0)
            pad2[pl.ds(1 + r0, TH), 8:8 + W, :] = (
                y.reshape(TH, W, C).astype(cdt))
            return carry

        lax.fori_loop(0, nb, conv1_band, 0, unroll=unroll)

        # ---- conv2 + bn2-shift + residual + relu -> output block ----
        def conv2_band(band, carry):
            r0 = pl.multiple_of(band * TH, TH)
            y = jnp.dot(im2col(pad2, r0), w2, preferred_element_type=f32)
            ident = pad1[pl.ds(1 + r0, TH), 8:8 + W, :].reshape(TH * W, C)
            y = jnp.maximum(y + shift2 + ident.astype(f32), 0.0)
            o_ref[:, pl.ds(r0, TH), :, :] = (
                y.reshape(1, TH, W, C).astype(o_ref.dtype))
            return carry

        lax.fori_loop(0, nb, conv2_band, 0, unroll=unroll)

    # Explicit scoped-VMEM budget (double-buffered in/out blocks + 2 pads +
    # resident weights + per-band im2col/result temporaries), with headroom.
    isz = jnp.dtype(compute_dtype).itemsize
    osz = jnp.dtype(out_dtype).itemsize
    img_in = H * W * C * isz
    img_out = H * W * C * osz
    pads_b = 2 * (H + 2) * W_pad * C * isz
    weights_b = 2 * 2 * 9 * C * C * isz
    band_tmp = TH * W * 9 * C * isz + 2 * TH * W * C * 4
    vmem_needed = 2 * (img_in + img_out) + pads_b + weights_b + 8 * band_tmp
    vmem_limit = int(min(64 * 2**20, max(2 * vmem_needed + (1 << 20),
                                         16 * 2**20)))

    out = pl.pallas_call(
        kernel,
        out_shape=jax.ShapeDtypeStruct((N, H, W, C), out_dtype),
        grid_spec=pltpu.PrefetchScalarGridSpec(
            num_scalar_prefetch=0,
            grid=(N,),
            in_specs=[
                pl.BlockSpec((1, H, W, C), lambda n: (n, 0, 0, 0)),
                # Constant index maps: weights/shifts are fetched once and stay
                # VMEM-resident across the parallel batch grid.
                pl.BlockSpec((9 * C, C), lambda n: (0, 0)),
                pl.BlockSpec((9 * C, C), lambda n: (0, 0)),
                pl.BlockSpec((1, C), lambda n: (0, 0)),
                pl.BlockSpec((1, C), lambda n: (0, 0)),
            ],
            out_specs=pl.BlockSpec((1, H, W, C), lambda n: (n, 0, 0, 0)),
            scratch_shapes=[
                pltpu.VMEM((H + 2, W_pad, C), compute_dtype),   # padded input
                pltpu.VMEM((H + 2, W_pad, C), compute_dtype),   # padded conv1
            ],
        ),
        compiler_params=pltpu.CompilerParams(
            dimension_semantics=("parallel",),
            vmem_limit_bytes=vmem_limit),
    )(x, w1m, w2m, b1, b2)

    return jnp.transpose(out, (0, 3, 1, 2))           # back to NCHW (bf16)


def reference_forward(x, w1, w2, bn1, bn2, compute_dtype=jnp.bfloat16):
    """Pure-JAX NCHW reference with PyTorch BasicBlock semantics (eval-mode
    BN).  Conv operands and intermediate/final activations are quantized to
    `compute_dtype` exactly like the kernel (f32 accumulation / elementwise),
    isolating kernel-logic errors from bf16 rounding."""
    f32 = jnp.float32

    def q(a):
        return a.astype(compute_dtype).astype(f32)

    def conv(a, w):
        return jax.lax.conv_general_dilated(
            a, w, window_strides=(1, 1), padding=((1, 1), (1, 1)),
            dimension_numbers=('NCHW', 'OIHW', 'NCHW'),
            precision=jax.lax.Precision.HIGHEST)

    s1, b1 = fold_bn(*bn1)
    s2, b2 = fold_bn(*bn2)
    w1f = w1 * s1[:, None, None, None]
    w2f = w2 * s2[:, None, None, None]

    xq = q(x)
    out = conv(xq, q(w1f)) + b1[None, :, None, None]
    out = jax.nn.relu(out)
    out = conv(q(out), q(w2f)) + b2[None, :, None, None]
    return q(jax.nn.relu(out + xq))


if __name__ == "__main__":
    N, C, H, W = 2, 4, 16, 16   # inplanes == planes, stride=1, no downsample

    key = jax.random.PRNGKey(0)
    keys = jax.random.split(key, 11)

    x = jax.random.normal(keys[0], (N, C, H, W), jnp.float32)

    # conv weights, PyTorch OIHW layout
    w1 = jax.random.normal(keys[1], (C, C, 3, 3), jnp.float32) * 0.1
    w2 = jax.random.normal(keys[2], (C, C, 3, 3), jnp.float32) * 0.1

    # BatchNorm params (gamma, beta, running_mean, running_var)
    bn1 = (jax.random.uniform(keys[3], (C,), minval=0.5, maxval=1.5),
           jax.random.normal(keys[4], (C,)) * 0.1,
           jax.random.normal(keys[5], (C,)) * 0.1,
           jax.random.uniform(keys[6], (C,), minval=0.5, maxval=1.5))
    bn2 = (jax.random.uniform(keys[7], (C,), minval=0.5, maxval=1.5),
           jax.random.normal(keys[8], (C,)) * 0.1,
           jax.random.normal(keys[9], (C,)) * 0.1,
           jax.random.uniform(keys[10], (C,), minval=0.5, maxval=1.5))

    out = basic_block_forward(x, w1, w2, bn1, bn2)
    out = jax.block_until_ready(out)
    assert out.shape == (N, C, H, W)

    ref = reference_forward(x, w1, w2, bn1, bn2)
    out_f32 = out.astype(jnp.float32)
    # Tolerance allows for rare one-ulp bf16 requantization flips of conv1's
    # output (MXU vs. XLA summation order) propagating through conv2; real
    # indexing/layout bugs produce O(0.1..1) errors and are still caught.
    err = jnp.max(jnp.abs(out_f32 - ref))
    assert jnp.allclose(out_f32, ref, rtol=1e-2, atol=1e-2), \
        f"max abs diff {err}"

    print("KERNEL_OK")
</pallas_src>

<mosaic_0001>
module attributes {stable_mosaic.version = 11 : i64} {
  func.func @kernel(%arg0: i32, %arg1: memref<1x16x16x4xbf16, #tpu.memory_space<vmem>>, %arg2: memref<36x4xbf16, #tpu.memory_space<vmem>>, %arg3: memref<36x4xbf16, #tpu.memory_space<vmem>>, %arg4: memref<1x4xf32, #tpu.memory_space<vmem>>, %arg5: memref<1x4xf32, #tpu.memory_space<vmem>>, %arg6: memref<1x16x16x4xbf16, #tpu.memory_space<vmem>>, %arg7: memref<18x32x4xbf16, #tpu.memory_space<vmem>>, %arg8: memref<18x32x4xbf16, #tpu.memory_space<vmem>>) attributes {dimension_semantics = [#tpu.dimension_semantics<parallel>], iteration_bounds = array<i64: 2>, scalar_prefetch = 0 : i64, scratch_operands = 2 : i64, tpu.core_type = #tpu.core_type<tc>, window_params = [{transform_indices = @transform_0, window_bounds = array<i64: 1, 16, 16, 4>}, {pipeline_mode = #tpu.pipeline_mode<synchronous>, transform_indices = @transform_1, window_bounds = array<i64: 36, 4>}, {pipeline_mode = #tpu.pipeline_mode<synchronous>, transform_indices = @transform_2, window_bounds = array<i64: 36, 4>}, {pipeline_mode = #tpu.pipeline_mode<synchronous>, transform_indices = @transform_3, window_bounds = array<i64: 1, 4>}, {pipeline_mode = #tpu.pipeline_mode<synchronous>, transform_indices = @transform_4, window_bounds = array<i64: 1, 4>}, {transform_indices = @transform_5, window_bounds = array<i64: 1, 16, 16, 4>}]} {
    %cst = arith.constant 0.000000e+00 : bf16
    %0 = vector.broadcast %cst : bf16 to vector<1x32x4xbf16>
    %cst_0 = arith.constant 0.000000e+00 : bf16
    %1 = vector.broadcast %cst_0 : bf16 to vector<18x8x4xbf16>
    %cst_1 = arith.constant 0.000000e+00 : bf16
    %2 = vector.broadcast %cst_1 : bf16 to vector<18x8x4xbf16>
    %c0 = arith.constant 0 : index
    %c0_2 = arith.constant 0 : index
    %c0_3 = arith.constant 0 : index
    %3 = vector.load %arg7[%c0, %c0_2, %c0_3] : memref<18x32x4xbf16, #tpu.memory_space<vmem>>, vector<1x32x4xbf16>
    tpu.vector_store %arg7[%c0, %c0_2, %c0_3], %0 {strides = array<i32>} : memref<18x32x4xbf16, #tpu.memory_space<vmem>>, vector<1x32x4xbf16>,
    %c17 = arith.constant 17 : index
    %c0_4 = arith.constant 0 : index
    %c0_5 = arith.constant 0 : index
    %4 = vector.load %arg7[%c17, %c0_4, %c0_5] : memref<18x32x4xbf16, #tpu.memory_space<vmem>>, vector<1x32x4xbf16>
    tpu.vector_store %arg7[%c17, %c0_4, %c0_5], %0 {strides = array<i32>} : memref<18x32x4xbf16, #tpu.memory_space<vmem>>, vector<1x32x4xbf16>,
    %c0_6 = arith.constant 0 : index
    %c0_7 = arith.constant 0 : index
    %c0_8 = arith.constant 0 : index
    %5 = vector.load %arg7[%c0_6, %c0_7, %c0_8] : memref<18x32x4xbf16, #tpu.memory_space<vmem>>, vector<18x8x4xbf16>
    tpu.vector_store %arg7[%c0_6, %c0_7, %c0_8], %1 {strides = array<i32>} : memref<18x32x4xbf16, #tpu.memory_space<vmem>>, vector<18x8x4xbf16>,
    %c0_9 = arith.constant 0 : index
    %c24 = arith.constant 24 : index
    %c0_10 = arith.constant 0 : index
    %6 = vector.load %arg7[%c0_9, %c24, %c0_10] : memref<18x32x4xbf16, #tpu.memory_space<vmem>>, vector<18x8x4xbf16>
    tpu.vector_store %arg7[%c0_9, %c24, %c0_10], %2 {strides = array<i32>} : memref<18x32x4xbf16, #tpu.memory_space<vmem>>, vector<18x8x4xbf16>,
    %c0_11 = arith.constant 0 : index
    %c0_12 = arith.constant 0 : index
    %c0_13 = arith.constant 0 : index
    %7 = vector.load %arg8[%c0_11, %c0_12, %c0_13] : memref<18x32x4xbf16, #tpu.memory_space<vmem>>, vector<1x32x4xbf16>
    tpu.vector_store %arg8[%c0_11, %c0_12, %c0_13], %0 {strides = array<i32>} : memref<18x32x4xbf16, #tpu.memory_space<vmem>>, vector<1x32x4xbf16>,
    %c17_14 = arith.constant 17 : index
    %c0_15 = arith.constant 0 : index
    %c0_16 = arith.constant 0 : index
    %8 = vector.load %arg8[%c17_14, %c0_15, %c0_16] : memref<18x32x4xbf16, #tpu.memory_space<vmem>>, vector<1x32x4xbf16>
    tpu.vector_store %arg8[%c17_14, %c0_15, %c0_16], %0 {strides = array<i32>} : memref<18x32x4xbf16, #tpu.memory_space<vmem>>, vector<1x32x4xbf16>,
    %c0_17 = arith.constant 0 : index
    %c0_18 = arith.constant 0 : index
    %c0_19 = arith.constant 0 : index
    %9 = vector.load %arg8[%c0_17, %c0_18, %c0_19] : memref<18x32x4xbf16, #tpu.memory_space<vmem>>, vector<18x8x4xbf16>
    tpu.vector_store %arg8[%c0_17, %c0_18, %c0_19], %1 {strides = array<i32>} : memref<18x32x4xbf16, #tpu.memory_space<vmem>>, vector<18x8x4xbf16>,
    %c0_20 = arith.constant 0 : index
    %c24_21 = arith.constant 24 : index
    %c0_22 = arith.constant 0 : index
    %10 = vector.load %arg8[%c0_20, %c24_21, %c0_22] : memref<18x32x4xbf16, #tpu.memory_space<vmem>>, vector<18x8x4xbf16>
    tpu.vector_store %arg8[%c0_20, %c24_21, %c0_22], %2 {strides = array<i32>} : memref<18x32x4xbf16, #tpu.memory_space<vmem>>, vector<18x8x4xbf16>,
    %c0_23 = arith.constant 0 : index
    %c0_24 = arith.constant 0 : index
    %c0_25 = arith.constant 0 : index
    %c0_26 = arith.constant 0 : index
    %11 = vector.load %arg1[%c0_23, %c0_24, %c0_25, %c0_26] : memref<1x16x16x4xbf16, #tpu.memory_space<vmem>>, vector<1x16x16x4xbf16>
    %12 = vector.shape_cast %11 : vector<1x16x16x4xbf16> to vector<16x16x4xbf16>
    %c1 = arith.constant 1 : index
    %c8 = arith.constant 8 : index
    %c0_27 = arith.constant 0 : index
    %13 = vector.load %arg7[%c1, %c8, %c0_27] : memref<18x32x4xbf16, #tpu.memory_space<vmem>>, vector<16x16x4xbf16>
    tpu.vector_store %arg7[%c1, %c8, %c0_27], %12 {strides = array<i32>} : memref<18x32x4xbf16, #tpu.memory_space<vmem>>, vector<16x16x4xbf16>,
    %c0_28 = arith.constant 0 : index
    %c0_29 = arith.constant 0 : index
    %14 = vector.load %arg2[%c0_28, %c0_29] : memref<36x4xbf16, #tpu.memory_space<vmem>>, vector<36x4xbf16>
    %c0_30 = arith.constant 0 : index
    %c0_31 = arith.constant 0 : index
    %15 = vector.load %arg3[%c0_30, %c0_31] : memref<36x4xbf16, #tpu.memory_space<vmem>>, vector<36x4xbf16>
    %c0_32 = arith.constant 0 : index
    %c0_33 = arith.constant 0 : index
    %16 = vector.load %arg4[%c0_32, %c0_33] : memref<1x4xf32, #tpu.memory_space<vmem>>, vector<1x4xf32>
    %17 = vector.shape_cast %16 : vector<1x4xf32> to vector<1x4xf32>
    %18 = vector.broadcast %17 : vector<1x4xf32> to vector<128x4xf32>
    %c0_34 = arith.constant 0 : index
    %c0_35 = arith.constant 0 : index
    %19 = vector.load %arg5[%c0_34, %c0_35] : memref<1x4xf32, #tpu.memory_space<vmem>>, vector<1x4xf32>
    %20 = vector.shape_cast %19 : vector<1x4xf32> to vector<1x4xf32>
    %21 = vector.broadcast %20 : vector<1x4xf32> to vector<128x4xf32>
    %c0_i32 = arith.constant 0 : i32
    %c8_i32 = arith.constant 8 : i32
    %22 = arith.muli %c0_i32, %c8_i32 : i32
    %23 = tpu.assume_multiple %22, 8 : i32
    %c0_i32_36 = arith.constant 0 : i32
    %24 = arith.addi %23, %c0_i32_36 : i32
    %25 = arith.index_cast %24 : i32 to index
    %c7 = arith.constant 7 : index
    %c0_37 = arith.constant 0 : index
    %26 = vector.load %arg7[%25, %c7, %c0_37] : memref<18x32x4xbf16, #tpu.memory_space<vmem>>, vector<8x16x4xbf16>
    %27 = vector.shape_cast %26 : vector<8x16x4xbf16> to vector<128x4xbf16>
    %c0_i32_38 = arith.constant 0 : i32
    %28 = arith.addi %23, %c0_i32_38 : i32
    %29 = arith.index_cast %28 : i32 to index
    %c8_39 = arith.constant 8 : index
    %c0_40 = arith.constant 0 : index
    %30 = vector.load %arg7[%29, %c8_39, %c0_40] : memref<18x32x4xbf16, #tpu.memory_space<vmem>>, vector<8x16x4xbf16>
    %31 = vector.shape_cast %30 : vector<8x16x4xbf16> to vector<128x4xbf16>
    %c0_i32_41 = arith.constant 0 : i32
    %32 = arith.addi %23, %c0_i32_41 : i32
    %33 = arith.index_cast %32 : i32 to index
    %c9 = arith.constant 9 : index
    %c0_42 = arith.constant 0 : index
    %34 = vector.load %arg7[%33, %c9, %c0_42] : memref<18x32x4xbf16, #tpu.memory_space<vmem>>, vector<8x16x4xbf16>
    %35 = vector.shape_cast %34 : vector<8x16x4xbf16> to vector<128x4xbf16>
    %c1_i32 = arith.constant 1 : i32
    %36 = arith.addi %23, %c1_i32 : i32
    %37 = arith.index_cast %36 : i32 to index
    %c7_43 = arith.constant 7 : index
    %c0_44 = arith.constant 0 : index
    %38 = vector.load %arg7[%37, %c7_43, %c0_44] : memref<18x32x4xbf16, #tpu.memory_space<vmem>>, vector<8x16x4xbf16>
    %39 = vector.shape_cast %38 : vector<8x16x4xbf16> to vector<128x4xbf16>
    %c1_i32_45 = arith.constant 1 : i32
    %40 = arith.addi %23, %c1_i32_45 : i32
    %41 = arith.index_cast %40 : i32 to index
    %c8_46 = arith.constant 8 : index
    %c0_47 = arith.constant 0 : index
    %42 = vector.load %arg7[%41, %c8_46, %c0_47] : memref<18x32x4xbf16, #tpu.memory_space<vmem>>, vector<8x16x4xbf16>
    %43 = vector.shape_cast %42 : vector<8x16x4xbf16> to vector<128x4xbf16>
    %c1_i32_48 = arith.constant 1 : i32
    %44 = arith.addi %23, %c1_i32_48 : i32
    %45 = arith.index_cast %44 : i32 to index
    %c9_49 = arith.constant 9 : index
    %c0_50 = arith.constant 0 : index
    %46 = vector.load %arg7[%45, %c9_49, %c0_50] : memref<18x32x4xbf16, #tpu.memory_space<vmem>>, vector<8x16x4xbf16>
    %47 = vector.shape_cast %46 : vector<8x16x4xbf16> to vector<128x4xbf16>
    %c2_i32 = arith.constant 2 : i32
    %48 = arith.addi %23, %c2_i32 : i32
    %49 = arith.index_cast %48 : i32 to index
    %c7_51 = arith.constant 7 : index
    %c0_52 = arith.constant 0 : index
    %50 = vector.load %arg7[%49, %c7_51, %c0_52] : memref<18x32x4xbf16, #tpu.memory_space<vmem>>, vector<8x16x4xbf16>
    %51 = vector.shape_cast %50 : vector<8x16x4xbf16> to vector<128x4xbf16>
    %c2_i32_53 = arith.constant 2 : i32
    %52 = arith.addi %23, %c2_i32_53 : i32
    %53 = arith.index_cast %52 : i32 to index
    %c8_54 = arith.constant 8 : index
    %c0_55 = arith.constant 0 : index
    %54 = vector.load %arg7[%53, %c8_54, %c0_55] : memref<18x32x4xbf16, #tpu.memory_space<vmem>>, vector<8x16x4xbf16>
    %55 = vector.shape_cast %54 : vector<8x16x4xbf16> to vector<128x4xbf16>
    %c2_i32_56 = arith.constant 2 : i32
    %56 = arith.addi %23, %c2_i32_56 : i32
    %57 = arith.index_cast %56 : i32 to index
    %c9_57 = arith.constant 9 : index
    %c0_58 = arith.constant 0 : index
    %58 = vector.load %arg7[%57, %c9_57, %c0_58] : memref<18x32x4xbf16, #tpu.memory_space<vmem>>, vector<8x16x4xbf16>
    %59 = vector.shape_cast %58 : vector<8x16x4xbf16> to vector<128x4xbf16>
    %60 = tpu.concatenate %27, %31, %35, %39, %43, %47, %51, %55, %59 in 1 : vector<128x4xbf16>, vector<128x4xbf16>, vector<128x4xbf16>, vector<128x4xbf16>, vector<128x4xbf16>, vector<128x4xbf16>, vector<128x4xbf16>, vector<128x4xbf16>, vector<128x4xbf16> -> vector<128x36xbf16>
    %cst_59 = arith.constant dense<0.000000e+00> : vector<128x4xf32>
    %61 = tpu.matmul %60, %14, %cst_59 {dimension_numbers = #tpu.dot_dimension_numbers<[1], [0], [0], [1], [0, 0, 1, 1], [], []>} : vector<128x36xbf16>, vector<36x4xbf16>, vector<128x4xf32> -> vector<128x4xf32>
    %62 = arith.addf %61, %18 : vector<128x4xf32>
    %cst_60 = arith.constant 0.000000e+00 : f32
    %63 = vector.broadcast %cst_60 : f32 to vector<128x4xf32>
    %64 = arith.maximumf %62, %63 : vector<128x4xf32>
    %65 = vector.shape_cast %64 : vector<128x4xf32> to vector<8x16x4xf32>
    %66 = arith.truncf %65 : vector<8x16x4xf32> to vector<8x16x4xbf16>
    %c1_i32_61 = arith.constant 1 : i32
    %67 = arith.addi %c1_i32_61, %23 : i32
    %68 = arith.index_cast %67 : i32 to index
    %c8_62 = arith.constant 8 : index
    %c0_63 = arith.constant 0 : index
    %69 = vector.load %arg8[%68, %c8_62, %c0_63] : memref<18x32x4xbf16, #tpu.memory_space<vmem>>, vector<8x16x4xbf16>
    tpu.vector_store %arg8[%68, %c8_62, %c0_63], %66 {strides = array<i32>} : memref<18x32x4xbf16, #tpu.memory_space<vmem>>, vector<8x16x4xbf16>,
    %c1_i32_64 = arith.constant 1 : i32
    %c8_i32_65 = arith.constant 8 : i32
    %70 = arith.muli %c1_i32_64, %c8_i32_65 : i32
    %71 = tpu.assume_multiple %70, 8 : i32
    %c0_i32_66 = arith.constant 0 : i32
    %72 = arith.addi %71, %c0_i32_66 : i32
    %73 = arith.index_cast %72 : i32 to index
    %c7_67 = arith.constant 7 : index
    %c0_68 = arith.constant 0 : index
    %74 = vector.load %arg7[%73, %c7_67, %c0_68] : memref<18x32x4xbf16, #tpu.memory_space<vmem>>, vector<8x16x4xbf16>
    %75 = vector.shape_cast %74 : vector<8x16x4xbf16> to vector<128x4xbf16>
    %c0_i32_69 = arith.constant 0 : i32
    %76 = arith.addi %71, %c0_i32_69 : i32
    %77 = arith.index_cast %76 : i32 to index
    %c8_70 = arith.constant 8 : index
    %c0_71 = arith.constant 0 : index
    %78 = vector.load %arg7[%77, %c8_70, %c0_71] : memref<18x32x4xbf16, #tpu.memory_space<vmem>>, vector<8x16x4xbf16>
    %79 = vector.shape_cast %78 : vector<8x16x4xbf16> to vector<128x4xbf16>
    %c0_i32_72 = arith.constant 0 : i32
    %80 = arith.addi %71, %c0_i32_72 : i32
    %81 = arith.index_cast %80 : i32 to index
    %c9_73 = arith.constant 9 : index
    %c0_74 = arith.constant 0 : index
    %82 = vector.load %arg7[%81, %c9_73, %c0_74] : memref<18x32x4xbf16, #tpu.memory_space<vmem>>, vector<8x16x4xbf16>
    %83 = vector.shape_cast %82 : vector<8x16x4xbf16> to vector<128x4xbf16>
    %c1_i32_75 = arith.constant 1 : i32
    %84 = arith.addi %71, %c1_i32_75 : i32
    %85 = arith.index_cast %84 : i32 to index
    %c7_76 = arith.constant 7 : index
    %c0_77 = arith.constant 0 : index
    %86 = vector.load %arg7[%85, %c7_76, %c0_77] : memref<18x32x4xbf16, #tpu.memory_space<vmem>>, vector<8x16x4xbf16>
    %87 = vector.shape_cast %86 : vector<8x16x4xbf16> to vector<128x4xbf16>
    %c1_i32_78 = arith.constant 1 : i32
    %88 = arith.addi %71, %c1_i32_78 : i32
    %89 = arith.index_cast %88 : i32 to index
    %c8_79 = arith.constant 8 : index
    %c0_80 = arith.constant 0 : index
    %90 = vector.load %arg7[%89, %c8_79, %c0_80] : memref<18x32x4xbf16, #tpu.memory_space<vmem>>, vector<8x16x4xbf16>
    %91 = vector.shape_cast %90 : vector<8x16x4xbf16> to vector<128x4xbf16>
    %c1_i32_81 = arith.constant 1 : i32
    %92 = arith.addi %71, %c1_i32_81 : i32
    %93 = arith.index_cast %92 : i32 to index
    %c9_82 = arith.constant 9 : index
    %c0_83 = arith.constant 0 : index
    %94 = vector.load %arg7[%93, %c9_82, %c0_83] : memref<18x32x4xbf16, #tpu.memory_space<vmem>>, vector<8x16x4xbf16>
    %95 = vector.shape_cast %94 : vector<8x16x4xbf16> to vector<128x4xbf16>
    %c2_i32_84 = arith.constant 2 : i32
    %96 = arith.addi %71, %c2_i32_84 : i32
    %97 = arith.index_cast %96 : i32 to index
    %c7_85 = arith.constant 7 : index
    %c0_86 = arith.constant 0 : index
    %98 = vector.load %arg7[%97, %c7_85, %c0_86] : memref<18x32x4xbf16, #tpu.memory_space<vmem>>, vector<8x16x4xbf16>
    %99 = vector.shape_cast %98 : vector<8x16x4xbf16> to vector<128x4xbf16>
    %c2_i32_87 = arith.constant 2 : i32
    %100 = arith.addi %71, %c2_i32_87 : i32
    %101 = arith.index_cast %100 : i32 to index
    %c8_88 = arith.constant 8 : index
    %c0_89 = arith.constant 0 : index
    %102 = vector.load %arg7[%101, %c8_88, %c0_89] : memref<18x32x4xbf16, #tpu.memory_space<vmem>>, vector<8x16x4xbf16>
    %103 = vector.shape_cast %102 : vector<8x16x4xbf16> to vector<128x4xbf16>
    %c2_i32_90 = arith.constant 2 : i32
    %104 = arith.addi %71, %c2_i32_90 : i32
    %105 = arith.index_cast %104 : i32 to index
    %c9_91 = arith.constant 9 : index
    %c0_92 = arith.constant 0 : index
    %106 = vector.load %arg7[%105, %c9_91, %c0_92] : memref<18x32x4xbf16, #tpu.memory_space<vmem>>, vector<8x16x4xbf16>
    %107 = vector.shape_cast %106 : vector<8x16x4xbf16> to vector<128x4xbf16>
    %108 = tpu.concatenate %75, %79, %83, %87, %91, %95, %99, %103, %107 in 1 : vector<128x4xbf16>, vector<128x4xbf16>, vector<128x4xbf16>, vector<128x4xbf16>, vector<128x4xbf16>, vector<128x4xbf16>, vector<128x4xbf16>, vector<128x4xbf16>, vector<128x4xbf16> -> vector<128x36xbf16>
    %cst_93 = arith.constant dense<0.000000e+00> : vector<128x4xf32>
    %109 = tpu.matmul %108, %14, %cst_93 {dimension_numbers = #tpu.dot_dimension_numbers<[1], [0], [0], [1], [0, 0, 1, 1], [], []>} : vector<128x36xbf16>, vector<36x4xbf16>, vector<128x4xf32> -> vector<128x4xf32>
    %110 = arith.addf %109, %18 : vector<128x4xf32>
    %cst_94 = arith.constant 0.000000e+00 : f32
    %111 = vector.broadcast %cst_94 : f32 to vector<128x4xf32>
    %112 = arith.maximumf %110, %111 : vector<128x4xf32>
    %113 = vector.shape_cast %112 : vector<128x4xf32> to vector<8x16x4xf32>
    %114 = arith.truncf %113 : vector<8x16x4xf32> to vector<8x16x4xbf16>
    %c1_i32_95 = arith.constant 1 : i32
    %115 = arith.addi %c1_i32_95, %71 : i32
    %116 = arith.index_cast %115 : i32 to index
    %c8_96 = arith.constant 8 : index
    %c0_97 = arith.constant 0 : index
    %117 = vector.load %arg8[%116, %c8_96, %c0_97] : memref<18x32x4xbf16, #tpu.memory_space<vmem>>, vector<8x16x4xbf16>
    tpu.vector_store %arg8[%116, %c8_96, %c0_97], %114 {strides = array<i32>} : memref<18x32x4xbf16, #tpu.memory_space<vmem>>, vector<8x16x4xbf16>,
    %c2_i32_98 = arith.constant 2 : i32
    %c0_i32_99 = arith.constant 0 : i32
    %c8_i32_100 = arith.constant 8 : i32
    %118 = arith.muli %c0_i32_99, %c8_i32_100 : i32
    %119 = tpu.assume_multiple %118, 8 : i32
    %c0_i32_101 = arith.constant 0 : i32
    %120 = arith.addi %119, %c0_i32_101 : i32
    %121 = arith.index_cast %120 : i32 to index
    %c7_102 = arith.constant 7 : index
    %c0_103 = arith.constant 0 : index
    %122 = vector.load %arg8[%121, %c7_102, %c0_103] : memref<18x32x4xbf16, #tpu.memory_space<vmem>>, vector<8x16x4xbf16>
    %123 = vector.shape_cast %122 : vector<8x16x4xbf16> to vector<128x4xbf16>
    %c0_i32_104 = arith.constant 0 : i32
    %124 = arith.addi %119, %c0_i32_104 : i32
    %125 = arith.index_cast %124 : i32 to index
    %c8_105 = arith.constant 8 : index
    %c0_106 = arith.constant 0 : index
    %126 = vector.load %arg8[%125, %c8_105, %c0_106] : memref<18x32x4xbf16, #tpu.memory_space<vmem>>, vector<8x16x4xbf16>
    %127 = vector.shape_cast %126 : vector<8x16x4xbf16> to vector<128x4xbf16>
    %c0_i32_107 = arith.constant 0 : i32
    %128 = arith.addi %119, %c0_i32_107 : i32
    %129 = arith.index_cast %128 : i32 to index
    %c9_108 = arith.constant 9 : index
    %c0_109 = arith.constant 0 : index
    %130 = vector.load %arg8[%129, %c9_108, %c0_109] : memref<18x32x4xbf16, #tpu.memory_space<vmem>>, vector<8x16x4xbf16>
    %131 = vector.shape_cast %130 : vector<8x16x4xbf16> to vector<128x4xbf16>
    %c1_i32_110 = arith.constant 1 : i32
    %132 = arith.addi %119, %c1_i32_110 : i32
    %133 = arith.index_cast %132 : i32 to index
    %c7_111 = arith.constant 7 : index
    %c0_112 = arith.constant 0 : index
    %134 = vector.load %arg8[%133, %c7_111, %c0_112] : memref<18x32x4xbf16, #tpu.memory_space<vmem>>, vector<8x16x4xbf16>
    %135 = vector.shape_cast %134 : vector<8x16x4xbf16> to vector<128x4xbf16>
    %c1_i32_113 = arith.constant 1 : i32
    %136 = arith.addi %119, %c1_i32_113 : i32
    %137 = arith.index_cast %136 : i32 to index
    %c8_114 = arith.constant 8 : index
    %c0_115 = arith.constant 0 : index
    %138 = vector.load %arg8[%137, %c8_114, %c0_115] : memref<18x32x4xbf16, #tpu.memory_space<vmem>>, vector<8x16x4xbf16>
    %139 = vector.shape_cast %138 : vector<8x16x4xbf16> to vector<128x4xbf16>
    %c1_i32_116 = arith.constant 1 : i32
    %140 = arith.addi %119, %c1_i32_116 : i32
    %141 = arith.index_cast %140 : i32 to index
    %c9_117 = arith.constant 9 : index
    %c0_118 = arith.constant 0 : index
    %142 = vector.load %arg8[%141, %c9_117, %c0_118] : memref<18x32x4xbf16, #tpu.memory_space<vmem>>, vector<8x16x4xbf16>
    %143 = vector.shape_cast %142 : vector<8x16x4xbf16> to vector<128x4xbf16>
    %c2_i32_119 = arith.constant 2 : i32
    %144 = arith.addi %119, %c2_i32_119 : i32
    %145 = arith.index_cast %144 : i32 to index
    %c7_120 = arith.constant 7 : index
    %c0_121 = arith.constant 0 : index
    %146 = vector.load %arg8[%145, %c7_120, %c0_121] : memref<18x32x4xbf16, #tpu.memory_space<vmem>>, vector<8x16x4xbf16>
    %147 = vector.shape_cast %146 : vector<8x16x4xbf16> to vector<128x4xbf16>
    %c2_i32_122 = arith.constant 2 : i32
    %148 = arith.addi %119, %c2_i32_122 : i32
    %149 = arith.index_cast %148 : i32 to index
    %c8_123 = arith.constant 8 : index
    %c0_124 = arith.constant 0 : index
    %150 = vector.load %arg8[%149, %c8_123, %c0_124] : memref<18x32x4xbf16, #tpu.memory_space<vmem>>, vector<8x16x4xbf16>
    %151 = vector.shape_cast %150 : vector<8x16x4xbf16> to vector<128x4xbf16>
    %c2_i32_125 = arith.constant 2 : i32
    %152 = arith.addi %119, %c2_i32_125 : i32
    %153 = arith.index_cast %152 : i32 to index
    %c9_126 = arith.constant 9 : index
    %c0_127 = arith.constant 0 : index
    %154 = vector.load %arg8[%153, %c9_126, %c0_127] : memref<18x32x4xbf16, #tpu.memory_space<vmem>>, vector<8x16x4xbf16>
    %155 = vector.shape_cast %154 : vector<8x16x4xbf16> to vector<128x4xbf16>
    %156 = tpu.concatenate %123, %127, %131, %135, %139, %143, %147, %151, %155 in 1 : vector<128x4xbf16>, vector<128x4xbf16>, vector<128x4xbf16>, vector<128x4xbf16>, vector<128x4xbf16>, vector<128x4xbf16>, vector<128x4xbf16>, vector<128x4xbf16>, vector<128x4xbf16> -> vector<128x36xbf16>
    %cst_128 = arith.constant dense<0.000000e+00> : vector<128x4xf32>
    %157 = tpu.matmul %156, %15, %cst_128 {dimension_numbers = #tpu.dot_dimension_numbers<[1], [0], [0], [1], [0, 0, 1, 1], [], []>} : vector<128x36xbf16>, vector<36x4xbf16>, vector<128x4xf32> -> vector<128x4xf32>
    %c1_i32_129 = arith.constant 1 : i32
    %158 = arith.addi %c1_i32_129, %119 : i32
    %159 = arith.index_cast %158 : i32 to index
    %c8_130 = arith.constant 8 : index
    %c0_131 = arith.constant 0 : index
    %160 = vector.load %arg7[%159, %c8_130, %c0_131] : memref<18x32x4xbf16, #tpu.memory_space<vmem>>, vector<8x16x4xbf16>
    %161 = vector.shape_cast %160 : vector<8x16x4xbf16> to vector<128x4xbf16>
    %162 = arith.addf %157, %21 : vector<128x4xf32>
    %163 = arith.extf %161 : vector<128x4xbf16> to vector<128x4xf32>
    %164 = arith.addf %162, %163 : vector<128x4xf32>
    %cst_132 = arith.constant 0.000000e+00 : f32
    %165 = vector.broadcast %cst_132 : f32 to vector<128x4xf32>
    %166 = arith.maximumf %164, %165 : vector<128x4xf32>
    %167 = vector.shape_cast %166 : vector<128x4xf32> to vector<1x8x16x4xf32>
    %168 = arith.truncf %167 : vector<1x8x16x4xf32> to vector<1x8x16x4xbf16>
    %c0_133 = arith.constant 0 : index
    %169 = arith.index_cast %119 : i32 to index
    %c0_134 = arith.constant 0 : index
    %c0_135 = arith.constant 0 : index
    %170 = vector.load %arg6[%c0_133, %169, %c0_134, %c0_135] : memref<1x16x16x4xbf16, #tpu.memory_space<vmem>>, vector<1x8x16x4xbf16>
    tpu.vector_store %arg6[%c0_133, %169, %c0_134, %c0_135], %168 {strides = array<i32>} : memref<1x16x16x4xbf16, #tpu.memory_space<vmem>>, vector<1x8x16x4xbf16>,
    %c1_i32_136 = arith.constant 1 : i32
    %c8_i32_137 = arith.constant 8 : i32
    %171 = arith.muli %c1_i32_136, %c8_i32_137 : i32
    %172 = tpu.assume_multiple %171, 8 : i32
    %c0_i32_138 = arith.constant 0 : i32
    %173 = arith.addi %172, %c0_i32_138 : i32
    %174 = arith.index_cast %173 : i32 to index
    %c7_139 = arith.constant 7 : index
    %c0_140 = arith.constant 0 : index
    %175 = vector.load %arg8[%174, %c7_139, %c0_140] : memref<18x32x4xbf16, #tpu.memory_space<vmem>>, vector<8x16x4xbf16>
    %176 = vector.shape_cast %175 : vector<8x16x4xbf16> to vector<128x4xbf16>
    %c0_i32_141 = arith.constant 0 : i32
    %177 = arith.addi %172, %c0_i32_141 : i32
    %178 = arith.index_cast %177 : i32 to index
    %c8_142 = arith.constant 8 : index
    %c0_143 = arith.constant 0 : index
    %179 = vector.load %arg8[%178, %c8_142, %c0_143] : memref<18x32x4xbf16, #tpu.memory_space<vmem>>, vector<8x16x4xbf16>
    %180 = vector.shape_cast %179 : vector<8x16x4xbf16> to vector<128x4xbf16>
    %c0_i32_144 = arith.constant 0 : i32
    %181 = arith.addi %172, %c0_i32_144 : i32
    %182 = arith.index_cast %181 : i32 to index
    %c9_145 = arith.constant 9 : index
    %c0_146 = arith.constant 0 : index
    %183 = vector.load %arg8[%182, %c9_145, %c0_146] : memref<18x32x4xbf16, #tpu.memory_space<vmem>>, vector<8x16x4xbf16>
    %184 = vector.shape_cast %183 : vector<8x16x4xbf16> to vector<128x4xbf16>
    %c1_i32_147 = arith.constant 1 : i32
    %185 = arith.addi %172, %c1_i32_147 : i32
    %186 = arith.index_cast %185 : i32 to index
    %c7_148 = arith.constant 7 : index
    %c0_149 = arith.constant 0 : index
    %187 = vector.load %arg8[%186, %c7_148, %c0_149] : memref<18x32x4xbf16, #tpu.memory_space<vmem>>, vector<8x16x4xbf16>
    %188 = vector.shape_cast %187 : vector<8x16x4xbf16> to vector<128x4xbf16>
    %c1_i32_150 = arith.constant 1 : i32
    %189 = arith.addi %172, %c1_i32_150 : i32
    %190 = arith.index_cast %189 : i32 to index
    %c8_151 = arith.constant 8 : index
    %c0_152 = arith.constant 0 : index
    %191 = vector.load %arg8[%190, %c8_151, %c0_152] : memref<18x32x4xbf16, #tpu.memory_space<vmem>>, vector<8x16x4xbf16>
    %192 = vector.shape_cast %191 : vector<8x16x4xbf16> to vector<128x4xbf16>
    %c1_i32_153 = arith.constant 1 : i32
    %193 = arith.addi %172, %c1_i32_153 : i32
    %194 = arith.index_cast %193 : i32 to index
    %c9_154 = arith.constant 9 : index
    %c0_155 = arith.constant 0 : index
    %195 = vector.load %arg8[%194, %c9_154, %c0_155] : memref<18x32x4xbf16, #tpu.memory_space<vmem>>, vector<8x16x4xbf16>
    %196 = vector.shape_cast %195 : vector<8x16x4xbf16> to vector<128x4xbf16>
    %c2_i32_156 = arith.constant 2 : i32
    %197 = arith.addi %172, %c2_i32_156 : i32
    %198 = arith.index_cast %197 : i32 to index
    %c7_157 = arith.constant 7 : index
    %c0_158 = arith.constant 0 : index
    %199 = vector.load %arg8[%198, %c7_157, %c0_158] : memref<18x32x4xbf16, #tpu.memory_space<vmem>>, vector<8x16x4xbf16>
    %200 = vector.shape_cast %199 : vector<8x16x4xbf16> to vector<128x4xbf16>
    %c2_i32_159 = arith.constant 2 : i32
    %201 = arith.addi %172, %c2_i32_159 : i32
    %202 = arith.index_cast %201 : i32 to index
    %c8_160 = arith.constant 8 : index
    %c0_161 = arith.constant 0 : index
    %203 = vector.load %arg8[%202, %c8_160, %c0_161] : memref<18x32x4xbf16, #tpu.memory_space<vmem>>, vector<8x16x4xbf16>
    %204 = vector.shape_cast %203 : vector<8x16x4xbf16> to vector<128x4xbf16>
    %c2_i32_162 = arith.constant 2 : i32
    %205 = arith.addi %172, %c2_i32_162 : i32
    %206 = arith.index_cast %205 : i32 to index
    %c9_163 = arith.constant 9 : index
    %c0_164 = arith.constant 0 : index
    %207 = vector.load %arg8[%206, %c9_163, %c0_164] : memref<18x32x4xbf16, #tpu.memory_space<vmem>>, vector<8x16x4xbf16>
    %208 = vector.shape_cast %207 : vector<8x16x4xbf16> to vector<128x4xbf16>
    %209 = tpu.concatenate %176, %180, %184, %188, %192, %196, %200, %204, %208 in 1 : vector<128x4xbf16>, vector<128x4xbf16>, vector<128x4xbf16>, vector<128x4xbf16>, vector<128x4xbf16>, vector<128x4xbf16>, vector<128x4xbf16>, vector<128x4xbf16>, vector<128x4xbf16> -> vector<128x36xbf16>
    %cst_165 = arith.constant dense<0.000000e+00> : vector<128x4xf32>
    %210 = tpu.matmul %209, %15, %cst_165 {dimension_numbers = #tpu.dot_dimension_numbers<[1], [0], [0], [1], [0, 0, 1, 1], [], []>} : vector<128x36xbf16>, vector<36x4xbf16>, vector<128x4xf32> -> vector<128x4xf32>
    %c1_i32_166 = arith.constant 1 : i32
    %211 = arith.addi %c1_i32_166, %172 : i32
    %212 = arith.index_cast %211 : i32 to index
    %c8_167 = arith.constant 8 : index
    %c0_168 = arith.constant 0 : index
    %213 = vector.load %arg7[%212, %c8_167, %c0_168] : memref<18x32x4xbf16, #tpu.memory_space<vmem>>, vector<8x16x4xbf16>
    %214 = vector.shape_cast %213 : vector<8x16x4xbf16> to vector<128x4xbf16>
    %215 = arith.addf %210, %21 : vector<128x4xf32>
    %216 = arith.extf %214 : vector<128x4xbf16> to vector<128x4xf32>
    %217 = arith.addf %215, %216 : vector<128x4xf32>
    %cst_169 = arith.constant 0.000000e+00 : f32
    %218 = vector.broadcast %cst_169 : f32 to vector<128x4xf32>
    %219 = arith.maximumf %217, %218 : vector<128x4xf32>
    %220 = vector.shape_cast %219 : vector<128x4xf32> to vector<1x8x16x4xf32>
    %221 = arith.truncf %220 : vector<1x8x16x4xf32> to vector<1x8x16x4xbf16>
    %c0_170 = arith.constant 0 : index
    %222 = arith.index_cast %172 : i32 to index
    %c0_171 = arith.constant 0 : index
    %c0_172 = arith.constant 0 : index
    %223 = vector.load %arg6[%c0_170, %222, %c0_171, %c0_172] : memref<1x16x16x4xbf16, #tpu.memory_space<vmem>>, vector<1x8x16x4xbf16>
    tpu.vector_store %arg6[%c0_170, %222, %c0_171, %c0_172], %221 {strides = array<i32>} : memref<1x16x16x4xbf16, #tpu.memory_space<vmem>>, vector<1x8x16x4xbf16>,
    %c2_i32_173 = arith.constant 2 : i32
    return
  }
  func.func @transform_0(%arg0: i32) -> (i32, i32, i32, i32) {
    %c0_i32 = arith.constant 0 : i32
    %c0_i32_0 = arith.constant 0 : i32
    %c0_i32_1 = arith.constant 0 : i32
    %c0_i32_2 = arith.constant 0 : i32
    return %arg0, %c0_i32, %c0_i32_0, %c0_i32_1 : i32, i32, i32, i32
  }
  func.func @transform_1(%arg0: i32) -> (i32, i32) {
    %c0_i32 = arith.constant 0 : i32
    %c0_i32_0 = arith.constant 0 : i32
    %c0_i32_1 = arith.constant 0 : i32
    return %c0_i32, %c0_i32_0 : i32, i32
  }
  func.func @transform_2(%arg0: i32) -> (i32, i32) {
    %c0_i32 = arith.constant 0 : i32
    %c0_i32_0 = arith.constant 0 : i32
    %c0_i32_1 = arith.constant 0 : i32
    return %c0_i32, %c0_i32_0 : i32, i32
  }
  func.func @transform_3(%arg0: i32) -> (i32, i32) {
    %c0_i32 = arith.constant 0 : i32
    %c0_i32_0 = arith.constant 0 : i32
    %c0_i32_1 = arith.constant 0 : i32
    return %c0_i32, %c0_i32_0 : i32, i32
  }
  func.func @transform_4(%arg0: i32) -> (i32, i32) {
    %c0_i32 = arith.constant 0 : i32
    %c0_i32_0 = arith.constant 0 : i32
    %c0_i32_1 = arith.constant 0 : i32
    return %c0_i32, %c0_i32_0 : i32, i32
  }
  func.func @transform_5(%arg0: i32) -> (i32, i32, i32, i32) {
    %c0_i32 = arith.constant 0 : i32
    %c0_i32_0 = arith.constant 0 : i32
    %c0_i32_1 = arith.constant 0 : i32
    %c0_i32_2 = arith.constant 0 : i32
    return %arg0, %c0_i32, %c0_i32_0, %c0_i32_1 : i32, i32, i32, i32
  }
}

</mosaic_0001>

<llo_original>
// kernel: tpu_custom_call.1
$region0: #{tpu_custom_call.1}
  #allocation0 [shape = 'u32[]', space=smem, size = 0x4, offset = 0x4, fixed_abs, tag = 'smem constant byte address 0x4 - core index']
  #allocation1 [shape = 'u32[144,128]{1,0:T(1,128)}', space=vmem, size = 0x12000, scoped, tag = 'internal scratch']
  #allocation2 [shape = 'bf16[18,32,4]{2,1,0:T(8,128)(2,1)}', space=vmem, size = 0x24000, scoped, tag = 'scratch operand']
  #allocation3 [shape = 'bf16[18,32,4]{2,1,0:T(8,128)(2,1)}', space=vmem, size = 0x24000, scoped, tag = 'scratch operand']
  %s0 = inlined_call_operand.vmem [shape: bf16[2,16,16,4], index: 0, kind: input, shape index: {}]
  %s1 = inlined_call_operand.vmem [shape: bf16[36,4], index: 1, kind: input, shape index: {}]
  %s2 = inlined_call_operand.vmem [shape: bf16[36,4], index: 2, kind: input, shape index: {}]
  %s3 = inlined_call_operand.vmem [shape: f32[1,4], index: 3, kind: input, shape index: {}]
  %s4 = inlined_call_operand.vmem [shape: f32[1,4], index: 4, kind: input, shape index: {}]
  %s5 = inlined_call_operand.vmem [shape: bf16[2,16,16,4], index: 5, kind: output, shape index: {}]
  %s6 = sld [smem:[#allocation0]]
  $region53: #{tpu_custom_call.1} parent=0
    _
  %s8 = ssub.s32 1, %s6
  %s9 = scalar_select 0, %s8, %s6
  loop: start=0, step=1, limit=4
  $region2: #{tpu_custom_call.1} parent=0 // loop_pre_header
    _
  $region3: #{tpu_custom_call.1} parent=0 // loop_header
    %s11 = sphi 0, %s15
    %p12 = scmp.ge.s32.totalorder %s11, 4
    %s21 = sphi 0, %s23
    %s24 = sphi 0, %s21
    %s25 = sphi 0, %s24
    %s41 = sphi 0, %s25
    %s45 = sphi 0, %s45
    %s47 = sphi 0, %s45
    %s48 = sphi 0, %s47
    %s62 = sphi 0, %s48
    %s66 = sphi 0, %s66
    %s68 = sphi 0, %s66
    %s69 = sphi 0, %s68
    %s83 = sphi 0, %s69
    %s87 = sphi 0, %s87
    %s89 = sphi 0, %s87
    %s90 = sphi 0, %s89
    %s104 = sphi 0, %s90
    %s108 = sphi 0, %s108
    %s110 = sphi 0, %s108
    %s111 = sphi 0, %s110
    %s125 = sphi 0, %s111
    %s131 = sphi 0, %s133
    %s134 = sphi 0, %s131
    %s135 = sphi 0, %s134
    %s151 = sphi 0, %s135
  $region4: #{tpu_custom_call.1} parent=0 // loop_header_branch
    %14 = sbr.rel (%p12) target = $region8
  $region5: #{tpu_custom_call.1} parent=0 // loop_body
    %s16 = ssub.s32 %s11, 1
    %s17 = ssub.s32 %s11, 2
    %s18 = sadd.s32 %s11, 1
    %s19 = ssub.s32 %s11, %s18
    %p20 = scmp.eq.s32.totalorder %s19, 0
    %s22 = sadd.s32 %s21, 1
    %s23 = scalar_select %p20, %s21, %s22
    %p26 = pneg %p20
    %p27 = scmp.eq.s32.totalorder %s11, 1
    %p28 = por %p26, %p27
    %p29 = scmp.ne.s32.totalorder %s21, %s24
    %p30 = scmp.eq.s32.totalorder %s11, 0
    %p31 = por %p29, %p30
    %p32 = scmp.ne.s32.totalorder %s21, %s24
    %p33 = scmp.eq.s32.totalorder %s16, 1
    %p34 = por %p32, %p33
    %p35 = scmp.ne.s32.totalorder %s24, %s25
    %p36 = scmp.eq.s32.totalorder %s16, 0
    %p37 = por %p35, %p36
    %p38 = scmp.ne.s32.totalorder %s24, %s25
    %p39 = scmp.eq.s32.totalorder %s17, 1
    %p40 = por %p38, %p39
    %p42 = scmp.ne.s32.totalorder %s25, %s41
    %p43 = scmp.eq.s32.totalorder %s17, 0
    %p44 = por %p42, %p43
    %s46 = sadd.s32 %s45, 1
    %p49 = scmp.eq.s32.totalorder %s11, 1
    %p50 = scmp.ne.s32.totalorder %s45, %s47
    %p51 = scmp.eq.s32.totalorder %s11, 0
    %p52 = por %p50, %p51
    %p53 = scmp.ne.s32.totalorder %s45, %s47
    %p54 = scmp.eq.s32.totalorder %s16, 1
    %p55 = por %p53, %p54
    %p56 = scmp.ne.s32.totalorder %s47, %s48
    %p57 = scmp.eq.s32.totalorder %s16, 0
    %p58 = por %p56, %p57
    %p59 = scmp.ne.s32.totalorder %s47, %s48
    %p60 = scmp.eq.s32.totalorder %s17, 1
    %p61 = por %p59, %p60
    %p63 = scmp.ne.s32.totalorder %s48, %s62
    %p64 = scmp.eq.s32.totalorder %s17, 0
    %p65 = por %p63, %p64
    %s67 = sadd.s32 %s66, 1
    %p70 = scmp.eq.s32.totalorder %s11, 1
    %p71 = scmp.ne.s32.totalorder %s66, %s68
    %p72 = scmp.eq.s32.totalorder %s11, 0
    %p73 = por %p71, %p72
    %p74 = scmp.ne.s32.totalorder %s66, %s68
    %p75 = scmp.eq.s32.totalorder %s16, 1
    %p76 = por %p74, %p75
    %p77 = scmp.ne.s32.totalorder %s68, %s69
    %p78 = scmp.eq.s32.totalorder %s16, 0
    %p79 = por %p77, %p78
    %p80 = scmp.ne.s32.totalorder %s68, %s69
    %p81 = scmp.eq.s32.totalorder %s17, 1
    %p82 = por %p80, %p81
    %p84 = scmp.ne.s32.totalorder %s69, %s83
    %p85 = scmp.eq.s32.totalorder %s17, 0
    %p86 = por %p84, %p85
    %s88 = sadd.s32 %s87, 1
    %p91 = scmp.eq.s32.totalorder %s11, 1
    %p92 = scmp.ne.s32.totalorder %s87, %s89
    %p93 = scmp.eq.s32.totalorder %s11, 0
    %p94 = por %p92, %p93
    %p95 = scmp.ne.s32.totalorder %s87, %s89
    %p96 = scmp.eq.s32.totalorder %s16, 1
    %p97 = por %p95, %p96
    %p98 = scmp.ne.s32.totalorder %s89, %s90
    %p99 = scmp.eq.s32.totalorder %s16, 0
    %p100 = por %p98, %p99
    %p101 = scmp.ne.s32.totalorder %s89, %s90
    %p102 = scmp.eq.s32.totalorder %s17, 1
    %p103 = por %p101, %p102
    %p105 = scmp.ne.s32.totalorder %s90, %s104
    %p106 = scmp.eq.s32.totalorder %s17, 0
    %p107 = por %p105, %p106
    %s109 = sadd.s32 %s108, 1
    %p112 = scmp.eq.s32.totalorder %s11, 1
    %p113 = scmp.ne.s32.totalorder %s108, %s110
    %p114 = scmp.eq.s32.totalorder %s11, 0
    %p115 = por %p113, %p114
    %p116 = scmp.ne.s32.totalorder %s108, %s110
    %p117 = scmp.eq.s32.totalorder %s16, 1
    %p118 = por %p116, %p117
    %p119 = scmp.ne.s32.totalorder %s110, %s111
    %p120 = scmp.eq.s32.totalorder %s16, 0
    %p121 = por %p119, %p120
    %p122 = scmp.ne.s32.totalorder %s110, %s111
    %p123 = scmp.eq.s32.totalorder %s17, 1
    %p124 = por %p122, %p123
    %p126 = scmp.ne.s32.totalorder %s111, %s125
    %p127 = scmp.eq.s32.totalorder %s17, 0
    %p128 = por %p126, %p127
    %s129 = ssub.s32 %s11, %s18
    %p130 = scmp.eq.s32.totalorder %s129, 0
    %s132 = sadd.s32 %s131, 1
    %s133 = scalar_select %p130, %s131, %s132
    %p136 = pneg %p130
    %p137 = scmp.eq.s32.totalorder %s11, 1
    %p138 = por %p136, %p137
    %p139 = scmp.ne.s32.totalorder %s131, %s134
    %p140 = scmp.eq.s32.totalorder %s11, 0
    %p141 = por %p139, %p140
    %p142 = scmp.ne.s32.totalorder %s131, %s134
    %p143 = scmp.eq.s32.totalorder %s16, 1
    %p144 = por %p142, %p143
    %p145 = scmp.ne.s32.totalorder %s134, %s135
    %p146 = scmp.eq.s32.totalorder %s16, 0
    %p147 = por %p145, %p146
    %p148 = scmp.ne.s32.totalorder %s134, %s135
    %p149 = scmp.eq.s32.totalorder %s17, 1
    %p150 = por %p148, %p149
    %p152 = scmp.ne.s32.totalorder %s135, %s151
    %p153 = scmp.eq.s32.totalorder %s17, 0
    %p154 = por %p152, %p153
    %p155 = scmp.le.s32.totalorder 1, %s11
    %p156 = scmp.lt.s32.totalorder %s11, 3
    %p157 = pnand %p155, %p156
    %p158 = pneg %p157
    // Predicated region
    $region9: #{tpu_custom_call.1} parent=5 // pred_check
      _
    $region10: #{tpu_custom_call.1} parent=5 // pred_check_branch
      %160 = sbr.rel (%p157) target = $region12
    $region11: #{tpu_custom_call.1} parent=5 // pred_region
      %s161 = ssub.s32 %s11, 1
      // Predicated region
      $region13: #{tpu_custom_call.1} parent=11 // pred_check
        %p162 = pneg %p58
      $region14: #{tpu_custom_call.1} parent=11 // pred_check_branch
        %164 = sbr.rel (%p162) target = $region16
      $region15: #{tpu_custom_call.1} parent=11 // pred_region
        _
      $region16: #{tpu_custom_call.1} parent=11 // pred_fallthru
        _
      // Predicated region
      $region17: #{tpu_custom_call.1} parent=11 // pred_check
        %p165 = pneg %p79
      $region18: #{tpu_custom_call.1} parent=11 // pred_check_branch
        %167 = sbr.rel (%p165) target = $region20
      $region19: #{tpu_custom_call.1} parent=11 // pred_region
        _
      $region20: #{tpu_custom_call.1} parent=11 // pred_fallthru
        _
      // Predicated region
      $region21: #{tpu_custom_call.1} parent=11 // pred_check
        %p168 = pneg %p100
      $region22: #{tpu_custom_call.1} parent=11 // pred_check_branch
        %170 = sbr.rel (%p168) target = $region24
      $region23: #{tpu_custom_call.1} parent=11 // pred_region
        _
      $region24: #{tpu_custom_call.1} parent=11 // pred_fallthru
        _
      // Predicated region
      $region25: #{tpu_custom_call.1} parent=11 // pred_check
        %p171 = pneg %p121
      $region26: #{tpu_custom_call.1} parent=11 // pred_check_branch
        %173 = sbr.rel (%p171) target = $region28
      $region27: #{tpu_custom_call.1} parent=11 // pred_region
        _
      $region28: #{tpu_custom_call.1} parent=11 // pred_fallthru
        _
    $region12: #{tpu_custom_call.1} parent=5 // pred_fallthru
      _
    %p174 = scmp.lt.s32.totalorder %s11, 2
    // Predicated region
    $region29: #{tpu_custom_call.1} parent=5 // pred_check
      %p175 = pneg %p174
    $region30: #{tpu_custom_call.1} parent=5 // pred_check_branch
      %177 = sbr.rel (%p175) target = $region32
    $region31: #{tpu_custom_call.1} parent=5 // pred_region
      // Predicated region
      $region33: #{tpu_custom_call.1} parent=31 // pred_check
        %p178 = pneg %p31
      $region34: #{tpu_custom_call.1} parent=31 // pred_check_branch
        %180 = sbr.rel (%p178) target = $region36
      $region35: #{tpu_custom_call.1} parent=31 // pred_region
        %p181 = scmp.lt.s32.totalorder %s11, 1
        %s182 = scalar_select %p181, %s11, 1
        %s183 = smul.addr %s182, 32
        %s184 = smul.addr %s183, 4
        %s185 = scalar_lea.vmem %s0, %s184
      $region36: #{tpu_custom_call.1} parent=31 // pred_fallthru
        _
    $region32: #{tpu_custom_call.1} parent=5 // pred_fallthru
      _
    %p186 = scmp.le.s32.totalorder 1, %s11
    %p187 = scmp.lt.s32.totalorder %s11, 3
    %p188 = pnand %p186, %p187
    %p189 = pneg %p188
    // Predicated region
    $region37: #{tpu_custom_call.1} parent=5 // pred_check
      _
    $region38: #{tpu_custom_call.1} parent=5 // pred_check_branch
      %191 = sbr.rel (%p188) target = $region40
    $region39: #{tpu_custom_call.1} parent=5 // pred_region
      %s192 = ssub.s32 %s11, 1
      %p193 = scmp.lt.s32.totalorder %s16, 1
      %s194 = scalar_select %p193, %s16, 1
      %s195 = smul.addr %s194, 32
      %s196 = smul.addr %s195, 4
      %s197 = scalar_lea.vmem %s0, %s196
      %p198 = pneg %p37
      %p199 = pneg %p34
      %p200 = pneg %p58
      %p201 = pneg %p55
      %p202 = pneg %p79
      %p203 = pneg %p76
      %p204 = pneg %p100
      %p205 = pneg %p97
      %p206 = pneg %p121
      %p207 = pneg %p118
      %p208 = pneg %p147
      %p209 = pneg %p144
      %p210 = scmp.lt.s32.totalorder %s16, 1
      %s211 = scalar_select %p210, %s16, 1
      %s212 = smul.addr %s211, 32
      %s213 = smul.addr %s212, 4
      %s214 = scalar_lea.vmem %s5, %s213
      %p215 = scmp.lt.s32.totalorder %s16, 1
      %s216 = scalar_select %p215, %s16, 1
      %s217 = smul.addr %s216, 32
      %s218 = smul.addr %s217, 4
      %s219 = scalar_lea.vmem %s0, %s218
      %p220 = scmp.lt.s32.totalorder %s16, 1
      %s221 = scalar_select %p220, %s16, 1
      %s222 = smul.addr %s221, 32
      %s223 = smul.addr %s222, 4
      %s224 = scalar_lea.vmem %s5, %s223
      %vm226 = vcmask 27648
      %227 = vst.msk [vmem:[#allocation2] sm:$0xf] %vm226, 0
      %228 = vst.msk [vmem:[#allocation2 + $0x4] sm:$0xf] %vm226, 0
      %229 = vst.msk [vmem:[#allocation2 + $0x8] sm:$0xf] %vm226, 0
      %230 = vst.msk [vmem:[#allocation2 + $0xc] sm:$0xf] %vm226, 0
      %s231 = scalar_lea.vmem [#allocation2], 272
      %232 = vst.msk [vmem:[%s231] sm:$0xf] %vm226, 0
      %233 = vst.msk [vmem:[%s231 + $0x4] sm:$0xf] %vm226, 0
      %234 = vst.msk [vmem:[%s231 + $0x8] sm:$0xf] %vm226, 0
      %235 = vst.msk [vmem:[%s231 + $0xc] sm:$0xf] %vm226, 0
      %236 = vst.msk [vmem:[#allocation2] sm:$0xf] %vm226, 0
      %237 = vst.msk [vmem:[#allocation2 + $0x10] sm:$0xf] %vm226, 0
      %238 = vst.msk [vmem:[#allocation2 + $0x20] sm:$0xf] %vm226, 0
      %239 = vst.msk [vmem:[#allocation2 + $0x30] sm:$0xf] %vm226, 0
      %240 = vst.msk [vmem:[#allocation2 + $0x40] sm:$0xf] %vm226, 0
      %241 = vst.msk [vmem:[#allocation2 + $0x50] sm:$0xf] %vm226, 0
      %242 = vst.msk [vmem:[#allocation2 + $0x60] sm:$0xf] %vm226, 0
      %243 = vst.msk [vmem:[#allocation2 + $0x70] sm:$0xf] %vm226, 0
      %244 = vst.msk [vmem:[#allocation2 + $0x80] sm:$0xf] %vm226, 0
      %245 = vst.msk [vmem:[#allocation2 + $0x90] sm:$0xf] %vm226, 0
      %246 = vst.msk [vmem:[#allocation2 + $0xa0] sm:$0xf] %vm226, 0
      %247 = vst.msk [vmem:[#allocation2 + $0xb0] sm:$0xf] %vm226, 0
      %248 = vst.msk [vmem:[#allocation2 + $0xc0] sm:$0xf] %vm226, 0
      %249 = vst.msk [vmem:[#allocation2 + $0xd0] sm:$0xf] %vm226, 0
      %250 = vst.msk [vmem:[#allocation2 + $0xe0] sm:$0xf] %vm226, 0
      %251 = vst.msk [vmem:[#allocation2 + $0xf0] sm:$0xf] %vm226, 0
      %252 = vst.msk [vmem:[#allocation2 + $0x100] sm:$0xf] %vm226, 0
      %253 = vst.msk [vmem:[#allocation2 + $0x110] sm:$0xf] %vm226, 0
      %254 = vst.msk [vmem:[#allocation2 + $0xc] sm:$0xf] %vm226, 0
      %255 = vst.msk [vmem:[#allocation2 + $0x1c] sm:$0xf] %vm226, 0
      %256 = vst.msk [vmem:[#allocation2 + $0x2c] sm:$0xf] %vm226, 0
      %257 = vst.msk [vmem:[#allocation2 + $0x3c] sm:$0xf] %vm226, 0
      %258 = vst.msk [vmem:[#allocation2 + $0x4c] sm:$0xf] %vm226, 0
      %259 = vst.msk [vmem:[#allocation2 + $0x5c] sm:$0xf] %vm226, 0
      %260 = vst.msk [vmem:[#allocation2 + $0x6c] sm:$0xf] %vm226, 0
      %261 = vst.msk [vmem:[#allocation2 + $0x7c] sm:$0xf] %vm226, 0
      %262 = vst.msk [vmem:[#allocation2 + $0x8c] sm:$0xf] %vm226, 0
      %263 = vst.msk [vmem:[#allocation2 + $0x9c] sm:$0xf] %vm226, 0
      %264 = vst.msk [vmem:[#allocation2 + $0xac] sm:$0xf] %vm226, 0
      %265 = vst.msk [vmem:[#allocation2 + $0xbc] sm:$0xf] %vm226, 0
      %266 = vst.msk [vmem:[#allocation2 + $0xcc] sm:$0xf] %vm226, 0
      %267 = vst.msk [vmem:[#allocation2 + $0xdc] sm:$0xf] %vm226, 0
      %268 = vst.msk [vmem:[#allocation2 + $0xec] sm:$0xf] %vm226, 0
      %269 = vst.msk [vmem:[#allocation2 + $0xfc] sm:$0xf] %vm226, 0
      %270 = vst.msk [vmem:[#allocation2 + $0x10c] sm:$0xf] %vm226, 0
      %271 = vst.msk [vmem:[#allocation2 + $0x11c] sm:$0xf] %vm226, 0
      %272 = vst.msk [vmem:[#allocation3] sm:$0xf] %vm226, 0
      %273 = vst.msk [vmem:[#allocation3 + $0x4] sm:$0xf] %vm226, 0
      %274 = vst.msk [vmem:[#allocation3 + $0x8] sm:$0xf] %vm226, 0
      %275 = vst.msk [vmem:[#allocation3 + $0xc] sm:$0xf] %vm226, 0
      %s276 = scalar_lea.vmem [#allocation3], 272
      %277 = vst.msk [vmem:[%s276] sm:$0xf] %vm226, 0
      %278 = vst.msk [vmem:[%s276 + $0x4] sm:$0xf] %vm226, 0
      %279 = vst.msk [vmem:[%s276 + $0x8] sm:$0xf] %vm226, 0
      %280 = vst.msk [vmem:[%s276 + $0xc] sm:$0xf] %vm226, 0
      %281 = vst.msk [vmem:[#allocation3] sm:$0xf] %vm226, 0
      %282 = vst.msk [vmem:[#allocation3 + $0x10] sm:$0xf] %vm226, 0
      %283 = vst.msk [vmem:[#allocation3 + $0x20] sm:$0xf] %vm226, 0
      %284 = vst.msk [vmem:[#allocation3 + $0x30] sm:$0xf] %vm226, 0
      %285 = vst.msk [vmem:[#allocation3 + $0x40] sm:$0xf] %vm226, 0
      %286 = vst.msk [vmem:[#allocation3 + $0x50] sm:$0xf] %vm226, 0
      %287 = vst.msk [vmem:[#allocation3 + $0x60] sm:$0xf] %vm226, 0
      %288 = vst.msk [vmem:[#allocation3 + $0x70] sm:$0xf] %vm226, 0
      %289 = vst.msk [vmem:[#allocation3 + $0x80] sm:$0xf] %vm226, 0
      %290 = vst.msk [vmem:[#allocation3 + $0x90] sm:$0xf] %vm226, 0
      %291 = vst.msk [vmem:[#allocation3 + $0xa0] sm:$0xf] %vm226, 0
      %292 = vst.msk [vmem:[#allocation3 + $0xb0] sm:$0xf] %vm226, 0
      %293 = vst.msk [vmem:[#allocation3 + $0xc0] sm:$0xf] %vm226, 0
      %294 = vst.msk [vmem:[#allocation3 + $0xd0] sm:$0xf] %vm226, 0
      %295 = vst.msk [vmem:[#allocation3 + $0xe0] sm:$0xf] %vm226, 0
      %296 = vst.msk [vmem:[#allocation3 + $0xf0] sm:$0xf] %vm226, 0
      %297 = vst.msk [vmem:[#allocation3 + $0x100] sm:$0xf] %vm226, 0
      %298 = vst.msk [vmem:[#allocation3 + $0x110] sm:$0xf] %vm226, 0
      %299 = vst.msk [vmem:[#allocation3 + $0xc] sm:$0xf] %vm226, 0
      %300 = vst.msk [vmem:[#allocation3 + $0x1c] sm:$0xf] %vm226, 0
      %301 = vst.msk [vmem:[#allocation3 + $0x2c] sm:$0xf] %vm226, 0
      %302 = vst.msk [vmem:[#allocation3 + $0x3c] sm:$0xf] %vm226, 0
      %303 = vst.msk [vmem:[#allocation3 + $0x4c] sm:$0xf] %vm226, 0
      %304 = vst.msk [vmem:[#allocation3 + $0x5c] sm:$0xf] %vm226, 0
      %305 = vst.msk [vmem:[#allocation3 + $0x6c] sm:$0xf] %vm226, 0
      %306 = vst.msk [vmem:[#allocation3 + $0x7c] sm:$0xf] %vm226, 0
      %307 = vst.msk [vmem:[#allocation3 + $0x8c] sm:$0xf] %vm226, 0
      %308 = vst.msk [vmem:[#allocation3 + $0x9c] sm:$0xf] %vm226, 0
      %309 = vst.msk [vmem:[#allocation3 + $0xac] sm:$0xf] %vm226, 0
      %310 = vst.msk [vmem:[#allocation3 + $0xbc] sm:$0xf] %vm226, 0
      %311 = vst.msk [vmem:[#allocation3 + $0xcc] sm:$0xf] %vm226, 0
      %312 = vst.msk [vmem:[#allocation3 + $0xdc] sm:$0xf] %vm226, 0
      %313 = vst.msk [vmem:[#allocation3 + $0xec] sm:$0xf] %vm226, 0
      %314 = vst.msk [vmem:[#allocation3 + $0xfc] sm:$0xf] %vm226, 0
      %315 = vst.msk [vmem:[#allocation3 + $0x10c] sm:$0xf] %vm226, 0
      %316 = vst.msk [vmem:[#allocation3 + $0x11c] sm:$0xf] %vm226, 0
      %v317 = vld [vmem:[%s219] sm:$0xf]
      %v318 = vld [vmem:[%s219 + $0x4] sm:$0xf]
      %v319 = vld [vmem:[%s219 + $0x8] sm:$0xf]
      %v320 = vld [vmem:[%s219 + $0xc] sm:$0xf]
      %v321 = vld [vmem:[%s219 + $0x10] sm:$0xf]
      %v322 = vld [vmem:[%s219 + $0x14] sm:$0xf]
      %v323 = vld [vmem:[%s219 + $0x18] sm:$0xf]
      %v324 = vld [vmem:[%s219 + $0x1c] sm:$0xf]
      %v325 = vld [vmem:[%s219 + $0x20] sm:$0xf]
      %v326 = vld [vmem:[%s219 + $0x24] sm:$0xf]
      %v327 = vld [vmem:[%s219 + $0x28] sm:$0xf]
      %v328 = vld [vmem:[%s219 + $0x2c] sm:$0xf]
      %v329 = vld [vmem:[%s219 + $0x30] sm:$0xf]
      %v330 = vld [vmem:[%s219 + $0x34] sm:$0xf]
      %v331 = vld [vmem:[%s219 + $0x38] sm:$0xf]
      %v332 = vld [vmem:[%s219 + $0x3c] sm:$0xf]
      %v333 = vld [vmem:[%s219 + $0x40] sm:$0xf]
      %v334 = vld [vmem:[%s219 + $0x44] sm:$0xf]
      %v335 = vld [vmem:[%s219 + $0x48] sm:$0xf]
      %v336 = vld [vmem:[%s219 + $0x4c] sm:$0xf]
      %v337 = vld [vmem:[%s219 + $0x50] sm:$0xf]
      %v338 = vld [vmem:[%s219 + $0x54] sm:$0xf]
      %v339 = vld [vmem:[%s219 + $0x58] sm:$0xf]
      %v340 = vld [vmem:[%s219 + $0x5c] sm:$0xf]
      %v341 = vld [vmem:[%s219 + $0x60] sm:$0xf]
      %v342 = vld [vmem:[%s219 + $0x64] sm:$0xf]
      %v343 = vld [vmem:[%s219 + $0x68] sm:$0xf]
      %v344 = vld [vmem:[%s219 + $0x6c] sm:$0xf]
      %v345 = vld [vmem:[%s219 + $0x70] sm:$0xf]
      %v346 = vld [vmem:[%s219 + $0x74] sm:$0xf]
      %v347 = vld [vmem:[%s219 + $0x78] sm:$0xf]
      %v348 = vld [vmem:[%s219 + $0x7c] sm:$0xf]
      %s349 = scalar_lea.vmem [#allocation2], 16
      %350 = vst.msk [vmem:[%s349 + $0x4] sm:$0xf] %vm226, %v317
      %351 = vst.msk [vmem:[%s349 + $0x8] sm:$0xf] %vm226, %v318
      %352 = vst.msk [vmem:[%s349 + $0x14] sm:$0xf] %vm226, %v319
      %353 = vst.msk [vmem:[%s349 + $0x18] sm:$0xf] %vm226, %v320
      %354 = vst.msk [vmem:[%s349 + $0x24] sm:$0xf] %vm226, %v321
      %355 = vst.msk [vmem:[%s349 + $0x28] sm:$0xf] %vm226, %v322
      %356 = vst.msk [vmem:[%s349 + $0x34] sm:$0xf] %vm226, %v323
      %357 = vst.msk [vmem:[%s349 + $0x38] sm:$0xf] %vm226, %v324
      %358 = vst.msk [vmem:[%s349 + $0x44] sm:$0xf] %vm226, %v325
      %359 = vst.msk [vmem:[%s349 + $0x48] sm:$0xf] %vm226, %v326
      %360 = vst.msk [vmem:[%s349 + $0x54] sm:$0xf] %vm226, %v327
      %361 = vst.msk [vmem:[%s349 + $0x58] sm:$0xf] %vm226, %v328
      %362 = vst.msk [vmem:[%s349 + $0x64] sm:$0xf] %vm226, %v329
      %363 = vst.msk [vmem:[%s349 + $0x68] sm:$0xf] %vm226, %v330
      %364 = vst.msk [vmem:[%s349 + $0x74] sm:$0xf] %vm226, %v331
      %365 = vst.msk [vmem:[%s349 + $0x78] sm:$0xf] %vm226, %v332
      %366 = vst.msk [vmem:[%s349 + $0x84] sm:$0xf] %vm226, %v333
      %367 = vst.msk [vmem:[%s349 + $0x88] sm:$0xf] %vm226, %v334
      %368 = vst.msk [vmem:[%s349 + $0x94] sm:$0xf] %vm226, %v335
      %369 = vst.msk [vmem:[%s349 + $0x98] sm:$0xf] %vm226, %v336
      %370 = vst.msk [vmem:[%s349 + $0xa4] sm:$0xf] %vm226, %v337
      %371 = vst.msk [vmem:[%s349 + $0xa8] sm:$0xf] %vm226, %v338
      %372 = vst.msk [vmem:[%s349 + $0xb4] sm:$0xf] %vm226, %v339
      %373 = vst.msk [vmem:[%s349 + $0xb8] sm:$0xf] %vm226, %v340
      %374 = vst.msk [vmem:[%s349 + $0xc4] sm:$0xf] %vm226, %v341
      %375 = vst.msk [vmem:[%s349 + $0xc8] sm:$0xf] %vm226, %v342
      %376 = vst.msk [vmem:[%s349 + $0xd4] sm:$0xf] %vm226, %v343
      %377 = vst.msk [vmem:[%s349 + $0xd8] sm:$0xf] %vm226, %v344
      %378 = vst.msk [vmem:[%s349 + $0xe4] sm:$0xf] %vm226, %v345
      %379 = vst.msk [vmem:[%s349 + $0xe8] sm:$0xf] %vm226, %v346
      %380 = vst.msk [vmem:[%s349 + $0xf4] sm:$0xf] %vm226, %v347
      %381 = vst.msk [vmem:[%s349 + $0xf8] sm:$0xf] %vm226, %v348
      %v382 = vld [vmem:[%s1] sm:$0xf]
      %v383 = vld [vmem:[%s1 + $0x4] sm:$0xf]
      %v384 = vld [vmem:[%s1 + $0x8] sm:$0xf]
      %v385 = vld [vmem:[%s1 + $0xc] sm:$0xf]
      %v386 = vld [vmem:[%s1 + $0x10] sm:$0x3]
      %v387 = vld [vmem:[%s2] sm:$0xf]
      %v388 = vld [vmem:[%s2 + $0x4] sm:$0xf]
      %v389 = vld [vmem:[%s2 + $0x8] sm:$0xf]
      %v390 = vld [vmem:[%s2 + $0xc] sm:$0xf]
      %v391 = vld [vmem:[%s2 + $0x10] sm:$0x3]
      %v392 = vld [vmem:[%s3] sm:$0x1]
      %v394 = vlaneseq
      %v395 = vshrl.u32 %v394, 7
      %v396 = vsub.s32 0, %v395
      %v397 = vrot.slane %v392, %v396
      %v399 = vld [vmem:[%s4] sm:$0x1]
      %v401 = vlaneseq
      %v402 = vshrl.u32 %v401, 7
      %v403 = vsub.s32 0, %v402
      %v404 = vrot.slane %v399, %v403
      %s406 = smul.u32 0, 4
      %s407 = smul.addr %s406, 4
      %s408 = scalar_lea.vmem [#allocation2], %s407
      %v409 = vld [vmem:[%s408] sm:$0x8]
      %v410 = vld [vmem:[%s408 + $0x4] sm:$0xf]
      %v411 = vld [vmem:[%s408 + $0x8] sm:$0xf]
      %v412 = vld [vmem:[%s408 + $0x10] sm:$0x8]
      %v413 = vld [vmem:[%s408 + $0x14] sm:$0xf]
      %v414 = vld [vmem:[%s408 + $0x18] sm:$0xf]
      %v415 = vld [vmem:[%s408 + $0x20] sm:$0x8]
      %v416 = vld [vmem:[%s408 + $0x24] sm:$0xf]
      %v417 = vld [vmem:[%s408 + $0x28] sm:$0xf]
      %v418 = vld [vmem:[%s408 + $0x30] sm:$0x8]
      %v419 = vld [vmem:[%s408 + $0x34] sm:$0xf]
      %v420 = vld [vmem:[%s408 + $0x38] sm:$0xf]
      %v421 = vld [vmem:[%s408 + $0x40] sm:$0x8]
      %v422 = vld [vmem:[%s408 + $0x44] sm:$0xf]
      %v423 = vld [vmem:[%s408 + $0x48] sm:$0xf]
      %v424 = vld [vmem:[%s408 + $0x50] sm:$0x8]
      %v425 = vld [vmem:[%s408 + $0x54] sm:$0xf]
      %v426 = vld [vmem:[%s408 + $0x58] sm:$0xf]
      %v427 = vld [vmem:[%s408 + $0x60] sm:$0x8]
      %v428 = vld [vmem:[%s408 + $0x64] sm:$0xf]
      %v429 = vld [vmem:[%s408 + $0x68] sm:$0xf]
      %v430 = vld [vmem:[%s408 + $0x70] sm:$0x8]
      %v431 = vld [vmem:[%s408 + $0x74] sm:$0xf]
      %v432 = vld [vmem:[%s408 + $0x78] sm:$0xf]
      %vm433 = vsmask.f32 256
      %vm434 = vsmask.f32 4368
      %vm435 = vmor %vm433, %vm434
      %v437 = vshrl.u32 %v409, 16
      %v439 = vrot.slane %v437, 7
      %v440 = vrot.slane %v439, 4
      %v442 = vshrl.u32 %v410, 16
      %v444 = vrot.slane %v442, 7
      %v445 = vshll.u32 %v410, 16
      %v447 = vor.u32 %v444, %v445
      %v448 = vsel %vm435, %v440, %v447
      %v449 = vrot.slane %v444, 4
      %v451 = vshrl.u32 %v411, 16
      %v453 = vrot.slane %v451, 7
      %v454 = vshll.u32 %v411, 16
      %v456 = vor.u32 %v453, %v454
      %v457 = vsel %vm435, %v449, %v456
      %v459 = vshrl.u32 %v412, 16
      %v461 = vrot.slane %v459, 7
      %v462 = vrot.slane %v461, 4
      %v464 = vshrl.u32 %v413, 16
      %v466 = vrot.slane %v464, 7
      %v467 = vshll.u32 %v413, 16
      %v469 = vor.u32 %v466, %v467
      %v470 = vsel %vm435, %v462, %v469
      %v471 = vrot.slane %v466, 4
      %v473 = vshrl.u32 %v414, 16
      %v475 = vrot.slane %v473, 7
      %v476 = vshll.u32 %v414, 16
      %v478 = vor.u32 %v475, %v476
      %v479 = vsel %vm435, %v471, %v478
      %v481 = vshrl.u32 %v415, 16
      %v483 = vrot.slane %v481, 7
      %v484 = vrot.slane %v483, 4
      %v486 = vshrl.u32 %v416, 16
      %v488 = vrot.slane %v486, 7
      %v489 = vshll.u32 %v416, 16
      %v491 = vor.u32 %v488, %v489
      %v492 = vsel %vm435, %v484, %v491
      %v493 = vrot.slane %v488, 4
      %v495 = vshrl.u32 %v417, 16
      %v497 = vrot.slane %v495, 7
      %v498 = vshll.u32 %v417, 16
      %v500 = vor.u32 %v497, %v498
      %v501 = vsel %vm435, %v493, %v500
      %v503 = vshrl.u32 %v418, 16
      %v505 = vrot.slane %v503, 7
      %v506 = vrot.slane %v505, 4
      %v508 = vshrl.u32 %v419, 16
      %v510 = vrot.slane %v508, 7
      %v511 = vshll.u32 %v419, 16
      %v513 = vor.u32 %v510, %v511
      %v514 = vsel %vm435, %v506, %v513
      %v515 = vrot.slane %v510, 4
      %v517 = vshrl.u32 %v420, 16
      %v519 = vrot.slane %v517, 7
      %v520 = vshll.u32 %v420, 16
      %v522 = vor.u32 %v519, %v520
      %v523 = vsel %vm435, %v515, %v522
      %v525 = vshrl.u32 %v421, 16
      %v527 = vrot.slane %v525, 7
      %v528 = vrot.slane %v527, 4
      %v530 = vshrl.u32 %v422, 16
      %v532 = vrot.slane %v530, 7
      %v533 = vshll.u32 %v422, 16
      %v535 = vor.u32 %v532, %v533
      %v536 = vsel %vm435, %v528, %v535
      %v537 = vrot.slane %v532, 4
      %v539 = vshrl.u32 %v423, 16
      %v541 = vrot.slane %v539, 7
      %v542 = vshll.u32 %v423, 16
      %v544 = vor.u32 %v541, %v542
      %v545 = vsel %vm435, %v537, %v544
      %v547 = vshrl.u32 %v424, 16
      %v549 = vrot.slane %v547, 7
      %v550 = vrot.slane %v549, 4
      %v552 = vshrl.u32 %v425, 16
      %v554 = vrot.slane %v552, 7
      %v555 = vshll.u32 %v425, 16
      %v557 = vor.u32 %v554, %v555
      %v558 = vsel %vm435, %v550, %v557
      %v559 = vrot.slane %v554, 4
      %v561 = vshrl.u32 %v426, 16
      %v563 = vrot.slane %v561, 7
      %v564 = vshll.u32 %v426, 16
      %v566 = vor.u32 %v563, %v564
      %v567 = vsel %vm435, %v559, %v566
      %v569 = vshrl.u32 %v427, 16
      %v571 = vrot.slane %v569, 7
      %v572 = vrot.slane %v571, 4
      %v574 = vshrl.u32 %v428, 16
      %v576 = vrot.slane %v574, 7
      %v577 = vshll.u32 %v428, 16
      %v579 = vor.u32 %v576, %v577
      %v580 = vsel %vm435, %v572, %v579
      %v581 = vrot.slane %v576, 4
      %v583 = vshrl.u32 %v429, 16
      %v585 = vrot.slane %v583, 7
      %v586 = vshll.u32 %v429, 16
      %v588 = vor.u32 %v585, %v586
      %v589 = vsel %vm435, %v581, %v588
      %v591 = vshrl.u32 %v430, 16
      %v593 = vrot.slane %v591, 7
      %v594 = vrot.slane %v593, 4
      %v596 = vshrl.u32 %v431, 16
      %v598 = vrot.slane %v596, 7
      %v599 = vshll.u32 %v431, 16
      %v601 = vor.u32 %v598, %v599
      %v602 = vsel %vm435, %v594, %v601
      %v603 = vrot.slane %v598, 4
      %v605 = vshrl.u32 %v432, 16
      %v607 = vrot.slane %v605, 7
      %v608 = vshll.u32 %v432, 16
      %v610 = vor.u32 %v607, %v608
      %v611 = vsel %vm435, %v603, %v610
      %v612 = vld [vmem:[%s408 + $0xc] sm:$0x1]
      %v613 = vld [vmem:[%s408 + $0x1c] sm:$0x1]
      %v614 = vld [vmem:[%s408 + $0x2c] sm:$0x1]
      %v615 = vld [vmem:[%s408 + $0x3c] sm:$0x1]
      %v616 = vld [vmem:[%s408 + $0x4c] sm:$0x1]
      %v617 = vld [vmem:[%s408 + $0x5c] sm:$0x1]
      %v618 = vld [vmem:[%s408 + $0x6c] sm:$0x1]
      %v619 = vld [vmem:[%s408 + $0x7c] sm:$0x1]
      %vm620 = vsmask.f32 3328
      %vm621 = vsmask.f32 7440
      %vm622 = vmor %vm620, %vm621
      %v623 = vrot.slane %v442, 4
      %v624 = vrot.slane %v445, 5
      %v625 = vor.u32 %v623, %v624
      %v626 = vrot.slane %v625, 4
      %v627 = vrot.slane %v454, 5
      %v628 = vsel %vm622, %v626, %v627
      %v629 = vrot.slane %v451, 4
      %v630 = vor.u32 %v629, %v627
      %v631 = vrot.slane %v630, 4
      %v633 = vshll.u32 %v612, 16
      %v635 = vrot.slane %v633, 5
      %v636 = vsel %vm622, %v631, %v635
      %v637 = vrot.slane %v464, 4
      %v638 = vrot.slane %v467, 5
      %v639 = vor.u32 %v637, %v638
      %v640 = vrot.slane %v639, 4
      %v641 = vrot.slane %v476, 5
      %v642 = vsel %vm622, %v640, %v641
      %v643 = vrot.slane %v473, 4
      %v644 = vor.u32 %v643, %v641
      %v645 = vrot.slane %v644, 4
      %v647 = vshll.u32 %v613, 16
      %v649 = vrot.slane %v647, 5
      %v650 = vsel %vm622, %v645, %v649
      %v651 = vrot.slane %v486, 4
      %v652 = vrot.slane %v489, 5
      %v653 = vor.u32 %v651, %v652
      %v654 = vrot.slane %v653, 4
      %v655 = vrot.slane %v498, 5
      %v656 = vsel %vm622, %v654, %v655
      %v657 = vrot.slane %v495, 4
      %v658 = vor.u32 %v657, %v655
      %v659 = vrot.slane %v658, 4
      %v661 = vshll.u32 %v614, 16
      %v663 = vrot.slane %v661, 5
      %v664 = vsel %vm622, %v659, %v663
      %v665 = vrot.slane %v508, 4
      %v666 = vrot.slane %v511, 5
      %v667 = vor.u32 %v665, %v666
      %v668 = vrot.slane %v667, 4
      %v669 = vrot.slane %v520, 5
      %v670 = vsel %vm622, %v668, %v669
      %v671 = vrot.slane %v517, 4
      %v672 = vor.u32 %v671, %v669
      %v673 = vrot.slane %v672, 4
      %v675 = vshll.u32 %v615, 16
      %v677 = vrot.slane %v675, 5
      %v678 = vsel %vm622, %v673, %v677
      %v679 = vrot.slane %v530, 4
      %v680 = vrot.slane %v533, 5
      %v681 = vor.u32 %v679, %v680
      %v682 = vrot.slane %v681, 4
      %v683 = vrot.slane %v542, 5
      %v684 = vsel %vm622, %v682, %v683
      %v685 = vrot.slane %v539, 4
      %v686 = vor.u32 %v685, %v683
      %v687 = vrot.slane %v686, 4
      %v689 = vshll.u32 %v616, 16
      %v691 = vrot.slane %v689, 5
      %v692 = vsel %vm622, %v687, %v691
      %v693 = vrot.slane %v552, 4
      %v694 = vrot.slane %v555, 5
      %v695 = vor.u32 %v693, %v694
      %v696 = vrot.slane %v695, 4
      %v697 = vrot.slane %v564, 5
      %v698 = vsel %vm622, %v696, %v697
      %v699 = vrot.slane %v561, 4
      %v700 = vor.u32 %v699, %v697
      %v701 = vrot.slane %v700, 4
      %v703 = vshll.u32 %v617, 16
      %v705 = vrot.slane %v703, 5
      %v706 = vsel %vm622, %v701, %v705
      %v707 = vrot.slane %v574, 4
      %v708 = vrot.slane %v577, 5
      %v709 = vor.u32 %v707, %v708
      %v710 = vrot.slane %v709, 4
      %v711 = vrot.slane %v586, 5
      %v712 = vsel %vm622, %v710, %v711
      %v713 = vrot.slane %v583, 4
      %v714 = vor.u32 %v713, %v711
      %v715 = vrot.slane %v714, 4
      %v717 = vshll.u32 %v618, 16
      %v719 = vrot.slane %v717, 5
      %v720 = vsel %vm622, %v715, %v719
      %v721 = vrot.slane %v596, 4
      %v722 = vrot.slane %v599, 5
      %v723 = vor.u32 %v721, %v722
      %v724 = vrot.slane %v723, 4
      %v725 = vrot.slane %v608, 5
      %v726 = vsel %vm622, %v724, %v725
      %v727 = vrot.slane %v605, 4
      %v728 = vor.u32 %v727, %v725
      %v729 = vrot.slane %v728, 4
      %v731 = vshll.u32 %v619, 16
      %v733 = vrot.slane %v731, 5
      %v734 = vsel %vm622, %v729, %v733
      %s735 = sadd.s32 0, 1
      %s736 = smul.u32 %s735, 4
      %s737 = smul.addr %s736, 4
      %s738 = scalar_lea.vmem [#allocation2], %s737
      %v739 = vld [vmem:[%s738] sm:$0x8]
      %v740 = vld [vmem:[%s738 + $0x4] sm:$0xf]
      %v741 = vld [vmem:[%s738 + $0x8] sm:$0xf]
      %v742 = vld [vmem:[%s738 + $0x10] sm:$0x8]
      %v743 = vld [vmem:[%s738 + $0x14] sm:$0xf]
      %v744 = vld [vmem:[%s738 + $0x18] sm:$0xf]
      %v745 = vld [vmem:[%s738 + $0x20] sm:$0x8]
      %v746 = vld [vmem:[%s738 + $0x24] sm:$0xf]
      %v747 = vld [vmem:[%s738 + $0x28] sm:$0xf]
      %v748 = vld [vmem:[%s738 + $0x30] sm:$0x8]
      %v749 = vld [vmem:[%s738 + $0x34] sm:$0xf]
      %v750 = vld [vmem:[%s738 + $0x38] sm:$0xf]
      %v751 = vld [vmem:[%s738 + $0x40] sm:$0x8]
      %v752 = vld [vmem:[%s738 + $0x44] sm:$0xf]
      %v753 = vld [vmem:[%s738 + $0x48] sm:$0xf]
      %v754 = vld [vmem:[%s738 + $0x50] sm:$0x8]
      %v755 = vld [vmem:[%s738 + $0x54] sm:$0xf]
      %v756 = vld [vmem:[%s738 + $0x58] sm:$0xf]
      %v757 = vld [vmem:[%s738 + $0x60] sm:$0x8]
      %v758 = vld [vmem:[%s738 + $0x64] sm:$0xf]
      %v759 = vld [vmem:[%s738 + $0x68] sm:$0xf]
      %v760 = vld [vmem:[%s738 + $0x70] sm:$0x8]
      %v761 = vld [vmem:[%s738 + $0x74] sm:$0xf]
      %v762 = vld [vmem:[%s738 + $0x78] sm:$0xf]
      %v764 = vshrl.u32 %v739, 16
      %v766 = vrot.slane %v764, 7
      %v767 = vrot.slane %v766, 4
      %v769 = vshrl.u32 %v740, 16
      %v771 = vrot.slane %v769, 7
      %v772 = vshll.u32 %v740, 16
      %v774 = vor.u32 %v771, %v772
      %v775 = vsel %vm435, %v767, %v774
      %v776 = vrot.slane %v771, 4
      %v778 = vshrl.u32 %v741, 16
      %v780 = vrot.slane %v778, 7
      %v781 = vshll.u32 %v741, 16
      %v783 = vor.u32 %v780, %v781
      %v784 = vsel %vm435, %v776, %v783
      %v786 = vshrl.u32 %v742, 16
      %v788 = vrot.slane %v786, 7
      %v789 = vrot.slane %v788, 4
      %v791 = vshrl.u32 %v743, 16
      %v793 = vrot.slane %v791, 7
      %v794 = vshll.u32 %v743, 16
      %v796 = vor.u32 %v793, %v794
      %v797 = vsel %vm435, %v789, %v796
      %v798 = vrot.slane %v793, 4
      %v800 = vshrl.u32 %v744, 16
      %v802 = vrot.slane %v800, 7
      %v803 = vshll.u32 %v744, 16
      %v805 = vor.u32 %v802, %v803
      %v806 = vsel %vm435, %v798, %v805
      %v808 = vshrl.u32 %v745, 16
      %v810 = vrot.slane %v808, 7
      %v811 = vrot.slane %v810, 4
      %v813 = vshrl.u32 %v746, 16
      %v815 = vrot.slane %v813, 7
      %v816 = vshll.u32 %v746, 16
      %v818 = vor.u32 %v815, %v816
      %v819 = vsel %vm435, %v811, %v818
      %v820 = vrot.slane %v815, 4
      %v822 = vshrl.u32 %v747, 16
      %v824 = vrot.slane %v822, 7
      %v825 = vshll.u32 %v747, 16
      %v827 = vor.u32 %v824, %v825
      %v828 = vsel %vm435, %v820, %v827
      %v830 = vshrl.u32 %v748, 16
      %v832 = vrot.slane %v830, 7
      %v833 = vrot.slane %v832, 4
      %v835 = vshrl.u32 %v749, 16
      %v837 = vrot.slane %v835, 7
      %v838 = vshll.u32 %v749, 16
      %v840 = vor.u32 %v837, %v838
      %v841 = vsel %vm435, %v833, %v840
      %v842 = vrot.slane %v837, 4
      %v844 = vshrl.u32 %v750, 16
      %v846 = vrot.slane %v844, 7
      %v847 = vshll.u32 %v750, 16
      %v849 = vor.u32 %v846, %v847
      %v850 = vsel %vm435, %v842, %v849
      %v852 = vshrl.u32 %v751, 16
      %v854 = vrot.slane %v852, 7
      %v855 = vrot.slane %v854, 4
      %v857 = vshrl.u32 %v752, 16
      %v859 = vrot.slane %v857, 7
      %v860 = vshll.u32 %v752, 16
      %v862 = vor.u32 %v859, %v860
      %v863 = vsel %vm435, %v855, %v862
      %v864 = vrot.slane %v859, 4
      %v866 = vshrl.u32 %v753, 16
      %v868 = vrot.slane %v866, 7
      %v869 = vshll.u32 %v753, 16
      %v871 = vor.u32 %v868, %v869
      %v872 = vsel %vm435, %v864, %v871
      %v874 = vshrl.u32 %v754, 16
      %v876 = vrot.slane %v874, 7
      %v877 = vrot.slane %v876, 4
      %v879 = vshrl.u32 %v755, 16
      %v881 = vrot.slane %v879, 7
      %v882 = vshll.u32 %v755, 16
      %v884 = vor.u32 %v881, %v882
      %v885 = vsel %vm435, %v877, %v884
      %v886 = vrot.slane %v881, 4
      %v888 = vshrl.u32 %v756, 16
      %v890 = vrot.slane %v888, 7
      %v891 = vshll.u32 %v756, 16
      %v893 = vor.u32 %v890, %v891
      %v894 = vsel %vm435, %v886, %v893
      %v896 = vshrl.u32 %v757, 16
      %v898 = vrot.slane %v896, 7
      %v899 = vrot.slane %v898, 4
      %v901 = vshrl.u32 %v758, 16
      %v903 = vrot.slane %v901, 7
      %v904 = vshll.u32 %v758, 16
      %v906 = vor.u32 %v903, %v904
      %v907 = vsel %vm435, %v899, %v906
      %v908 = vrot.slane %v903, 4
      %v910 = vshrl.u32 %v759, 16
      %v912 = vrot.slane %v910, 7
      %v913 = vshll.u32 %v759, 16
      %v915 = vor.u32 %v912, %v913
      %v916 = vsel %vm435, %v908, %v915
      %v918 = vshrl.u32 %v760, 16
      %v920 = vrot.slane %v918, 7
      %v921 = vrot.slane %v920, 4
      %v923 = vshrl.u32 %v761, 16
      %v925 = vrot.slane %v923, 7
      %v926 = vshll.u32 %v761, 16
      %v928 = vor.u32 %v925, %v926
      %v929 = vsel %vm435, %v921, %v928
      %v930 = vrot.slane %v925, 4
      %v932 = vshrl.u32 %v762, 16
      %v934 = vrot.slane %v932, 7
      %v935 = vshll.u32 %v762, 16
      %v937 = vor.u32 %v934, %v935
      %v938 = vsel %vm435, %v930, %v937
      %v939 = vld [vmem:[%s738 + $0xc] sm:$0x1]
      %v940 = vld [vmem:[%s738 + $0x1c] sm:$0x1]
      %v941 = vld [vmem:[%s738 + $0x2c] sm:$0x1]
      %v942 = vld [vmem:[%s738 + $0x3c] sm:$0x1]
      %v943 = vld [vmem:[%s738 + $0x4c] sm:$0x1]
      %v944 = vld [vmem:[%s738 + $0x5c] sm:$0x1]
      %v945 = vld [vmem:[%s738 + $0x6c] sm:$0x1]
      %v946 = vld [vmem:[%s738 + $0x7c] sm:$0x1]
      %v947 = vrot.slane %v769, 4
      %v948 = vrot.slane %v772, 5
      %v949 = vor.u32 %v947, %v948
      %v950 = vrot.slane %v949, 4
      %v951 = vrot.slane %v781, 5
      %v952 = vsel %vm622, %v950, %v951
      %v953 = vrot.slane %v778, 4
      %v954 = vor.u32 %v953, %v951
      %v955 = vrot.slane %v954, 4
      %v957 = vshll.u32 %v939, 16
      %v959 = vrot.slane %v957, 5
      %v960 = vsel %vm622, %v955, %v959
      %v961 = vrot.slane %v791, 4
      %v962 = vrot.slane %v794, 5
      %v963 = vor.u32 %v961, %v962
      %v964 = vrot.slane %v963, 4
      %v965 = vrot.slane %v803, 5
      %v966 = vsel %vm622, %v964, %v965
      %v967 = vrot.slane %v800, 4
      %v968 = vor.u32 %v967, %v965
      %v969 = vrot.slane %v968, 4
      %v971 = vshll.u32 %v940, 16
      %v973 = vrot.slane %v971, 5
      %v974 = vsel %vm622, %v969, %v973
      %v975 = vrot.slane %v813, 4
      %v976 = vrot.slane %v816, 5
      %v977 = vor.u32 %v975, %v976
      %v978 = vrot.slane %v977, 4
      %v979 = vrot.slane %v825, 5
      %v980 = vsel %vm622, %v978, %v979
      %v981 = vrot.slane %v822, 4
      %v982 = vor.u32 %v981, %v979
      %v983 = vrot.slane %v982, 4
      %v985 = vshll.u32 %v941, 16
      %v987 = vrot.slane %v985, 5
      %v988 = vsel %vm622, %v983, %v987
      %v989 = vrot.slane %v835, 4
      %v990 = vrot.slane %v838, 5
      %v991 = vor.u32 %v989, %v990
      %v992 = vrot.slane %v991, 4
      %v993 = vrot.slane %v847, 5
      %v994 = vsel %vm622, %v992, %v993
      %v995 = vrot.slane %v844, 4
      %v996 = vor.u32 %v995, %v993
      %v997 = vrot.slane %v996, 4
      %v999 = vshll.u32 %v942, 16
      %v1001 = vrot.slane %v999, 5
      %v1002 = vsel %vm622, %v997, %v1001
      %v1003 = vrot.slane %v857, 4
      %v1004 = vrot.slane %v860, 5
      %v1005 = vor.u32 %v1003, %v1004
      %v1006 = vrot.slane %v1005, 4
      %v1007 = vrot.slane %v869, 5
      %v1008 = vsel %vm622, %v1006, %v1007
      %v1009 = vrot.slane %v866, 4
      %v1010 = vor.u32 %v1009, %v1007
      %v1011 = vrot.slane %v1010, 4
      %v1013 = vshll.u32 %v943, 16
      %v1015 = vrot.slane %v1013, 5
      %v1016 = vsel %vm622, %v1011, %v1015
      %v1017 = vrot.slane %v879, 4
      %v1018 = vrot.slane %v882, 5
      %v1019 = vor.u32 %v1017, %v1018
      %v1020 = vrot.slane %v1019, 4
      %v1021 = vrot.slane %v891, 5
      %v1022 = vsel %vm622, %v1020, %v1021
      %v1023 = vrot.slane %v888, 4
      %v1024 = vor.u32 %v1023, %v1021
      %v1025 = vrot.slane %v1024, 4
      %v1027 = vshll.u32 %v944, 16
      %v1029 = vrot.slane %v1027, 5
      %v1030 = vsel %vm622, %v1025, %v1029
      %v1031 = vrot.slane %v901, 4
      %v1032 = vrot.slane %v904, 5
      %v1033 = vor.u32 %v1031, %v1032
      %v1034 = vrot.slane %v1033, 4
      %v1035 = vrot.slane %v913, 5
      %v1036 = vsel %vm622, %v1034, %v1035
      %v1037 = vrot.slane %v910, 4
      %v1038 = vor.u32 %v1037, %v1035
      %v1039 = vrot.slane %v1038, 4
      %v1041 = vshll.u32 %v945, 16
      %v1043 = vrot.slane %v1041, 5
      %v1044 = vsel %vm622, %v1039, %v1043
      %v1045 = vrot.slane %v923, 4
      %v1046 = vrot.slane %v926, 5
      %v1047 = vor.u32 %v1045, %v1046
      %v1048 = vrot.slane %v1047, 4
      %v1049 = vrot.slane %v935, 5
      %v1050 = vsel %vm622, %v1048, %v1049
      %v1051 = vrot.slane %v932, 4
      %v1052 = vor.u32 %v1051, %v1049
      %v1053 = vrot.slane %v1052, 4
      %v1055 = vshll.u32 %v946, 16
      %v1057 = vrot.slane %v1055, 5
      %v1058 = vsel %vm622, %v1053, %v1057
      %s1059 = sadd.s32 0, 2
      %s1060 = smul.u32 %s1059, 4
      %s1061 = smul.addr %s1060, 4
      %s1062 = scalar_lea.vmem [#allocation2], %s1061
      %v1063 = vld [vmem:[%s1062] sm:$0x8]
      %v1064 = vld [vmem:[%s1062 + $0x4] sm:$0xf]
      %v1065 = vld [vmem:[%s1062 + $0x8] sm:$0xf]
      %v1066 = vld [vmem:[%s1062 + $0x10] sm:$0x8]
      %v1067 = vld [vmem:[%s1062 + $0x14] sm:$0xf]
      %v1068 = vld [vmem:[%s1062 + $0x18] sm:$0xf]
      %v1069 = vld [vmem:[%s1062 + $0x20] sm:$0x8]
      %v1070 = vld [vmem:[%s1062 + $0x24] sm:$0xf]
      %v1071 = vld [vmem:[%s1062 + $0x28] sm:$0xf]
      %v1072 = vld [vmem:[%s1062 + $0x30] sm:$0x8]
      %v1073 = vld [vmem:[%s1062 + $0x34] sm:$0xf]
      %v1074 = vld [vmem:[%s1062 + $0x38] sm:$0xf]
      %v1075 = vld [vmem:[%s1062 + $0x40] sm:$0x8]
      %v1076 = vld [vmem:[%s1062 + $0x44] sm:$0xf]
      %v1077 = vld [vmem:[%s1062 + $0x48] sm:$0xf]
      %v1078 = vld [vmem:[%s1062 + $0x50] sm:$0x8]
      %v1079 = vld [vmem:[%s1062 + $0x54] sm:$0xf]
      %v1080 = vld [vmem:[%s1062 + $0x58] sm:$0xf]
      %v1081 = vld [vmem:[%s1062 + $0x60] sm:$0x8]
      %v1082 = vld [vmem:[%s1062 + $0x64] sm:$0xf]
      %v1083 = vld [vmem:[%s1062 + $0x68] sm:$0xf]
      %v1084 = vld [vmem:[%s1062 + $0x70] sm:$0x8]
      %v1085 = vld [vmem:[%s1062 + $0x74] sm:$0xf]
      %v1086 = vld [vmem:[%s1062 + $0x78] sm:$0xf]
      %v1088 = vshrl.u32 %v1063, 16
      %v1090 = vrot.slane %v1088, 7
      %v1091 = vrot.slane %v1090, 4
      %v1093 = vshrl.u32 %v1064, 16
      %v1095 = vrot.slane %v1093, 7
      %v1096 = vshll.u32 %v1064, 16
      %v1098 = vor.u32 %v1095, %v1096
      %v1099 = vsel %vm435, %v1091, %v1098
      %v1100 = vrot.slane %v1095, 4
      %v1102 = vshrl.u32 %v1065, 16
      %v1104 = vrot.slane %v1102, 7
      %v1105 = vshll.u32 %v1065, 16
      %v1107 = vor.u32 %v1104, %v1105
      %v1108 = vsel %vm435, %v1100, %v1107
      %v1110 = vshrl.u32 %v1066, 16
      %v1112 = vrot.slane %v1110, 7
      %v1113 = vrot.slane %v1112, 4
      %v1115 = vshrl.u32 %v1067, 16
      %v1117 = vrot.slane %v1115, 7
      %v1118 = vshll.u32 %v1067, 16
      %v1120 = vor.u32 %v1117, %v1118
      %v1121 = vsel %vm435, %v1113, %v1120
      %v1122 = vrot.slane %v1117, 4
      %v1124 = vshrl.u32 %v1068, 16
      %v1126 = vrot.slane %v1124, 7
      %v1127 = vshll.u32 %v1068, 16
      %v1129 = vor.u32 %v1126, %v1127
      %v1130 = vsel %vm435, %v1122, %v1129
      %v1132 = vshrl.u32 %v1069, 16
      %v1134 = vrot.slane %v1132, 7
      %v1135 = vrot.slane %v1134, 4
      %v1137 = vshrl.u32 %v1070, 16
      %v1139 = vrot.slane %v1137, 7
      %v1140 = vshll.u32 %v1070, 16
      %v1142 = vor.u32 %v1139, %v1140
      %v1143 = vsel %vm435, %v1135, %v1142
      %v1144 = vrot.slane %v1139, 4
      %v1146 = vshrl.u32 %v1071, 16
      %v1148 = vrot.slane %v1146, 7
      %v1149 = vshll.u32 %v1071, 16
      %v1151 = vor.u32 %v1148, %v1149
      %v1152 = vsel %vm435, %v1144, %v1151
      %v1154 = vshrl.u32 %v1072, 16
      %v1156 = vrot.slane %v1154, 7
      %v1157 = vrot.slane %v1156, 4
      %v1159 = vshrl.u32 %v1073, 16
      %v1161 = vrot.slane %v1159, 7
      %v1162 = vshll.u32 %v1073, 16
      %v1164 = vor.u32 %v1161, %v1162
      %v1165 = vsel %vm435, %v1157, %v1164
      %v1166 = vrot.slane %v1161, 4
      %v1168 = vshrl.u32 %v1074, 16
      %v1170 = vrot.slane %v1168, 7
      %v1171 = vshll.u32 %v1074, 16
      %v1173 = vor.u32 %v1170, %v1171
      %v1174 = vsel %vm435, %v1166, %v1173
      %v1176 = vshrl.u32 %v1075, 16
      %v1178 = vrot.slane %v1176, 7
      %v1179 = vrot.slane %v1178, 4
      %v1181 = vshrl.u32 %v1076, 16
      %v1183 = vrot.slane %v1181, 7
      %v1184 = vshll.u32 %v1076, 16
      %v1186 = vor.u32 %v1183, %v1184
      %v1187 = vsel %vm435, %v1179, %v1186
      %v1188 = vrot.slane %v1183, 4
      %v1190 = vshrl.u32 %v1077, 16
      %v1192 = vrot.slane %v1190, 7
      %v1193 = vshll.u32 %v1077, 16
      %v1195 = vor.u32 %v1192, %v1193
      %v1196 = vsel %vm435, %v1188, %v1195
      %v1198 = vshrl.u32 %v1078, 16
      %v1200 = vrot.slane %v1198, 7
      %v1201 = vrot.slane %v1200, 4
      %v1203 = vshrl.u32 %v1079, 16
      %v1205 = vrot.slane %v1203, 7
      %v1206 = vshll.u32 %v1079, 16
      %v1208 = vor.u32 %v1205, %v1206
      %v1209 = vsel %vm435, %v1201, %v1208
      %v1210 = vrot.slane %v1205, 4
      %v1212 = vshrl.u32 %v1080, 16
      %v1214 = vrot.slane %v1212, 7
      %v1215 = vshll.u32 %v1080, 16
      %v1217 = vor.u32 %v1214, %v1215
      %v1218 = vsel %vm435, %v1210, %v1217
      %v1220 = vshrl.u32 %v1081, 16
      %v1222 = vrot.slane %v1220, 7
      %v1223 = vrot.slane %v1222, 4
      %v1225 = vshrl.u32 %v1082, 16
      %v1227 = vrot.slane %v1225, 7
      %v1228 = vshll.u32 %v1082, 16
      %v1230 = vor.u32 %v1227, %v1228
      %v1231 = vsel %vm435, %v1223, %v1230
      %v1232 = vrot.slane %v1227, 4
      %v1234 = vshrl.u32 %v1083, 16
      %v1236 = vrot.slane %v1234, 7
      %v1237 = vshll.u32 %v1083, 16
      %v1239 = vor.u32 %v1236, %v1237
      %v1240 = vsel %vm435, %v1232, %v1239
      %v1242 = vshrl.u32 %v1084, 16
      %v1244 = vrot.slane %v1242, 7
      %v1245 = vrot.slane %v1244, 4
      %v1247 = vshrl.u32 %v1085, 16
      %v1249 = vrot.slane %v1247, 7
      %v1250 = vshll.u32 %v1085, 16
      %v1252 = vor.u32 %v1249, %v1250
      %v1253 = vsel %vm435, %v1245, %v1252
      %v1254 = vrot.slane %v1249, 4
      %v1256 = vshrl.u32 %v1086, 16
      %v1258 = vrot.slane %v1256, 7
      %v1259 = vshll.u32 %v1086, 16
      %v1261 = vor.u32 %v1258, %v1259
      %v1262 = vsel %vm435, %v1254, %v1261
      %v1263 = vld [vmem:[%s1062 + $0xc] sm:$0x1]
      %v1264 = vld [vmem:[%s1062 + $0x1c] sm:$0x1]
      %v1265 = vld [vmem:[%s1062 + $0x2c] sm:$0x1]
      %v1266 = vld [vmem:[%s1062 + $0x3c] sm:$0x1]
      %v1267 = vld [vmem:[%s1062 + $0x4c] sm:$0x1]
      %v1268 = vld [vmem:[%s1062 + $0x5c] sm:$0x1]
      %v1269 = vld [vmem:[%s1062 + $0x6c] sm:$0x1]
      %v1270 = vld [vmem:[%s1062 + $0x7c] sm:$0x1]
      %v1271 = vrot.slane %v1093, 4
      %v1272 = vrot.slane %v1096, 5
      %v1273 = vor.u32 %v1271, %v1272
      %v1274 = vrot.slane %v1273, 4
      %v1275 = vrot.slane %v1105, 5
      %v1276 = vsel %vm622, %v1274, %v1275
      %v1277 = vrot.slane %v1102, 4
      %v1278 = vor.u32 %v1277, %v1275
      %v1279 = vrot.slane %v1278, 4
      %v1281 = vshll.u32 %v1263, 16
      %v1283 = vrot.slane %v1281, 5
      %v1284 = vsel %vm622, %v1279, %v1283
      %v1285 = vrot.slane %v1115, 4
      %v1286 = vrot.slane %v1118, 5
      %v1287 = vor.u32 %v1285, %v1286
      %v1288 = vrot.slane %v1287, 4
      %v1289 = vrot.slane %v1127, 5
      %v1290 = vsel %vm622, %v1288, %v1289
      %v1291 = vrot.slane %v1124, 4
      %v1292 = vor.u32 %v1291, %v1289
      %v1293 = vrot.slane %v1292, 4
      %v1295 = vshll.u32 %v1264, 16
      %v1297 = vrot.slane %v1295, 5
      %v1298 = vsel %vm622, %v1293, %v1297
      %v1299 = vrot.slane %v1137, 4
      %v1300 = vrot.slane %v1140, 5
      %v1301 = vor.u32 %v1299, %v1300
      %v1302 = vrot.slane %v1301, 4
      %v1303 = vrot.slane %v1149, 5
      %v1304 = vsel %vm622, %v1302, %v1303
      %v1305 = vrot.slane %v1146, 4
      %v1306 = vor.u32 %v1305, %v1303
      %v1307 = vrot.slane %v1306, 4
      %v1309 = vshll.u32 %v1265, 16
      %v1311 = vrot.slane %v1309, 5
      %v1312 = vsel %vm622, %v1307, %v1311
      %v1313 = vrot.slane %v1159, 4
      %v1314 = vrot.slane %v1162, 5
      %v1315 = vor.u32 %v1313, %v1314
      %v1316 = vrot.slane %v1315, 4
      %v1317 = vrot.slane %v1171, 5
      %v1318 = vsel %vm622, %v1316, %v1317
      %v1319 = vrot.slane %v1168, 4
      %v1320 = vor.u32 %v1319, %v1317
      %v1321 = vrot.slane %v1320, 4
      %v1323 = vshll.u32 %v1266, 16
      %v1325 = vrot.slane %v1323, 5
      %v1326 = vsel %vm622, %v1321, %v1325
      %v1327 = vrot.slane %v1181, 4
      %v1328 = vrot.slane %v1184, 5
      %v1329 = vor.u32 %v1327, %v1328
      %v1330 = vrot.slane %v1329, 4
      %v1331 = vrot.slane %v1193, 5
      %v1332 = vsel %vm622, %v1330, %v1331
      %v1333 = vrot.slane %v1190, 4
      %v1334 = vor.u32 %v1333, %v1331
      %v1335 = vrot.slane %v1334, 4
      %v1337 = vshll.u32 %v1267, 16
      %v1339 = vrot.slane %v1337, 5
      %v1340 = vsel %vm622, %v1335, %v1339
      %v1341 = vrot.slane %v1203, 4
      %v1342 = vrot.slane %v1206, 5
      %v1343 = vor.u32 %v1341, %v1342
      %v1344 = vrot.slane %v1343, 4
      %v1345 = vrot.slane %v1215, 5
      %v1346 = vsel %vm622, %v1344, %v1345
      %v1347 = vrot.slane %v1212, 4
      %v1348 = vor.u32 %v1347, %v1345
      %v1349 = vrot.slane %v1348, 4
      %v1351 = vshll.u32 %v1268, 16
      %v1353 = vrot.slane %v1351, 5
      %v1354 = vsel %vm622, %v1349, %v1353
      %v1355 = vrot.slane %v1225, 4
      %v1356 = vrot.slane %v1228, 5
      %v1357 = vor.u32 %v1355, %v1356
      %v1358 = vrot.slane %v1357, 4
      %v1359 = vrot.slane %v1237, 5
      %v1360 = vsel %vm622, %v1358, %v1359
      %v1361 = vrot.slane %v1234, 4
      %v1362 = vor.u32 %v1361, %v1359
      %v1363 = vrot.slane %v1362, 4
      %v1365 = vshll.u32 %v1269, 16
      %v1367 = vrot.slane %v1365, 5
      %v1368 = vsel %vm622, %v1363, %v1367
      %v1369 = vrot.slane %v1247, 4
      %v1370 = vrot.slane %v1250, 5
      %v1371 = vor.u32 %v1369, %v1370
      %v1372 = vrot.slane %v1371, 4
      %v1373 = vrot.slane %v1259, 5
      %v1374 = vsel %vm622, %v1372, %v1373
      %v1375 = vrot.slane %v1256, 4
      %v1376 = vor.u32 %v1375, %v1373
      %v1377 = vrot.slane %v1376, 4
      %v1379 = vshll.u32 %v1270, 16
      %v1381 = vrot.slane %v1379, 5
      %v1382 = vsel %vm622, %v1377, %v1381
      %v1383 = vunpack.c.l.b16 %v448
      %v1384 = vunpack.c.l.b16 %v457
      %v1385 = vunpack.c.l.b16 %v470
      %v1386 = vunpack.c.l.b16 %v479
      %v1387 = vunpack.c.l.b16 %v492
      %v1388 = vunpack.c.l.b16 %v501
      %v1389 = vunpack.c.l.b16 %v514
      %v1390 = vunpack.c.l.b16 %v523
      %v1391 = vunpack.c.l.b16 %v536
      %v1392 = vunpack.c.l.b16 %v545
      %v1393 = vunpack.c.l.b16 %v558
      %v1394 = vunpack.c.l.b16 %v567
      %v1395 = vunpack.c.l.b16 %v580
      %v1396 = vunpack.c.l.b16 %v589
      %v1397 = vunpack.c.l.b16 %v602
      %v1398 = vunpack.c.l.b16 %v611
      %v1399 = vpack.c.b16 %v1384, %v1383
      %v1400 = vpack.c.b16 %v1386, %v1385
      %v1401 = vpack.c.b16 %v1388, %v1387
      %v1402 = vpack.c.b16 %v1390, %v1389
      %v1403 = vpack.c.b16 %v1392, %v1391
      %v1404 = vpack.c.b16 %v1394, %v1393
      %v1405 = vpack.c.b16 %v1396, %v1395
      %v1406 = vpack.c.b16 %v1398, %v1397
      %v1423 = vunpack.c.l.b16 %v410
      %v1424 = vunpack.c.l.b16 %v411
      %v1425 = vunpack.c.l.b16 %v413
      %v1426 = vunpack.c.l.b16 %v414
      %v1427 = vunpack.c.l.b16 %v416
      %v1428 = vunpack.c.l.b16 %v417
      %v1429 = vunpack.c.l.b16 %v419
      %v1430 = vunpack.c.l.b16 %v420
      %v1431 = vunpack.c.l.b16 %v422
      %v1432 = vunpack.c.l.b16 %v423
      %v1433 = vunpack.c.l.b16 %v425
      %v1434 = vunpack.c.l.b16 %v426
      %v1435 = vunpack.c.l.b16 %v428
      %v1436 = vunpack.c.l.b16 %v429
      %v1437 = vunpack.c.l.b16 %v431
      %v1438 = vunpack.c.l.b16 %v432
      %v1439 = vpack.c.b16 %v1424, %v1423
      %v1440 = vpack.c.b16 %v1426, %v1425
      %v1441 = vpack.c.b16 %v1428, %v1427
      %v1442 = vpack.c.b16 %v1430, %v1429
      %v1443 = vpack.c.b16 %v1432, %v1431
      %v1444 = vpack.c.b16 %v1434, %v1433
      %v1445 = vpack.c.b16 %v1436, %v1435
      %v1446 = vpack.c.b16 %v1438, %v1437
      %1447 = vrot.lane.b32.xlu0 %v1439, 4
      %v1448 = vpop.permute.xlu0 %1447
      %1449 = vrot.lane.b32.xlu0 %v1440, 4
      %v1450 = vpop.permute.xlu0 %1449
      %1451 = vrot.lane.b32.xlu0 %v1441, 4
      %v1452 = vpop.permute.xlu0 %1451
      %1453 = vrot.lane.b32.xlu0 %v1442, 4
      %v1454 = vpop.permute.xlu0 %1453
      %1455 = vrot.lane.b32.xlu0 %v1443, 4
      %v1456 = vpop.permute.xlu0 %1455
      %1457 = vrot.lane.b32.xlu0 %v1444, 4
      %v1458 = vpop.permute.xlu0 %1457
      %1459 = vrot.lane.b32.xlu0 %v1445, 4
      %v1460 = vpop.permute.xlu0 %1459
      %1461 = vrot.lane.b32.xlu0 %v1446, 4
      %v1462 = vpop.permute.xlu0 %1461
      %v1463 = vunpack.c.l.b16 %v628
      %v1464 = vunpack.c.l.b16 %v636
      %v1465 = vunpack.c.l.b16 %v642
      %v1466 = vunpack.c.l.b16 %v650
      %v1467 = vunpack.c.l.b16 %v656
      %v1468 = vunpack.c.l.b16 %v664
      %v1469 = vunpack.c.l.b16 %v670
      %v1470 = vunpack.c.l.b16 %v678
      %v1471 = vunpack.c.l.b16 %v684
      %v1472 = vunpack.c.l.b16 %v692
      %v1473 = vunpack.c.l.b16 %v698
      %v1474 = vunpack.c.l.b16 %v706
      %v1475 = vunpack.c.l.b16 %v712
      %v1476 = vunpack.c.l.b16 %v720
      %v1477 = vunpack.c.l.b16 %v726
      %v1478 = vunpack.c.l.b16 %v734
      %v1479 = vpack.c.b16 %v1464, %v1463
      %v1480 = vpack.c.b16 %v1466, %v1465
      %v1481 = vpack.c.b16 %v1468, %v1467
      %v1482 = vpack.c.b16 %v1470, %v1469
      %v1483 = vpack.c.b16 %v1472, %v1471
      %v1484 = vpack.c.b16 %v1474, %v1473
      %v1485 = vpack.c.b16 %v1476, %v1475
      %v1486 = vpack.c.b16 %v1478, %v1477
      %1487 = vrot.lane.b32.xlu0 %v1479, 8
      %v1488 = vpop.permute.xlu0 %1487
      %1489 = vrot.lane.b32.xlu0 %v1480, 8
      %v1490 = vpop.permute.xlu0 %1489
      %1491 = vrot.lane.b32.xlu0 %v1481, 8
      %v1492 = vpop.permute.xlu0 %1491
      %1493 = vrot.lane.b32.xlu0 %v1482, 8
      %v1494 = vpop.permute.xlu0 %1493
      %1495 = vrot.lane.b32.xlu0 %v1483, 8
      %v1496 = vpop.permute.xlu0 %1495
      %1497 = vrot.lane.b32.xlu0 %v1484, 8
      %v1498 = vpop.permute.xlu0 %1497
      %1499 = vrot.lane.b32.xlu0 %v1485, 8
      %v1500 = vpop.permute.xlu0 %1499
      %1501 = vrot.lane.b32.xlu0 %v1486, 8
      %v1502 = vpop.permute.xlu0 %1501
      %v1503 = vunpack.c.l.b16 %v775
      %v1504 = vunpack.c.l.b16 %v784
      %v1505 = vunpack.c.l.b16 %v797
      %v1506 = vunpack.c.l.b16 %v806
      %v1507 = vunpack.c.l.b16 %v819
      %v1508 = vunpack.c.l.b16 %v828
      %v1509 = vunpack.c.l.b16 %v841
      %v1510 = vunpack.c.l.b16 %v850
      %v1511 = vunpack.c.l.b16 %v863
      %v1512 = vunpack.c.l.b16 %v872
      %v1513 = vunpack.c.l.b16 %v885
      %v1514 = vunpack.c.l.b16 %v894
      %v1515 = vunpack.c.l.b16 %v907
      %v1516 = vunpack.c.l.b16 %v916
      %v1517 = vunpack.c.l.b16 %v929
      %v1518 = vunpack.c.l.b16 %v938
      %v1519 = vpack.c.b16 %v1504, %v1503
      %v1520 = vpack.c.b16 %v1506, %v1505
      %v1521 = vpack.c.b16 %v1508, %v1507
      %v1522 = vpack.c.b16 %v1510, %v1509
      %v1523 = vpack.c.b16 %v1512, %v1511
      %v1524 = vpack.c.b16 %v1514, %v1513
      %v1525 = vpack.c.b16 %v1516, %v1515
      %v1526 = vpack.c.b16 %v1518, %v1517
      %1527 = vrot.lane.b32.xlu0 %v1519, 12
      %v1528 = vpop.permute.xlu0 %1527
      %1529 = vrot.lane.b32.xlu0 %v1520, 12
      %v1530 = vpop.permute.xlu0 %1529
      %1531 = vrot.lane.b32.xlu0 %v1521, 12
      %v1532 = vpop.permute.xlu0 %1531
      %1533 = vrot.lane.b32.xlu0 %v1522, 12
      %v1534 = vpop.permute.xlu0 %1533
      %1535 = vrot.lane.b32.xlu0 %v1523, 12
      %v1536 = vpop.permute.xlu0 %1535
      %1537 = vrot.lane.b32.xlu0 %v1524, 12
      %v1538 = vpop.permute.xlu0 %1537
      %1539 = vrot.lane.b32.xlu0 %v1525, 12
      %v1540 = vpop.permute.xlu0 %1539
      %1541 = vrot.lane.b32.xlu0 %v1526, 12
      %v1542 = vpop.permute.xlu0 %1541
      %v1559 = vunpack.c.l.b16 %v740
      %v1560 = vunpack.c.l.b16 %v741
      %v1561 = vunpack.c.l.b16 %v743
      %v1562 = vunpack.c.l.b16 %v744
      %v1563 = vunpack.c.l.b16 %v746
      %v1564 = vunpack.c.l.b16 %v747
      %v1565 = vunpack.c.l.b16 %v749
      %v1566 = vunpack.c.l.b16 %v750
      %v1567 = vunpack.c.l.b16 %v752
      %v1568 = vunpack.c.l.b16 %v753
      %v1569 = vunpack.c.l.b16 %v755
      %v1570 = vunpack.c.l.b16 %v756
      %v1571 = vunpack.c.l.b16 %v758
      %v1572 = vunpack.c.l.b16 %v759
      %v1573 = vunpack.c.l.b16 %v761
      %v1574 = vunpack.c.l.b16 %v762
      %v1575 = vpack.c.b16 %v1560, %v1559
      %v1576 = vpack.c.b16 %v1562, %v1561
      %v1577 = vpack.c.b16 %v1564, %v1563
      %v1578 = vpack.c.b16 %v1566, %v1565
      %v1579 = vpack.c.b16 %v1568, %v1567
      %v1580 = vpack.c.b16 %v1570, %v1569
      %v1581 = vpack.c.b16 %v1572, %v1571
      %v1582 = vpack.c.b16 %v1574, %v1573
      %1583 = vrot.lane.b32.xlu0 %v1575, 16
      %v1584 = vpop.permute.xlu0 %1583
      %1585 = vrot.lane.b32.xlu0 %v1576, 16
      %v1586 = vpop.permute.xlu0 %1585
      %1587 = vrot.lane.b32.xlu0 %v1577, 16
      %v1588 = vpop.permute.xlu0 %1587
      %1589 = vrot.lane.b32.xlu0 %v1578, 16
      %v1590 = vpop.permute.xlu0 %1589
      %1591 = vrot.lane.b32.xlu0 %v1579, 16
      %v1592 = vpop.permute.xlu0 %1591
      %1593 = vrot.lane.b32.xlu0 %v1580, 16
      %v1594 = vpop.permute.xlu0 %1593
      %1595 = vrot.lane.b32.xlu0 %v1581, 16
      %v1596 = vpop.permute.xlu0 %1595
      %1597 = vrot.lane.b32.xlu0 %v1582, 16
      %v1598 = vpop.permute.xlu0 %1597
      %v1599 = vunpack.c.l.b16 %v952
      %v1600 = vunpack.c.l.b16 %v960
      %v1601 = vunpack.c.l.b16 %v966
      %v1602 = vunpack.c.l.b16 %v974
      %v1603 = vunpack.c.l.b16 %v980
      %v1604 = vunpack.c.l.b16 %v988
      %v1605 = vunpack.c.l.b16 %v994
      %v1606 = vunpack.c.l.b16 %v1002
      %v1607 = vunpack.c.l.b16 %v1008
      %v1608 = vunpack.c.l.b16 %v1016
      %v1609 = vunpack.c.l.b16 %v1022
      %v1610 = vunpack.c.l.b16 %v1030
      %v1611 = vunpack.c.l.b16 %v1036
      %v1612 = vunpack.c.l.b16 %v1044
      %v1613 = vunpack.c.l.b16 %v1050
      %v1614 = vunpack.c.l.b16 %v1058
      %v1615 = vpack.c.b16 %v1600, %v1599
      %v1616 = vpack.c.b16 %v1602, %v1601
      %v1617 = vpack.c.b16 %v1604, %v1603
      %v1618 = vpack.c.b16 %v1606, %v1605
      %v1619 = vpack.c.b16 %v1608, %v1607
      %v1620 = vpack.c.b16 %v1610, %v1609
      %v1621 = vpack.c.b16 %v1612, %v1611
      %v1622 = vpack.c.b16 %v1614, %v1613
      %1623 = vrot.lane.b32.xlu0 %v1615, 20
      %v1624 = vpop.permute.xlu0 %1623
      %1625 = vrot.lane.b32.xlu0 %v1616, 20
      %v1626 = vpop.permute.xlu0 %1625
      %1627 = vrot.lane.b32.xlu0 %v1617, 20
      %v1628 = vpop.permute.xlu0 %1627
      %1629 = vrot.lane.b32.xlu0 %v1618, 20
      %v1630 = vpop.permute.xlu0 %1629
      %1631 = vrot.lane.b32.xlu0 %v1619, 20
      %v1632 = vpop.permute.xlu0 %1631
      %1633 = vrot.lane.b32.xlu0 %v1620, 20
      %v1634 = vpop.permute.xlu0 %1633
      %1635 = vrot.lane.b32.xlu0 %v1621, 20
      %v1636 = vpop.permute.xlu0 %1635
      %1637 = vrot.lane.b32.xlu0 %v1622, 20
      %v1638 = vpop.permute.xlu0 %1637
      %v1639 = vunpack.c.l.b16 %v1099
      %v1640 = vunpack.c.l.b16 %v1108
      %v1641 = vunpack.c.l.b16 %v1121
      %v1642 = vunpack.c.l.b16 %v1130
      %v1643 = vunpack.c.l.b16 %v1143
      %v1644 = vunpack.c.l.b16 %v1152
      %v1645 = vunpack.c.l.b16 %v1165
      %v1646 = vunpack.c.l.b16 %v1174
      %v1647 = vunpack.c.l.b16 %v1187
      %v1648 = vunpack.c.l.b16 %v1196
      %v1649 = vunpack.c.l.b16 %v1209
      %v1650 = vunpack.c.l.b16 %v1218
      %v1651 = vunpack.c.l.b16 %v1231
      %v1652 = vunpack.c.l.b16 %v1240
      %v1653 = vunpack.c.l.b16 %v1253
      %v1654 = vunpack.c.l.b16 %v1262
      %v1655 = vpack.c.b16 %v1640, %v1639
      %v1656 = vpack.c.b16 %v1642, %v1641
      %v1657 = vpack.c.b16 %v1644, %v1643
      %v1658 = vpack.c.b16 %v1646, %v1645
      %v1659 = vpack.c.b16 %v1648, %v1647
      %v1660 = vpack.c.b16 %v1650, %v1649
      %v1661 = vpack.c.b16 %v1652, %v1651
      %v1662 = vpack.c.b16 %v1654, %v1653
      %1663 = vrot.lane.b32.xlu0 %v1655, 24
      %v1664 = vpop.permute.xlu0 %1663
      %1665 = vrot.lane.b32.xlu0 %v1656, 24
      %v1666 = vpop.permute.xlu0 %1665
      %1667 = vrot.lane.b32.xlu0 %v1657, 24
      %v1668 = vpop.permute.xlu0 %1667
      %1669 = vrot.lane.b32.xlu0 %v1658, 24
      %v1670 = vpop.permute.xlu0 %1669
      %1671 = vrot.lane.b32.xlu0 %v1659, 24
      %v1672 = vpop.permute.xlu0 %1671
      %1673 = vrot.lane.b32.xlu0 %v1660, 24
      %v1674 = vpop.permute.xlu0 %1673
      %1675 = vrot.lane.b32.xlu0 %v1661, 24
      %v1676 = vpop.permute.xlu0 %1675
      %1677 = vrot.lane.b32.xlu0 %v1662, 24
      %v1678 = vpop.permute.xlu0 %1677
      %v1695 = vunpack.c.l.b16 %v1064
      %v1696 = vunpack.c.l.b16 %v1065
      %v1697 = vunpack.c.l.b16 %v1067
      %v1698 = vunpack.c.l.b16 %v1068
      %v1699 = vunpack.c.l.b16 %v1070
      %v1700 = vunpack.c.l.b16 %v1071
      %v1701 = vunpack.c.l.b16 %v1073
      %v1702 = vunpack.c.l.b16 %v1074
      %v1703 = vunpack.c.l.b16 %v1076
      %v1704 = vunpack.c.l.b16 %v1077
      %v1705 = vunpack.c.l.b16 %v1079
      %v1706 = vunpack.c.l.b16 %v1080
      %v1707 = vunpack.c.l.b16 %v1082
      %v1708 = vunpack.c.l.b16 %v1083
      %v1709 = vunpack.c.l.b16 %v1085
      %v1710 = vunpack.c.l.b16 %v1086
      %v1711 = vpack.c.b16 %v1696, %v1695
      %v1712 = vpack.c.b16 %v1698, %v1697
      %v1713 = vpack.c.b16 %v1700, %v1699
      %v1714 = vpack.c.b16 %v1702, %v1701
      %v1715 = vpack.c.b16 %v1704, %v1703
      %v1716 = vpack.c.b16 %v1706, %v1705
      %v1717 = vpack.c.b16 %v1708, %v1707
      %v1718 = vpack.c.b16 %v1710, %v1709
      %1719 = vrot.lane.b32.xlu0 %v1711, 28
      %v1720 = vpop.permute.xlu0 %1719
      %1721 = vrot.lane.b32.xlu0 %v1712, 28
      %v1722 = vpop.permute.xlu0 %1721
      %1723 = vrot.lane.b32.xlu0 %v1713, 28
      %v1724 = vpop.permute.xlu0 %1723
      %1725 = vrot.lane.b32.xlu0 %v1714, 28
      %v1726 = vpop.permute.xlu0 %1725
      %1727 = vrot.lane.b32.xlu0 %v1715, 28
      %v1728 = vpop.permute.xlu0 %1727
      %1729 = vrot.lane.b32.xlu0 %v1716, 28
      %v1730 = vpop.permute.xlu0 %1729
      %1731 = vrot.lane.b32.xlu0 %v1717, 28
      %v1732 = vpop.permute.xlu0 %1731
      %1733 = vrot.lane.b32.xlu0 %v1718, 28
      %v1734 = vpop.permute.xlu0 %1733
      %v1735 = vunpack.c.l.b16 %v1276
      %v1736 = vunpack.c.l.b16 %v1284
      %v1737 = vunpack.c.l.b16 %v1290
      %v1738 = vunpack.c.l.b16 %v1298
      %v1739 = vunpack.c.l.b16 %v1304
      %v1740 = vunpack.c.l.b16 %v1312
      %v1741 = vunpack.c.l.b16 %v1318
      %v1742 = vunpack.c.l.b16 %v1326
      %v1743 = vunpack.c.l.b16 %v1332
      %v1744 = vunpack.c.l.b16 %v1340
      %v1745 = vunpack.c.l.b16 %v1346
      %v1746 = vunpack.c.l.b16 %v1354
      %v1747 = vunpack.c.l.b16 %v1360
      %v1748 = vunpack.c.l.b16 %v1368
      %v1749 = vunpack.c.l.b16 %v1374
      %v1750 = vunpack.c.l.b16 %v1382
      %v1751 = vpack.c.b16 %v1736, %v1735
      %v1752 = vpack.c.b16 %v1738, %v1737
      %v1753 = vpack.c.b16 %v1740, %v1739
      %v1754 = vpack.c.b16 %v1742, %v1741
      %v1755 = vpack.c.b16 %v1744, %v1743
      %v1756 = vpack.c.b16 %v1746, %v1745
      %v1757 = vpack.c.b16 %v1748, %v1747
      %v1758 = vpack.c.b16 %v1750, %v1749
      %1759 = vrot.lane.b32.xlu0 %v1751, 32
      %v1760 = vpop.permute.xlu0 %1759
      %1761 = vrot.lane.b32.xlu0 %v1752, 32
      %v1762 = vpop.permute.xlu0 %1761
      %1763 = vrot.lane.b32.xlu0 %v1753, 32
      %v1764 = vpop.permute.xlu0 %1763
      %1765 = vrot.lane.b32.xlu0 %v1754, 32
      %v1766 = vpop.permute.xlu0 %1765
      %1767 = vrot.lane.b32.xlu0 %v1755, 32
      %v1768 = vpop.permute.xlu0 %1767
      %1769 = vrot.lane.b32.xlu0 %v1756, 32
      %v1770 = vpop.permute.xlu0 %1769
      %1771 = vrot.lane.b32.xlu0 %v1757, 32
      %v1772 = vpop.permute.xlu0 %1771
      %1773 = vrot.lane.b32.xlu0 %v1758, 32
      %v1774 = vpop.permute.xlu0 %1773
      %vm1775 = vcmask 31744
      %v1778 = vsel %vm1775, %v1399, %v1448
      %v1781 = vsel %vm1775, %v1400, %v1450
      %v1784 = vsel %vm1775, %v1401, %v1452
      %v1787 = vsel %vm1775, %v1402, %v1454
      %v1790 = vsel %vm1775, %v1403, %v1456
      %v1793 = vsel %vm1775, %v1404, %v1458
      %v1796 = vsel %vm1775, %v1405, %v1460
      %v1799 = vsel %vm1775, %v1406, %v1462
      %vm1800 = vcmask 64512
      %v1802 = vsel %vm1800, %v1778, %v1488
      %v1804 = vsel %vm1800, %v1781, %v1490
      %v1806 = vsel %vm1800, %v1784, %v1492
      %v1808 = vsel %vm1800, %v1787, %v1494
      %v1810 = vsel %vm1800, %v1790, %v1496
      %v1812 = vsel %vm1800, %v1793, %v1498
      %v1814 = vsel %vm1800, %v1796, %v1500
      %v1816 = vsel %vm1800, %v1799, %v1502
      %vm1817 = vcmask 97280
      %v1819 = vsel %vm1817, %v1802, %v1528
      %v1821 = vsel %vm1817, %v1804, %v1530
      %v1823 = vsel %vm1817, %v1806, %v1532
      %v1825 = vsel %vm1817, %v1808, %v1534
      %v1827 = vsel %vm1817, %v1810, %v1536
      %v1829 = vsel %vm1817, %v1812, %v1538
      %v1831 = vsel %vm1817, %v1814, %v1540
      %v1833 = vsel %vm1817, %v1816, %v1542
      %vm1834 = vcmask 130048
      %v1836 = vsel %vm1834, %v1819, %v1584
      %v1838 = vsel %vm1834, %v1821, %v1586
      %v1840 = vsel %vm1834, %v1823, %v1588
      %v1842 = vsel %vm1834, %v1825, %v1590
      %v1844 = vsel %vm1834, %v1827, %v1592
      %v1846 = vsel %vm1834, %v1829, %v1594
      %v1848 = vsel %vm1834, %v1831, %v1596
      %v1850 = vsel %vm1834, %v1833, %v1598
      %vm1851 = vcmask 162816
      %v1853 = vsel %vm1851, %v1836, %v1624
      %v1855 = vsel %vm1851, %v1838, %v1626
      %v1857 = vsel %vm1851, %v1840, %v1628
      %v1859 = vsel %vm1851, %v1842, %v1630
      %v1861 = vsel %vm1851, %v1844, %v1632
      %v1863 = vsel %vm1851, %v1846, %v1634
      %v1865 = vsel %vm1851, %v1848, %v1636
      %v1867 = vsel %vm1851, %v1850, %v1638
      %vm1868 = vcmask 195584
      %v1870 = vsel %vm1868, %v1853, %v1664
      %v1872 = vsel %vm1868, %v1855, %v1666
      %v1874 = vsel %vm1868, %v1857, %v1668
      %v1876 = vsel %vm1868, %v1859, %v1670
      %v1878 = vsel %vm1868, %v1861, %v1672
      %v1880 = vsel %vm1868, %v1863, %v1674
      %v1882 = vsel %vm1868, %v1865, %v1676
      %v1884 = vsel %vm1868, %v1867, %v1678
      %vm1885 = vcmask 228352
      %v1887 = vsel %vm1885, %v1870, %v1720
      %v1889 = vsel %vm1885, %v1872, %v1722
      %v1891 = vsel %vm1885, %v1874, %v1724
      %v1893 = vsel %vm1885, %v1876, %v1726
      %v1895 = vsel %vm1885, %v1878, %v1728
      %v1897 = vsel %vm1885, %v1880, %v1730
      %v1899 = vsel %vm1885, %v1882, %v1732
      %v1901 = vsel %vm1885, %v1884, %v1734
      %vm1902 = vcmask 261120
      %v1904 = vsel %vm1902, %v1887, %v1760
      %v1906 = vsel %vm1902, %v1889, %v1762
      %v1908 = vsel %vm1902, %v1891, %v1764
      %v1910 = vsel %vm1902, %v1893, %v1766
      %v1912 = vsel %vm1902, %v1895, %v1768
      %v1914 = vsel %vm1902, %v1897, %v1770
      %v1916 = vsel %vm1902, %v1899, %v1772
      %v1918 = vsel %vm1902, %v1901, %v1774
      %v1924 = vunpack.c.l.b16 %v382
      %v1925 = vunpack.c.l.b16 %v383
      %v1926 = vunpack.c.l.b16 %v384
      %v1927 = vunpack.c.l.b16 %v385
      %v1928 = vunpack.c.l.b16 %v386
      %v1929 = vpack.c.b16 %v1925, %v1924
      %v1930 = vpack.c.b16 %v1927, %v1926
      %v1931 = vpack.c.b16 %v1928, %v1928
      %vm1934 = vcmask 293888
      %v1935 = vsel %vm1934, %v1904, 0
      %v1937 = vsel %vm1934, %v1906, 0
      %v1939 = vsel %vm1934, %v1908, 0
      %v1941 = vsel %vm1934, %v1910, 0
      %v1943 = vsel %vm1934, %v1912, 0
      %v1945 = vsel %vm1934, %v1914, 0
      %v1947 = vsel %vm1934, %v1916, 0
      %v1949 = vsel %vm1934, %v1918, 0
      %vm1951 = vcmask 1041408
      %v1953 = vsel %vm1951, %v1931, 0
      %1955 = vmatprep.subr.bf16.mxu0 0
      %1956 = vmatpush1.bf16.msra.mxu0 0
      %1957 = vmatprep.subr.bf16.mxu0 0
      %1958 = vmatpush1.bf16.msra.mxu0 0
      %1959 = vmatprep.subr.bf16.mxu0 0
      %1960 = vmatpush1.bf16.msra.mxu0 0
      %1961 = vmatprep.subr.bf16.mxu0 0
      %1962 = vmatpush1.bf16.msra.mxu0 0
      %1963 = vmatprep.subr.bf16.mxu0 0
      %1964 = vmatpush1.bf16.msra.mxu0 0
      %1965 = vmatprep.subr.bf16.mxu0 0
      %1966 = vmatpush1.bf16.msra.mxu0 %v1953
      %1967 = vmatprep.subr.bf16.mxu0 0
      %1968 = vmatpush1.bf16.msra.mxu0 %v1930
      %1969 = vmatprep.subr.bf16.mxu0 0
      %1970 = vmatpush1.bf16.msra.mxu0 %v1929
      %1971 = vmatprep.subr.bf16.mxu0 0
      %1972 = vmatpush2.bf16.msra.mxu0 0
      %1973 = vmatprep.subr.bf16.mxu0 0
      %1974 = vmatpush2.bf16.msra.mxu0 0
      %1975 = vmatprep.subr.bf16.mxu0 0
      %1976 = vmatpush2.bf16.msra.mxu0 0
      %1977 = vmatprep.subr.bf16.mxu0 0
      %1978 = vmatpush2.bf16.msra.mxu0 0
      %1979 = vmatprep.subr.bf16.mxu0 0
      %1980 = vmatpush2.bf16.msra.mxu0 0
      %1981 = vmatprep.subr.bf16.mxu0 0
      %1982 = vmatpush2.bf16.msra.mxu0 0
      %1983 = vmatprep.subr.bf16.mxu0 0
      %1984 = vmatpush2.bf16.msra.mxu0 0
      %1985 = vmatprep.subr.bf16.mxu0 0
      %1986 = vmatpush2.bf16.msra.mxu0 0
      %1987 = vmatprep.mubr.bf16.mxu0 0
      %1988 = vmatmul.mubr.bf16.gmra.mxu0 %v1935
      %v1989 = vpop.f32.mrf.mxu0
      %v1990 = vadd.f32 %v397, %v1989
      %v1991 = vpop.f32.mrf.mxu0
      %v1992 = vpop.f32.mrf.mxu0
      %v1993 = vadd.f32 %v397, %v1992
      %v1994 = vpop.f32.mrf.mxu0
      %1995 = vmatprep.mubr.bf16.mxu0 0
      %1996 = vmatmul.mubr.bf16.gmra.mxu0 %v1937
      %v1997 = vpop.f32.mrf.mxu0
      %v1998 = vadd.f32 %v397, %v1997
      %v1999 = vpop.f32.mrf.mxu0
      %v2000 = vpop.f32.mrf.mxu0
      %v2001 = vadd.f32 %v397, %v2000
      %v2002 = vpop.f32.mrf.mxu0
      %2003 = vmatprep.mubr.bf16.mxu0 0
      %2004 = vmatmul.mubr.bf16.gmra.mxu0 %v1939
      %v2005 = vpop.f32.mrf.mxu0
      %v2006 = vadd.f32 %v397, %v2005
      %v2007 = vpop.f32.mrf.mxu0
      %v2008 = vpop.f32.mrf.mxu0
      %v2009 = vadd.f32 %v397, %v2008
      %v2010 = vpop.f32.mrf.mxu0
      %2011 = vmatprep.mubr.bf16.mxu0 0
      %2012 = vmatmul.mubr.bf16.gmra.mxu0 %v1941
      %v2013 = vpop.f32.mrf.mxu0
      %v2014 = vadd.f32 %v397, %v2013
      %v2015 = vpop.f32.mrf.mxu0
      %v2016 = vpop.f32.mrf.mxu0
      %v2017 = vadd.f32 %v397, %v2016
      %v2018 = vpop.f32.mrf.mxu0
      %2019 = vmatprep.mubr.bf16.mxu0 0
      %2020 = vmatmul.mubr.bf16.gmra.mxu0 %v1943
      %v2021 = vpop.f32.mrf.mxu0
      %v2022 = vadd.f32 %v397, %v2021
      %v2023 = vpop.f32.mrf.mxu0
      %v2024 = vpop.f32.mrf.mxu0
      %v2025 = vadd.f32 %v397, %v2024
      %v2026 = vpop.f32.mrf.mxu0
      %2027 = vmatprep.mubr.bf16.mxu0 0
      %2028 = vmatmul.mubr.bf16.gmra.mxu0 %v1945
      %v2029 = vpop.f32.mrf.mxu0
      %v2030 = vadd.f32 %v397, %v2029
      %v2031 = vpop.f32.mrf.mxu0
      %v2032 = vpop.f32.mrf.mxu0
      %v2033 = vadd.f32 %v397, %v2032
      %v2034 = vpop.f32.mrf.mxu0
      %2035 = vmatprep.mubr.bf16.mxu0 0
      %2036 = vmatmul.mubr.bf16.gmra.mxu0 %v1947
      %v2037 = vpop.f32.mrf.mxu0
      %v2038 = vadd.f32 %v397, %v2037
      %v2039 = vpop.f32.mrf.mxu0
      %v2040 = vpop.f32.mrf.mxu0
      %v2041 = vadd.f32 %v397, %v2040
      %v2042 = vpop.f32.mrf.mxu0
      %2043 = vmatprep.mubr.bf16.mxu0 0
      %2044 = vmatmul.mubr.bf16.gmra.mxu0 %v1949
      %v2045 = vpop.f32.mrf.mxu0
      %v2046 = vadd.f32 %v397, %v2045
      %v2047 = vpop.f32.mrf.mxu0
      %v2048 = vpop.f32.mrf.mxu0
      %v2049 = vadd.f32 %v397, %v2048
      %v2050 = vpop.f32.mrf.mxu0
      %2051 = vdwg.mxu0
      %v2052 = vmax.f32 %v1990, 0.0
      %v2053 = vmax.f32 %v1993, 0.0
      %v2054 = vmax.f32 %v1998, 0.0
      %v2055 = vmax.f32 %v2001, 0.0
      %v2056 = vmax.f32 %v2006, 0.0
      %v2057 = vmax.f32 %v2009, 0.0
      %v2058 = vmax.f32 %v2014, 0.0
      %v2059 = vmax.f32 %v2017, 0.0
      %v2060 = vmax.f32 %v2022, 0.0
      %v2061 = vmax.f32 %v2025, 0.0
      %v2062 = vmax.f32 %v2030, 0.0
      %v2063 = vmax.f32 %v2033, 0.0
      %v2064 = vmax.f32 %v2038, 0.0
      %v2065 = vmax.f32 %v2041, 0.0
      %v2066 = vmax.f32 %v2046, 0.0
      %v2067 = vmax.f32 %v2049, 0.0
      %v2068 = vpack.c.bf16 %v2053, %v2052
      %v2069 = vpack.c.bf16 %v2055, %v2054
      %v2070 = vpack.c.bf16 %v2057, %v2056
      %v2071 = vpack.c.bf16 %v2059, %v2058
      %v2072 = vpack.c.bf16 %v2061, %v2060
      %v2073 = vpack.c.bf16 %v2063, %v2062
      %v2074 = vpack.c.bf16 %v2065, %v2064
      %v2075 = vpack.c.bf16 %v2067, %v2066
      %v2084 = vunpack.c.l.b16 %v2068
      %v2085 = vunpack.c.h.b16 %v2068
      %v2086 = vunpack.c.l.b16 %v2069
      %v2087 = vunpack.c.h.b16 %v2069
      %v2088 = vunpack.c.l.b16 %v2070
      %v2089 = vunpack.c.h.b16 %v2070
      %v2090 = vunpack.c.l.b16 %v2071
      %v2091 = vunpack.c.h.b16 %v2071
      %v2092 = vunpack.c.l.b16 %v2072
      %v2093 = vunpack.c.h.b16 %v2072
      %v2094 = vunpack.c.l.b16 %v2073
      %v2095 = vunpack.c.h.b16 %v2073
      %v2096 = vunpack.c.l.b16 %v2074
      %v2097 = vunpack.c.h.b16 %v2074
      %v2098 = vunpack.c.l.b16 %v2075
      %v2099 = vunpack.c.h.b16 %v2075
      %v2100 = vpack.c.b16 %v2084, %v2084
      %v2101 = vpack.c.b16 %v2085, %v2085
      %v2102 = vpack.c.b16 %v2086, %v2086
      %v2103 = vpack.c.b16 %v2087, %v2087
      %v2104 = vpack.c.b16 %v2088, %v2088
      %v2105 = vpack.c.b16 %v2089, %v2089
      %v2106 = vpack.c.b16 %v2090, %v2090
      %v2107 = vpack.c.b16 %v2091, %v2091
      %v2108 = vpack.c.b16 %v2092, %v2092
      %v2109 = vpack.c.b16 %v2093, %v2093
      %v2110 = vpack.c.b16 %v2094, %v2094
      %v2111 = vpack.c.b16 %v2095, %v2095
      %v2112 = vpack.c.b16 %v2096, %v2096
      %v2113 = vpack.c.b16 %v2097, %v2097
      %v2114 = vpack.c.b16 %v2098, %v2098
      %v2115 = vpack.c.b16 %v2099, %v2099
      %s2132 = smul.addr %s736, 4
      %s2133 = scalar_lea.vmem [#allocation3], %s2132
      %2134 = vst.msk [vmem:[%s2133 + $0x4] sm:$0xf] %vm226, %v2100
      %2135 = vst.msk [vmem:[%s2133 + $0x8] sm:$0xf] %vm226, %v2101
      %2136 = vst.msk [vmem:[%s2133 + $0x14] sm:$0xf] %vm226, %v2102
      %2137 = vst.msk [vmem:[%s2133 + $0x18] sm:$0xf] %vm226, %v2103
      %2138 = vst.msk [vmem:[%s2133 + $0x24] sm:$0xf] %vm226, %v2104
      %2139 = vst.msk [vmem:[%s2133 + $0x28] sm:$0xf] %vm226, %v2105
      %2140 = vst.msk [vmem:[%s2133 + $0x34] sm:$0xf] %vm226, %v2106
      %2141 = vst.msk [vmem:[%s2133 + $0x38] sm:$0xf] %vm226, %v2107
      %2142 = vst.msk [vmem:[%s2133 + $0x44] sm:$0xf] %vm226, %v2108
      %2143 = vst.msk [vmem:[%s2133 + $0x48] sm:$0xf] %vm226, %v2109
      %2144 = vst.msk [vmem:[%s2133 + $0x54] sm:$0xf] %vm226, %v2110
      %2145 = vst.msk [vmem:[%s2133 + $0x58] sm:$0xf] %vm226, %v2111
      %2146 = vst.msk [vmem:[%s2133 + $0x64] sm:$0xf] %vm226, %v2112
      %2147 = vst.msk [vmem:[%s2133 + $0x68] sm:$0xf] %vm226, %v2113
      %2148 = vst.msk [vmem:[%s2133 + $0x74] sm:$0xf] %vm226, %v2114
      %2149 = vst.msk [vmem:[%s2133 + $0x78] sm:$0xf] %vm226, %v2115
      %s2150 = smul.u32 8, 4
      %s2151 = smul.addr %s2150, 4
      %s2152 = scalar_lea.vmem [#allocation2], %s2151
      %v2153 = vld [vmem:[%s2152] sm:$0x8]
      %v2154 = vld [vmem:[%s2152 + $0x4] sm:$0xf]
      %v2155 = vld [vmem:[%s2152 + $0x8] sm:$0xf]
      %v2156 = vld [vmem:[%s2152 + $0x10] sm:$0x8]
      %v2157 = vld [vmem:[%s2152 + $0x14] sm:$0xf]
      %v2158 = vld [vmem:[%s2152 + $0x18] sm:$0xf]
      %v2159 = vld [vmem:[%s2152 + $0x20] sm:$0x8]
      %v2160 = vld [vmem:[%s2152 + $0x24] sm:$0xf]
      %v2161 = vld [vmem:[%s2152 + $0x28] sm:$0xf]
      %v2162 = vld [vmem:[%s2152 + $0x30] sm:$0x8]
      %v2163 = vld [vmem:[%s2152 + $0x34] sm:$0xf]
      %v2164 = vld [vmem:[%s2152 + $0x38] sm:$0xf]
      %v2165 = vld [vmem:[%s2152 + $0x40] sm:$0x8]
      %v2166 = vld [vmem:[%s2152 + $0x44] sm:$0xf]
      %v2167 = vld [vmem:[%s2152 + $0x48] sm:$0xf]
      %v2168 = vld [vmem:[%s2152 + $0x50] sm:$0x8]
      %v2169 = vld [vmem:[%s2152 + $0x54] sm:$0xf]
      %v2170 = vld [vmem:[%s2152 + $0x58] sm:$0xf]
      %v2171 = vld [vmem:[%s2152 + $0x60] sm:$0x8]
      %v2172 = vld [vmem:[%s2152 + $0x64] sm:$0xf]
      %v2173 = vld [vmem:[%s2152 + $0x68] sm:$0xf]
      %v2174 = vld [vmem:[%s2152 + $0x70] sm:$0x8]
      %v2175 = vld [vmem:[%s2152 + $0x74] sm:$0xf]
      %v2176 = vld [vmem:[%s2152 + $0x78] sm:$0xf]
      %v2178 = vshrl.u32 %v2153, 16
      %v2180 = vrot.slane %v2178, 7
      %v2181 = vrot.slane %v2180, 4
      %v2183 = vshrl.u32 %v2154, 16
      %v2185 = vrot.slane %v2183, 7
      %v2186 = vshll.u32 %v2154, 16
      %v2188 = vor.u32 %v2185, %v2186
      %v2189 = vsel %vm435, %v2181, %v2188
      %v2190 = vrot.slane %v2185, 4
      %v2192 = vshrl.u32 %v2155, 16
      %v2194 = vrot.slane %v2192, 7
      %v2195 = vshll.u32 %v2155, 16
      %v2197 = vor.u32 %v2194, %v2195
      %v2198 = vsel %vm435, %v2190, %v2197
      %v2200 = vshrl.u32 %v2156, 16
      %v2202 = vrot.slane %v2200, 7
      %v2203 = vrot.slane %v2202, 4
      %v2205 = vshrl.u32 %v2157, 16
      %v2207 = vrot.slane %v2205, 7
      %v2208 = vshll.u32 %v2157, 16
      %v2210 = vor.u32 %v2207, %v2208
      %v2211 = vsel %vm435, %v2203, %v2210
      %v2212 = vrot.slane %v2207, 4
      %v2214 = vshrl.u32 %v2158, 16
      %v2216 = vrot.slane %v2214, 7
      %v2217 = vshll.u32 %v2158, 16
      %v2219 = vor.u32 %v2216, %v2217
      %v2220 = vsel %vm435, %v2212, %v2219
      %v2222 = vshrl.u32 %v2159, 16
      %v2224 = vrot.slane %v2222, 7
      %v2225 = vrot.slane %v2224, 4
      %v2227 = vshrl.u32 %v2160, 16
      %v2229 = vrot.slane %v2227, 7
      %v2230 = vshll.u32 %v2160, 16
      %v2232 = vor.u32 %v2229, %v2230
      %v2233 = vsel %vm435, %v2225, %v2232
      %v2234 = vrot.slane %v2229, 4
      %v2236 = vshrl.u32 %v2161, 16
      %v2238 = vrot.slane %v2236, 7
      %v2239 = vshll.u32 %v2161, 16
      %v2241 = vor.u32 %v2238, %v2239
      %v2242 = vsel %vm435, %v2234, %v2241
      %v2244 = vshrl.u32 %v2162, 16
      %v2246 = vrot.slane %v2244, 7
      %v2247 = vrot.slane %v2246, 4
      %v2249 = vshrl.u32 %v2163, 16
      %v2251 = vrot.slane %v2249, 7
      %v2252 = vshll.u32 %v2163, 16
      %v2254 = vor.u32 %v2251, %v2252
      %v2255 = vsel %vm435, %v2247, %v2254
      %v2256 = vrot.slane %v2251, 4
      %v2258 = vshrl.u32 %v2164, 16
      %v2260 = vrot.slane %v2258, 7
      %v2261 = vshll.u32 %v2164, 16
      %v2263 = vor.u32 %v2260, %v2261
      %v2264 = vsel %vm435, %v2256, %v2263
      %v2266 = vshrl.u32 %v2165, 16
      %v2268 = vrot.slane %v2266, 7
      %v2269 = vrot.slane %v2268, 4
      %v2271 = vshrl.u32 %v2166, 16
      %v2273 = vrot.slane %v2271, 7
      %v2274 = vshll.u32 %v2166, 16
      %v2276 = vor.u32 %v2273, %v2274
      %v2277 = vsel %vm435, %v2269, %v2276
      %v2278 = vrot.slane %v2273, 4
      %v2280 = vshrl.u32 %v2167, 16
      %v2282 = vrot.slane %v2280, 7
      %v2283 = vshll.u32 %v2167, 16
      %v2285 = vor.u32 %v2282, %v2283
      %v2286 = vsel %vm435, %v2278, %v2285
      %v2288 = vshrl.u32 %v2168, 16
      %v2290 = vrot.slane %v2288, 7
      %v2291 = vrot.slane %v2290, 4
      %v2293 = vshrl.u32 %v2169, 16
      %v2295 = vrot.slane %v2293, 7
      %v2296 = vshll.u32 %v2169, 16
      %v2298 = vor.u32 %v2295, %v2296
      %v2299 = vsel %vm435, %v2291, %v2298
      %v2300 = vrot.slane %v2295, 4
      %v2302 = vshrl.u32 %v2170, 16
      %v2304 = vrot.slane %v2302, 7
      %v2305 = vshll.u32 %v2170, 16
      %v2307 = vor.u32 %v2304, %v2305
      %v2308 = vsel %vm435, %v2300, %v2307
      %v2310 = vshrl.u32 %v2171, 16
      %v2312 = vrot.slane %v2310, 7
      %v2313 = vrot.slane %v2312, 4
      %v2315 = vshrl.u32 %v2172, 16
      %v2317 = vrot.slane %v2315, 7
      %v2318 = vshll.u32 %v2172, 16
      %v2320 = vor.u32 %v2317, %v2318
      %v2321 = vsel %vm435, %v2313, %v2320
      %v2322 = vrot.slane %v2317, 4
      %v2324 = vshrl.u32 %v2173, 16
      %v2326 = vrot.slane %v2324, 7
      %v2327 = vshll.u32 %v2173, 16
      %v2329 = vor.u32 %v2326, %v2327
      %v2330 = vsel %vm435, %v2322, %v2329
      %v2332 = vshrl.u32 %v2174, 16
      %v2334 = vrot.slane %v2332, 7
      %v2335 = vrot.slane %v2334, 4
      %v2337 = vshrl.u32 %v2175, 16
      %v2339 = vrot.slane %v2337, 7
      %v2340 = vshll.u32 %v2175, 16
      %v2342 = vor.u32 %v2339, %v2340
      %v2343 = vsel %vm435, %v2335, %v2342
      %v2344 = vrot.slane %v2339, 4
      %v2346 = vshrl.u32 %v2176, 16
      %v2348 = vrot.slane %v2346, 7
      %v2349 = vshll.u32 %v2176, 16
      %v2351 = vor.u32 %v2348, %v2349
      %v2352 = vsel %vm435, %v2344, %v2351
      %v2353 = vld [vmem:[%s2152 + $0xc] sm:$0x1]
      %v2354 = vld [vmem:[%s2152 + $0x1c] sm:$0x1]
      %v2355 = vld [vmem:[%s2152 + $0x2c] sm:$0x1]
      %v2356 = vld [vmem:[%s2152 + $0x3c] sm:$0x1]
      %v2357 = vld [vmem:[%s2152 + $0x4c] sm:$0x1]
      %v2358 = vld [vmem:[%s2152 + $0x5c] sm:$0x1]
      %v2359 = vld [vmem:[%s2152 + $0x6c] sm:$0x1]
      %v2360 = vld [vmem:[%s2152 + $0x7c] sm:$0x1]
      %v2361 = vrot.slane %v2183, 4
      %v2362 = vrot.slane %v2186, 5
      %v2363 = vor.u32 %v2361, %v2362
      %v2364 = vrot.slane %v2363, 4
      %v2365 = vrot.slane %v2195, 5
      %v2366 = vsel %vm622, %v2364, %v2365
      %v2367 = vrot.slane %v2192, 4
      %v2368 = vor.u32 %v2367, %v2365
      %v2369 = vrot.slane %v2368, 4
      %v2371 = vshll.u32 %v2353, 16
      %v2373 = vrot.slane %v2371, 5
      %v2374 = vsel %vm622, %v2369, %v2373
      %v2375 = vrot.slane %v2205, 4
      %v2376 = vrot.slane %v2208, 5
      %v2377 = vor.u32 %v2375, %v2376
      %v2378 = vrot.slane %v2377, 4
      %v2379 = vrot.slane %v2217, 5
      %v2380 = vsel %vm622, %v2378, %v2379
      %v2381 = vrot.slane %v2214, 4
      %v2382 = vor.u32 %v2381, %v2379
      %v2383 = vrot.slane %v2382, 4
      %v2385 = vshll.u32 %v2354, 16
      %v2387 = vrot.slane %v2385, 5
      %v2388 = vsel %vm622, %v2383, %v2387
      %v2389 = vrot.slane %v2227, 4
      %v2390 = vrot.slane %v2230, 5
      %v2391 = vor.u32 %v2389, %v2390
      %v2392 = vrot.slane %v2391, 4
      %v2393 = vrot.slane %v2239, 5
      %v2394 = vsel %vm622, %v2392, %v2393
      %v2395 = vrot.slane %v2236, 4
      %v2396 = vor.u32 %v2395, %v2393
      %v2397 = vrot.slane %v2396, 4
      %v2399 = vshll.u32 %v2355, 16
      %v2401 = vrot.slane %v2399, 5
      %v2402 = vsel %vm622, %v2397, %v2401
      %v2403 = vrot.slane %v2249, 4
      %v2404 = vrot.slane %v2252, 5
      %v2405 = vor.u32 %v2403, %v2404
      %v2406 = vrot.slane %v2405, 4
      %v2407 = vrot.slane %v2261, 5
      %v2408 = vsel %vm622, %v2406, %v2407
      %v2409 = vrot.slane %v2258, 4
      %v2410 = vor.u32 %v2409, %v2407
      %v2411 = vrot.slane %v2410, 4
      %v2413 = vshll.u32 %v2356, 16
      %v2415 = vrot.slane %v2413, 5
      %v2416 = vsel %vm622, %v2411, %v2415
      %v2417 = vrot.slane %v2271, 4
      %v2418 = vrot.slane %v2274, 5
      %v2419 = vor.u32 %v2417, %v2418
      %v2420 = vrot.slane %v2419, 4
      %v2421 = vrot.slane %v2283, 5
      %v2422 = vsel %vm622, %v2420, %v2421
      %v2423 = vrot.slane %v2280, 4
      %v2424 = vor.u32 %v2423, %v2421
      %v2425 = vrot.slane %v2424, 4
      %v2427 = vshll.u32 %v2357, 16
      %v2429 = vrot.slane %v2427, 5
      %v2430 = vsel %vm622, %v2425, %v2429
      %v2431 = vrot.slane %v2293, 4
      %v2432 = vrot.slane %v2296, 5
      %v2433 = vor.u32 %v2431, %v2432
      %v2434 = vrot.slane %v2433, 4
      %v2435 = vrot.slane %v2305, 5
      %v2436 = vsel %vm622, %v2434, %v2435
      %v2437 = vrot.slane %v2302, 4
      %v2438 = vor.u32 %v2437, %v2435
      %v2439 = vrot.slane %v2438, 4
      %v2441 = vshll.u32 %v2358, 16
      %v2443 = vrot.slane %v2441, 5
      %v2444 = vsel %vm622, %v2439, %v2443
      %v2445 = vrot.slane %v2315, 4
      %v2446 = vrot.slane %v2318, 5
      %v2447 = vor.u32 %v2445, %v2446
      %v2448 = vrot.slane %v2447, 4
      %v2449 = vrot.slane %v2327, 5
      %v2450 = vsel %vm622, %v2448, %v2449
      %v2451 = vrot.slane %v2324, 4
      %v2452 = vor.u32 %v2451, %v2449
      %v2453 = vrot.slane %v2452, 4
      %v2455 = vshll.u32 %v2359, 16
      %v2457 = vrot.slane %v2455, 5
      %v2458 = vsel %vm622, %v2453, %v2457
      %v2459 = vrot.slane %v2337, 4
      %v2460 = vrot.slane %v2340, 5
      %v2461 = vor.u32 %v2459, %v2460
      %v2462 = vrot.slane %v2461, 4
      %v2463 = vrot.slane %v2349, 5
      %v2464 = vsel %vm622, %v2462, %v2463
      %v2465 = vrot.slane %v2346, 4
      %v2466 = vor.u32 %v2465, %v2463
      %v2467 = vrot.slane %v2466, 4
      %v2469 = vshll.u32 %v2360, 16
      %v2471 = vrot.slane %v2469, 5
      %v2472 = vsel %vm622, %v2467, %v2471
      %s2473 = sadd.s32 8, 1
      %s2474 = smul.u32 %s2473, 4
      %s2475 = smul.addr %s2474, 4
      %s2476 = scalar_lea.vmem [#allocation2], %s2475
      %v2477 = vld [vmem:[%s2476] sm:$0x8]
      %v2478 = vld [vmem:[%s2476 + $0x4] sm:$0xf]
      %v2479 = vld [vmem:[%s2476 + $0x8] sm:$0xf]
      %v2480 = vld [vmem:[%s2476 + $0x10] sm:$0x8]
      %v2481 = vld [vmem:[%s2476 + $0x14] sm:$0xf]
      %v2482 = vld [vmem:[%s2476 + $0x18] sm:$0xf]
      %v2483 = vld [vmem:[%s2476 + $0x20] sm:$0x8]
      %v2484 = vld [vmem:[%s2476 + $0x24] sm:$0xf]
      %v2485 = vld [vmem:[%s2476 + $0x28] sm:$0xf]
      %v2486 = vld [vmem:[%s2476 + $0x30] sm:$0x8]
      %v2487 = vld [vmem:[%s2476 + $0x34] sm:$0xf]
      %v2488 = vld [vmem:[%s2476 + $0x38] sm:$0xf]
      %v2489 = vld [vmem:[%s2476 + $0x40] sm:$0x8]
      %v2490 = vld [vmem:[%s2476 + $0x44] sm:$0xf]
      %v2491 = vld [vmem:[%s2476 + $0x48] sm:$0xf]
      %v2492 = vld [vmem:[%s2476 + $0x50] sm:$0x8]
      %v2493 = vld [vmem:[%s2476 + $0x54] sm:$0xf]
      %v2494 = vld [vmem:[%s2476 + $0x58] sm:$0xf]
      %v2495 = vld [vmem:[%s2476 + $0x60] sm:$0x8]
      %v2496 = vld [vmem:[%s2476 + $0x64] sm:$0xf]
      %v2497 = vld [vmem:[%s2476 + $0x68] sm:$0xf]
      %v2498 = vld [vmem:[%s2476 + $0x70] sm:$0x8]
      %v2499 = vld [vmem:[%s2476 + $0x74] sm:$0xf]
      %v2500 = vld [vmem:[%s2476 + $0x78] sm:$0xf]
      %v2502 = vshrl.u32 %v2477, 16
      %v2504 = vrot.slane %v2502, 7
      %v2505 = vrot.slane %v2504, 4
      %v2507 = vshrl.u32 %v2478, 16
      %v2509 = vrot.slane %v2507, 7
      %v2510 = vshll.u32 %v2478, 16
      %v2512 = vor.u32 %v2509, %v2510
      %v2513 = vsel %vm435, %v2505, %v2512
      %v2514 = vrot.slane %v2509, 4
      %v2516 = vshrl.u32 %v2479, 16
      %v2518 = vrot.slane %v2516, 7
      %v2519 = vshll.u32 %v2479, 16
      %v2521 = vor.u32 %v2518, %v2519
      %v2522 = vsel %vm435, %v2514, %v2521
      %v2524 = vshrl.u32 %v2480, 16
      %v2526 = vrot.slane %v2524, 7
      %v2527 = vrot.slane %v2526, 4
      %v2529 = vshrl.u32 %v2481, 16
      %v2531 = vrot.slane %v2529, 7
      %v2532 = vshll.u32 %v2481, 16
      %v2534 = vor.u32 %v2531, %v2532
      %v2535 = vsel %vm435, %v2527, %v2534
      %v2536 = vrot.slane %v2531, 4
      %v2538 = vshrl.u32 %v2482, 16
      %v2540 = vrot.slane %v2538, 7
      %v2541 = vshll.u32 %v2482, 16
      %v2543 = vor.u32 %v2540, %v2541
      %v2544 = vsel %vm435, %v2536, %v2543
      %v2546 = vshrl.u32 %v2483, 16
      %v2548 = vrot.slane %v2546, 7
      %v2549 = vrot.slane %v2548, 4
      %v2551 = vshrl.u32 %v2484, 16
      %v2553 = vrot.slane %v2551, 7
      %v2554 = vshll.u32 %v2484, 16
      %v2556 = vor.u32 %v2553, %v2554
      %v2557 = vsel %vm435, %v2549, %v2556
      %v2558 = vrot.slane %v2553, 4
      %v2560 = vshrl.u32 %v2485, 16
      %v2562 = vrot.slane %v2560, 7
      %v2563 = vshll.u32 %v2485, 16
      %v2565 = vor.u32 %v2562, %v2563
      %v2566 = vsel %vm435, %v2558, %v2565
      %v2568 = vshrl.u32 %v2486, 16
      %v2570 = vrot.slane %v2568, 7
      %v2571 = vrot.slane %v2570, 4
      %v2573 = vshrl.u32 %v2487, 16
      %v2575 = vrot.slane %v2573, 7
      %v2576 = vshll.u32 %v2487, 16
      %v2578 = vor.u32 %v2575, %v2576
      %v2579 = vsel %vm435, %v2571, %v2578
      %v2580 = vrot.slane %v2575, 4
      %v2582 = vshrl.u32 %v2488, 16
      %v2584 = vrot.slane %v2582, 7
      %v2585 = vshll.u32 %v2488, 16
      %v2587 = vor.u32 %v2584, %v2585
      %v2588 = vsel %vm435, %v2580, %v2587
      %v2590 = vshrl.u32 %v2489, 16
      %v2592 = vrot.slane %v2590, 7
      %v2593 = vrot.slane %v2592, 4
      %v2595 = vshrl.u32 %v2490, 16
      %v2597 = vrot.slane %v2595, 7
      %v2598 = vshll.u32 %v2490, 16
      %v2600 = vor.u32 %v2597, %v2598
      %v2601 = vsel %vm435, %v2593, %v2600
      %v2602 = vrot.slane %v2597, 4
      %v2604 = vshrl.u32 %v2491, 16
      %v2606 = vrot.slane %v2604, 7
      %v2607 = vshll.u32 %v2491, 16
      %v2609 = vor.u32 %v2606, %v2607
      %v2610 = vsel %vm435, %v2602, %v2609
      %v2612 = vshrl.u32 %v2492, 16
      %v2614 = vrot.slane %v2612, 7
      %v2615 = vrot.slane %v2614, 4
      %v2617 = vshrl.u32 %v2493, 16
      %v2619 = vrot.slane %v2617, 7
      %v2620 = vshll.u32 %v2493, 16
      %v2622 = vor.u32 %v2619, %v2620
      %v2623 = vsel %vm435, %v2615, %v2622
      %v2624 = vrot.slane %v2619, 4
      %v2626 = vshrl.u32 %v2494, 16
      %v2628 = vrot.slane %v2626, 7
      %v2629 = vshll.u32 %v2494, 16
      %v2631 = vor.u32 %v2628, %v2629
      %v2632 = vsel %vm435, %v2624, %v2631
      %v2634 = vshrl.u32 %v2495, 16
      %v2636 = vrot.slane %v2634, 7
      %v2637 = vrot.slane %v2636, 4
      %v2639 = vshrl.u32 %v2496, 16
      %v2641 = vrot.slane %v2639, 7
      %v2642 = vshll.u32 %v2496, 16
      %v2644 = vor.u32 %v2641, %v2642
      %v2645 = vsel %vm435, %v2637, %v2644
      %v2646 = vrot.slane %v2641, 4
      %v2648 = vshrl.u32 %v2497, 16
      %v2650 = vrot.slane %v2648, 7
      %v2651 = vshll.u32 %v2497, 16
      %v2653 = vor.u32 %v2650, %v2651
      %v2654 = vsel %vm435, %v2646, %v2653
      %v2656 = vshrl.u32 %v2498, 16
      %v2658 = vrot.slane %v2656, 7
      %v2659 = vrot.slane %v2658, 4
      %v2661 = vshrl.u32 %v2499, 16
      %v2663 = vrot.slane %v2661, 7
      %v2664 = vshll.u32 %v2499, 16
      %v2666 = vor.u32 %v2663, %v2664
      %v2667 = vsel %vm435, %v2659, %v2666
      %v2668 = vrot.slane %v2663, 4
      %v2670 = vshrl.u32 %v2500, 16
      %v2672 = vrot.slane %v2670, 7
      %v2673 = vshll.u32 %v2500, 16
      %v2675 = vor.u32 %v2672, %v2673
      %v2676 = vsel %vm435, %v2668, %v2675
      %v2677 = vld [vmem:[%s2476 + $0xc] sm:$0x1]
      %v2678 = vld [vmem:[%s2476 + $0x1c] sm:$0x1]
      %v2679 = vld [vmem:[%s2476 + $0x2c] sm:$0x1]
      %v2680 = vld [vmem:[%s2476 + $0x3c] sm:$0x1]
      %v2681 = vld [vmem:[%s2476 + $0x4c] sm:$0x1]
      %v2682 = vld [vmem:[%s2476 + $0x5c] sm:$0x1]
      %v2683 = vld [vmem:[%s2476 + $0x6c] sm:$0x1]
      %v2684 = vld [vmem:[%s2476 + $0x7c] sm:$0x1]
      %v2685 = vrot.slane %v2507, 4
      %v2686 = vrot.slane %v2510, 5
      %v2687 = vor.u32 %v2685, %v2686
      %v2688 = vrot.slane %v2687, 4
      %v2689 = vrot.slane %v2519, 5
      %v2690 = vsel %vm622, %v2688, %v2689
      %v2691 = vrot.slane %v2516, 4
      %v2692 = vor.u32 %v2691, %v2689
      %v2693 = vrot.slane %v2692, 4
      %v2695 = vshll.u32 %v2677, 16
      %v2697 = vrot.slane %v2695, 5
      %v2698 = vsel %vm622, %v2693, %v2697
      %v2699 = vrot.slane %v2529, 4
      %v2700 = vrot.slane %v2532, 5
      %v2701 = vor.u32 %v2699, %v2700
      %v2702 = vrot.slane %v2701, 4
      %v2703 = vrot.slane %v2541, 5
      %v2704 = vsel %vm622, %v2702, %v2703
      %v2705 = vrot.slane %v2538, 4
      %v2706 = vor.u32 %v2705, %v2703
      %v2707 = vrot.slane %v2706, 4
      %v2709 = vshll.u32 %v2678, 16
      %v2711 = vrot.slane %v2709, 5
      %v2712 = vsel %vm622, %v2707, %v2711
      %v2713 = vrot.slane %v2551, 4
      %v2714 = vrot.slane %v2554, 5
      %v2715 = vor.u32 %v2713, %v2714
      %v2716 = vrot.slane %v2715, 4
      %v2717 = vrot.slane %v2563, 5
      %v2718 = vsel %vm622, %v2716, %v2717
      %v2719 = vrot.slane %v2560, 4
      %v2720 = vor.u32 %v2719, %v2717
      %v2721 = vrot.slane %v2720, 4
      %v2723 = vshll.u32 %v2679, 16
      %v2725 = vrot.slane %v2723, 5
      %v2726 = vsel %vm622, %v2721, %v2725
      %v2727 = vrot.slane %v2573, 4
      %v2728 = vrot.slane %v2576, 5
      %v2729 = vor.u32 %v2727, %v2728
      %v2730 = vrot.slane %v2729, 4
      %v2731 = vrot.slane %v2585, 5
      %v2732 = vsel %vm622, %v2730, %v2731
      %v2733 = vrot.slane %v2582, 4
      %v2734 = vor.u32 %v2733, %v2731
      %v2735 = vrot.slane %v2734, 4
      %v2737 = vshll.u32 %v2680, 16
      %v2739 = vrot.slane %v2737, 5
      %v2740 = vsel %vm622, %v2735, %v2739
      %v2741 = vrot.slane %v2595, 4
      %v2742 = vrot.slane %v2598, 5
      %v2743 = vor.u32 %v2741, %v2742
      %v2744 = vrot.slane %v2743, 4
      %v2745 = vrot.slane %v2607, 5
      %v2746 = vsel %vm622, %v2744, %v2745
      %v2747 = vrot.slane %v2604, 4
      %v2748 = vor.u32 %v2747, %v2745
      %v2749 = vrot.slane %v2748, 4
      %v2751 = vshll.u32 %v2681, 16
      %v2753 = vrot.slane %v2751, 5
      %v2754 = vsel %vm622, %v2749, %v2753
      %v2755 = vrot.slane %v2617, 4
      %v2756 = vrot.slane %v2620, 5
      %v2757 = vor.u32 %v2755, %v2756
      %v2758 = vrot.slane %v2757, 4
      %v2759 = vrot.slane %v2629, 5
      %v2760 = vsel %vm622, %v2758, %v2759
      %v2761 = vrot.slane %v2626, 4
      %v2762 = vor.u32 %v2761, %v2759
      %v2763 = vrot.slane %v2762, 4
      %v2765 = vshll.u32 %v2682, 16
      %v2767 = vrot.slane %v2765, 5
      %v2768 = vsel %vm622, %v2763, %v2767
      %v2769 = vrot.slane %v2639, 4
      %v2770 = vrot.slane %v2642, 5
      %v2771 = vor.u32 %v2769, %v2770
      %v2772 = vrot.slane %v2771, 4
      %v2773 = vrot.slane %v2651, 5
      %v2774 = vsel %vm622, %v2772, %v2773
      %v2775 = vrot.slane %v2648, 4
      %v2776 = vor.u32 %v2775, %v2773
      %v2777 = vrot.slane %v2776, 4
      %v2779 = vshll.u32 %v2683, 16
      %v2781 = vrot.slane %v2779, 5
      %v2782 = vsel %vm622, %v2777, %v2781
      %v2783 = vrot.slane %v2661, 4
      %v2784 = vrot.slane %v2664, 5
      %v2785 = vor.u32 %v2783, %v2784
      %v2786 = vrot.slane %v2785, 4
      %v2787 = vrot.slane %v2673, 5
      %v2788 = vsel %vm622, %v2786, %v2787
      %v2789 = vrot.slane %v2670, 4
      %v2790 = vor.u32 %v2789, %v2787
      %v2791 = vrot.slane %v2790, 4
      %v2793 = vshll.u32 %v2684, 16
      %v2795 = vrot.slane %v2793, 5
      %v2796 = vsel %vm622, %v2791, %v2795
      %s2797 = sadd.s32 8, 2
      %s2798 = smul.u32 %s2797, 4
      %s2799 = smul.addr %s2798, 4
      %s2800 = scalar_lea.vmem [#allocation2], %s2799
      %v2801 = vld [vmem:[%s2800] sm:$0x8]
      %v2802 = vld [vmem:[%s2800 + $0x4] sm:$0xf]
      %v2803 = vld [vmem:[%s2800 + $0x8] sm:$0xf]
      %v2804 = vld [vmem:[%s2800 + $0x10] sm:$0x8]
      %v2805 = vld [vmem:[%s2800 + $0x14] sm:$0xf]
      %v2806 = vld [vmem:[%s2800 + $0x18] sm:$0xf]
      %v2807 = vld [vmem:[%s2800 + $0x20] sm:$0x8]
      %v2808 = vld [vmem:[%s2800 + $0x24] sm:$0xf]
      %v2809 = vld [vmem:[%s2800 + $0x28] sm:$0xf]
      %v2810 = vld [vmem:[%s2800 + $0x30] sm:$0x8]
      %v2811 = vld [vmem:[%s2800 + $0x34] sm:$0xf]
      %v2812 = vld [vmem:[%s2800 + $0x38] sm:$0xf]
      %v2813 = vld [vmem:[%s2800 + $0x40] sm:$0x8]
      %v2814 = vld [vmem:[%s2800 + $0x44] sm:$0xf]
      %v2815 = vld [vmem:[%s2800 + $0x48] sm:$0xf]
      %v2816 = vld [vmem:[%s2800 + $0x50] sm:$0x8]
      %v2817 = vld [vmem:[%s2800 + $0x54] sm:$0xf]
      %v2818 = vld [vmem:[%s2800 + $0x58] sm:$0xf]
      %v2819 = vld [vmem:[%s2800 + $0x60] sm:$0x8]
      %v2820 = vld [vmem:[%s2800 + $0x64] sm:$0xf]
      %v2821 = vld [vmem:[%s2800 + $0x68] sm:$0xf]
      %v2822 = vld [vmem:[%s2800 + $0x70] sm:$0x8]
      %v2823 = vld [vmem:[%s2800 + $0x74] sm:$0xf]
      %v2824 = vld [vmem:[%s2800 + $0x78] sm:$0xf]
      %v2826 = vshrl.u32 %v2801, 16
      %v2828 = vrot.slane %v2826, 7
      %v2829 = vrot.slane %v2828, 4
      %v2831 = vshrl.u32 %v2802, 16
      %v2833 = vrot.slane %v2831, 7
      %v2834 = vshll.u32 %v2802, 16
      %v2836 = vor.u32 %v2833, %v2834
      %v2837 = vsel %vm435, %v2829, %v2836
      %v2838 = vrot.slane %v2833, 4
      %v2840 = vshrl.u32 %v2803, 16
      %v2842 = vrot.slane %v2840, 7
      %v2843 = vshll.u32 %v2803, 16
      %v2845 = vor.u32 %v2842, %v2843
      %v2846 = vsel %vm435, %v2838, %v2845
      %v2848 = vshrl.u32 %v2804, 16
      %v2850 = vrot.slane %v2848, 7
      %v2851 = vrot.slane %v2850, 4
      %v2853 = vshrl.u32 %v2805, 16
      %v2855 = vrot.slane %v2853, 7
      %v2856 = vshll.u32 %v2805, 16
      %v2858 = vor.u32 %v2855, %v2856
      %v2859 = vsel %vm435, %v2851, %v2858
      %v2860 = vrot.slane %v2855, 4
      %v2862 = vshrl.u32 %v2806, 16
      %v2864 = vrot.slane %v2862, 7
      %v2865 = vshll.u32 %v2806, 16
      %v2867 = vor.u32 %v2864, %v2865
      %v2868 = vsel %vm435, %v2860, %v2867
      %v2870 = vshrl.u32 %v2807, 16
      %v2872 = vrot.slane %v2870, 7
      %v2873 = vrot.slane %v2872, 4
      %v2875 = vshrl.u32 %v2808, 16
      %v2877 = vrot.slane %v2875, 7
      %v2878 = vshll.u32 %v2808, 16
      %v2880 = vor.u32 %v2877, %v2878
      %v2881 = vsel %vm435, %v2873, %v2880
      %v2882 = vrot.slane %v2877, 4
      %v2884 = vshrl.u32 %v2809, 16
      %v2886 = vrot.slane %v2884, 7
      %v2887 = vshll.u32 %v2809, 16
      %v2889 = vor.u32 %v2886, %v2887
      %v2890 = vsel %vm435, %v2882, %v2889
      %v2892 = vshrl.u32 %v2810, 16
      %v2894 = vrot.slane %v2892, 7
      %v2895 = vrot.slane %v2894, 4
      %v2897 = vshrl.u32 %v2811, 16
      %v2899 = vrot.slane %v2897, 7
      %v2900 = vshll.u32 %v2811, 16
      %v2902 = vor.u32 %v2899, %v2900
      %v2903 = vsel %vm435, %v2895, %v2902
      %v2904 = vrot.slane %v2899, 4
      %v2906 = vshrl.u32 %v2812, 16
      %v2908 = vrot.slane %v2906, 7
      %v2909 = vshll.u32 %v2812, 16
      %v2911 = vor.u32 %v2908, %v2909
      %v2912 = vsel %vm435, %v2904, %v2911
      %v2914 = vshrl.u32 %v2813, 16
      %v2916 = vrot.slane %v2914, 7
      %v2917 = vrot.slane %v2916, 4
      %v2919 = vshrl.u32 %v2814, 16
      %v2921 = vrot.slane %v2919, 7
      %v2922 = vshll.u32 %v2814, 16
      %v2924 = vor.u32 %v2921, %v2922
      %v2925 = vsel %vm435, %v2917, %v2924
      %v2926 = vrot.slane %v2921, 4
      %v2928 = vshrl.u32 %v2815, 16
      %v2930 = vrot.slane %v2928, 7
      %v2931 = vshll.u32 %v2815, 16
      %v2933 = vor.u32 %v2930, %v2931
      %v2934 = vsel %vm435, %v2926, %v2933
      %v2936 = vshrl.u32 %v2816, 16
      %v2938 = vrot.slane %v2936, 7
      %v2939 = vrot.slane %v2938, 4
      %v2941 = vshrl.u32 %v2817, 16
      %v2943 = vrot.slane %v2941, 7
      %v2944 = vshll.u32 %v2817, 16
      %v2946 = vor.u32 %v2943, %v2944
      %v2947 = vsel %vm435, %v2939, %v2946
      %v2948 = vrot.slane %v2943, 4
      %v2950 = vshrl.u32 %v2818, 16
      %v2952 = vrot.slane %v2950, 7
      %v2953 = vshll.u32 %v2818, 16
      %v2955 = vor.u32 %v2952, %v2953
      %v2956 = vsel %vm435, %v2948, %v2955
      %v2958 = vshrl.u32 %v2819, 16
      %v2960 = vrot.slane %v2958, 7
      %v2961 = vrot.slane %v2960, 4
      %v2963 = vshrl.u32 %v2820, 16
      %v2965 = vrot.slane %v2963, 7
      %v2966 = vshll.u32 %v2820, 16
      %v2968 = vor.u32 %v2965, %v2966
      %v2969 = vsel %vm435, %v2961, %v2968
      %v2970 = vrot.slane %v2965, 4
      %v2972 = vshrl.u32 %v2821, 16
      %v2974 = vrot.slane %v2972, 7
      %v2975 = vshll.u32 %v2821, 16
      %v2977 = vor.u32 %v2974, %v2975
      %v2978 = vsel %vm435, %v2970, %v2977
      %v2980 = vshrl.u32 %v2822, 16
      %v2982 = vrot.slane %v2980, 7
      %v2983 = vrot.slane %v2982, 4
      %v2985 = vshrl.u32 %v2823, 16
      %v2987 = vrot.slane %v2985, 7
      %v2988 = vshll.u32 %v2823, 16
      %v2990 = vor.u32 %v2987, %v2988
      %v2991 = vsel %vm435, %v2983, %v2990
      %v2992 = vrot.slane %v2987, 4
      %v2994 = vshrl.u32 %v2824, 16
      %v2996 = vrot.slane %v2994, 7
      %v2997 = vshll.u32 %v2824, 16
      %v2999 = vor.u32 %v2996, %v2997
      %v3000 = vsel %vm435, %v2992, %v2999
      %v3001 = vld [vmem:[%s2800 + $0xc] sm:$0x1]
      %v3002 = vld [vmem:[%s2800 + $0x1c] sm:$0x1]
      %v3003 = vld [vmem:[%s2800 + $0x2c] sm:$0x1]
      %v3004 = vld [vmem:[%s2800 + $0x3c] sm:$0x1]
      %v3005 = vld [vmem:[%s2800 + $0x4c] sm:$0x1]
      %v3006 = vld [vmem:[%s2800 + $0x5c] sm:$0x1]
      %v3007 = vld [vmem:[%s2800 + $0x6c] sm:$0x1]
      %v3008 = vld [vmem:[%s2800 + $0x7c] sm:$0x1]
      %v3009 = vrot.slane %v2831, 4
      %v3010 = vrot.slane %v2834, 5
      %v3011 = vor.u32 %v3009, %v3010
      %v3012 = vrot.slane %v3011, 4
      %v3013 = vrot.slane %v2843, 5
      %v3014 = vsel %vm622, %v3012, %v3013
      %v3015 = vrot.slane %v2840, 4
      %v3016 = vor.u32 %v3015, %v3013
      %v3017 = vrot.slane %v3016, 4
      %v3019 = vshll.u32 %v3001, 16
      %v3021 = vrot.slane %v3019, 5
      %v3022 = vsel %vm622, %v3017, %v3021
      %v3023 = vrot.slane %v2853, 4
      %v3024 = vrot.slane %v2856, 5
      %v3025 = vor.u32 %v3023, %v3024
      %v3026 = vrot.slane %v3025, 4
      %v3027 = vrot.slane %v2865, 5
      %v3028 = vsel %vm622, %v3026, %v3027
      %v3029 = vrot.slane %v2862, 4
      %v3030 = vor.u32 %v3029, %v3027
      %v3031 = vrot.slane %v3030, 4
      %v3033 = vshll.u32 %v3002, 16
      %v3035 = vrot.slane %v3033, 5
      %v3036 = vsel %vm622, %v3031, %v3035
      %v3037 = vrot.slane %v2875, 4
      %v3038 = vrot.slane %v2878, 5
      %v3039 = vor.u32 %v3037, %v3038
      %v3040 = vrot.slane %v3039, 4
      %v3041 = vrot.slane %v2887, 5
      %v3042 = vsel %vm622, %v3040, %v3041
      %v3043 = vrot.slane %v2884, 4
      %v3044 = vor.u32 %v3043, %v3041
      %v3045 = vrot.slane %v3044, 4
      %v3047 = vshll.u32 %v3003, 16
      %v3049 = vrot.slane %v3047, 5
      %v3050 = vsel %vm622, %v3045, %v3049
      %v3051 = vrot.slane %v2897, 4
      %v3052 = vrot.slane %v2900, 5
      %v3053 = vor.u32 %v3051, %v3052
      %v3054 = vrot.slane %v3053, 4
      %v3055 = vrot.slane %v2909, 5
      %v3056 = vsel %vm622, %v3054, %v3055
      %v3057 = vrot.slane %v2906, 4
      %v3058 = vor.u32 %v3057, %v3055
      %v3059 = vrot.slane %v3058, 4
      %v3061 = vshll.u32 %v3004, 16
      %v3063 = vrot.slane %v3061, 5
      %v3064 = vsel %vm622, %v3059, %v3063
      %v3065 = vrot.slane %v2919, 4
      %v3066 = vrot.slane %v2922, 5
      %v3067 = vor.u32 %v3065, %v3066
      %v3068 = vrot.slane %v3067, 4
      %v3069 = vrot.slane %v2931, 5
      %v3070 = vsel %vm622, %v3068, %v3069
      %v3071 = vrot.slane %v2928, 4
      %v3072 = vor.u32 %v3071, %v3069
      %v3073 = vrot.slane %v3072, 4
      %v3075 = vshll.u32 %v3005, 16
      %v3077 = vrot.slane %v3075, 5
      %v3078 = vsel %vm622, %v3073, %v3077
      %v3079 = vrot.slane %v2941, 4
      %v3080 = vrot.slane %v2944, 5
      %v3081 = vor.u32 %v3079, %v3080
      %v3082 = vrot.slane %v3081, 4
      %v3083 = vrot.slane %v2953, 5
      %v3084 = vsel %vm622, %v3082, %v3083
      %v3085 = vrot.slane %v2950, 4
      %v3086 = vor.u32 %v3085, %v3083
      %v3087 = vrot.slane %v3086, 4
      %v3089 = vshll.u32 %v3006, 16
      %v3091 = vrot.slane %v3089, 5
      %v3092 = vsel %vm622, %v3087, %v3091
      %v3093 = vrot.slane %v2963, 4
      %v3094 = vrot.slane %v2966, 5
      %v3095 = vor.u32 %v3093, %v3094
      %v3096 = vrot.slane %v3095, 4
      %v3097 = vrot.slane %v2975, 5
      %v3098 = vsel %vm622, %v3096, %v3097
      %v3099 = vrot.slane %v2972, 4
      %v3100 = vor.u32 %v3099, %v3097
      %v3101 = vrot.slane %v3100, 4
      %v3103 = vshll.u32 %v3007, 16
      %v3105 = vrot.slane %v3103, 5
      %v3106 = vsel %vm622, %v3101, %v3105
      %v3107 = vrot.slane %v2985, 4
      %v3108 = vrot.slane %v2988, 5
      %v3109 = vor.u32 %v3107, %v3108
      %v3110 = vrot.slane %v3109, 4
      %v3111 = vrot.slane %v2997, 5
      %v3112 = vsel %vm622, %v3110, %v3111
      %v3113 = vrot.slane %v2994, 4
      %v3114 = vor.u32 %v3113, %v3111
      %v3115 = vrot.slane %v3114, 4
      %v3117 = vshll.u32 %v3008, 16
      %v3119 = vrot.slane %v3117, 5
      %v3120 = vsel %vm622, %v3115, %v3119
      %v3121 = vunpack.c.l.b16 %v2189
      %v3122 = vunpack.c.l.b16 %v2198
      %v3123 = vunpack.c.l.b16 %v2211
      %v3124 = vunpack.c.l.b16 %v2220
      %v3125 = vunpack.c.l.b16 %v2233
      %v3126 = vunpack.c.l.b16 %v2242
      %v3127 = vunpack.c.l.b16 %v2255
      %v3128 = vunpack.c.l.b16 %v2264
      %v3129 = vunpack.c.l.b16 %v2277
      %v3130 = vunpack.c.l.b16 %v2286
      %v3131 = vunpack.c.l.b16 %v2299
      %v3132 = vunpack.c.l.b16 %v2308
      %v3133 = vunpack.c.l.b16 %v2321
      %v3134 = vunpack.c.l.b16 %v2330
      %v3135 = vunpack.c.l.b16 %v2343
      %v3136 = vunpack.c.l.b16 %v2352
      %v3137 = vpack.c.b16 %v3122, %v3121
      %v3138 = vpack.c.b16 %v3124, %v3123
      %v3139 = vpack.c.b16 %v3126, %v3125
      %v3140 = vpack.c.b16 %v3128, %v3127
      %v3141 = vpack.c.b16 %v3130, %v3129
      %v3142 = vpack.c.b16 %v3132, %v3131
      %v3143 = vpack.c.b16 %v3134, %v3133
      %v3144 = vpack.c.b16 %v3136, %v3135
      %v3161 = vunpack.c.l.b16 %v2154
      %v3162 = vunpack.c.l.b16 %v2155
      %v3163 = vunpack.c.l.b16 %v2157
      %v3164 = vunpack.c.l.b16 %v2158
      %v3165 = vunpack.c.l.b16 %v2160
      %v3166 = vunpack.c.l.b16 %v2161
      %v3167 = vunpack.c.l.b16 %v2163
      %v3168 = vunpack.c.l.b16 %v2164
      %v3169 = vunpack.c.l.b16 %v2166
      %v3170 = vunpack.c.l.b16 %v2167
      %v3171 = vunpack.c.l.b16 %v2169
      %v3172 = vunpack.c.l.b16 %v2170
      %v3173 = vunpack.c.l.b16 %v2172
      %v3174 = vunpack.c.l.b16 %v2173
      %v3175 = vunpack.c.l.b16 %v2175
      %v3176 = vunpack.c.l.b16 %v2176
      %v3177 = vpack.c.b16 %v3162, %v3161
      %v3178 = vpack.c.b16 %v3164, %v3163
      %v3179 = vpack.c.b16 %v3166, %v3165
      %v3180 = vpack.c.b16 %v3168, %v3167
      %v3181 = vpack.c.b16 %v3170, %v3169
      %v3182 = vpack.c.b16 %v3172, %v3171
      %v3183 = vpack.c.b16 %v3174, %v3173
      %v3184 = vpack.c.b16 %v3176, %v3175
      %3185 = vrot.lane.b32.xlu0 %v3177, 4
      %v3186 = vpop.permute.xlu0 %3185
      %3187 = vrot.lane.b32.xlu0 %v3178, 4
      %v3188 = vpop.permute.xlu0 %3187
      %3189 = vrot.lane.b32.xlu0 %v3179, 4
      %v3190 = vpop.permute.xlu0 %3189
      %3191 = vrot.lane.b32.xlu0 %v3180, 4
      %v3192 = vpop.permute.xlu0 %3191
      %3193 = vrot.lane.b32.xlu0 %v3181, 4
      %v3194 = vpop.permute.xlu0 %3193
      %3195 = vrot.lane.b32.xlu0 %v3182, 4
      %v3196 = vpop.permute.xlu0 %3195
      %3197 = vrot.lane.b32.xlu0 %v3183, 4
      %v3198 = vpop.permute.xlu0 %3197
      %3199 = vrot.lane.b32.xlu0 %v3184, 4
      %v3200 = vpop.permute.xlu0 %3199
      %v3201 = vunpack.c.l.b16 %v2366
      %v3202 = vunpack.c.l.b16 %v2374
      %v3203 = vunpack.c.l.b16 %v2380
      %v3204 = vunpack.c.l.b16 %v2388
      %v3205 = vunpack.c.l.b16 %v2394
      %v3206 = vunpack.c.l.b16 %v2402
      %v3207 = vunpack.c.l.b16 %v2408
      %v3208 = vunpack.c.l.b16 %v2416
      %v3209 = vunpack.c.l.b16 %v2422
      %v3210 = vunpack.c.l.b16 %v2430
      %v3211 = vunpack.c.l.b16 %v2436
      %v3212 = vunpack.c.l.b16 %v2444
      %v3213 = vunpack.c.l.b16 %v2450
      %v3214 = vunpack.c.l.b16 %v2458
      %v3215 = vunpack.c.l.b16 %v2464
      %v3216 = vunpack.c.l.b16 %v2472
      %v3217 = vpack.c.b16 %v3202, %v3201
      %v3218 = vpack.c.b16 %v3204, %v3203
      %v3219 = vpack.c.b16 %v3206, %v3205
      %v3220 = vpack.c.b16 %v3208, %v3207
      %v3221 = vpack.c.b16 %v3210, %v3209
      %v3222 = vpack.c.b16 %v3212, %v3211
      %v3223 = vpack.c.b16 %v3214, %v3213
      %v3224 = vpack.c.b16 %v3216, %v3215
      %3225 = vrot.lane.b32.xlu0 %v3217, 8
      %v3226 = vpop.permute.xlu0 %3225
      %3227 = vrot.lane.b32.xlu0 %v3218, 8
      %v3228 = vpop.permute.xlu0 %3227
      %3229 = vrot.lane.b32.xlu0 %v3219, 8
      %v3230 = vpop.permute.xlu0 %3229
      %3231 = vrot.lane.b32.xlu0 %v3220, 8
      %v3232 = vpop.permute.xlu0 %3231
      %3233 = vrot.lane.b32.xlu0 %v3221, 8
      %v3234 = vpop.permute.xlu0 %3233
      %3235 = vrot.lane.b32.xlu0 %v3222, 8
      %v3236 = vpop.permute.xlu0 %3235
      %3237 = vrot.lane.b32.xlu0 %v3223, 8
      %v3238 = vpop.permute.xlu0 %3237
      %3239 = vrot.lane.b32.xlu0 %v3224, 8
      %v3240 = vpop.permute.xlu0 %3239
      %v3241 = vunpack.c.l.b16 %v2513
      %v3242 = vunpack.c.l.b16 %v2522
      %v3243 = vunpack.c.l.b16 %v2535
      %v3244 = vunpack.c.l.b16 %v2544
      %v3245 = vunpack.c.l.b16 %v2557
      %v3246 = vunpack.c.l.b16 %v2566
      %v3247 = vunpack.c.l.b16 %v2579
      %v3248 = vunpack.c.l.b16 %v2588
      %v3249 = vunpack.c.l.b16 %v2601
      %v3250 = vunpack.c.l.b16 %v2610
      %v3251 = vunpack.c.l.b16 %v2623
      %v3252 = vunpack.c.l.b16 %v2632
      %v3253 = vunpack.c.l.b16 %v2645
      %v3254 = vunpack.c.l.b16 %v2654
      %v3255 = vunpack.c.l.b16 %v2667
      %v3256 = vunpack.c.l.b16 %v2676
      %v3257 = vpack.c.b16 %v3242, %v3241
      %v3258 = vpack.c.b16 %v3244, %v3243
      %v3259 = vpack.c.b16 %v3246, %v3245
      %v3260 = vpack.c.b16 %v3248, %v3247
      %v3261 = vpack.c.b16 %v3250, %v3249
      %v3262 = vpack.c.b16 %v3252, %v3251
      %v3263 = vpack.c.b16 %v3254, %v3253
      %v3264 = vpack.c.b16 %v3256, %v3255
      %3265 = vrot.lane.b32.xlu0 %v3257, 12
      %v3266 = vpop.permute.xlu0 %3265
      %3267 = vrot.lane.b32.xlu0 %v3258, 12
      %v3268 = vpop.permute.xlu0 %3267
      %3269 = vrot.lane.b32.xlu0 %v3259, 12
      %v3270 = vpop.permute.xlu0 %3269
      %3271 = vrot.lane.b32.xlu0 %v3260, 12
      %v3272 = vpop.permute.xlu0 %3271
      %3273 = vrot.lane.b32.xlu0 %v3261, 12
      %v3274 = vpop.permute.xlu0 %3273
      %3275 = vrot.lane.b32.xlu0 %v3262, 12
      %v3276 = vpop.permute.xlu0 %3275
      %3277 = vrot.lane.b32.xlu0 %v3263, 12
      %v3278 = vpop.permute.xlu0 %3277
      %3279 = vrot.lane.b32.xlu0 %v3264, 12
      %v3280 = vpop.permute.xlu0 %3279
      %v3297 = vunpack.c.l.b16 %v2478
      %v3298 = vunpack.c.l.b16 %v2479
      %v3299 = vunpack.c.l.b16 %v2481
      %v3300 = vunpack.c.l.b16 %v2482
      %v3301 = vunpack.c.l.b16 %v2484
      %v3302 = vunpack.c.l.b16 %v2485
      %v3303 = vunpack.c.l.b16 %v2487
      %v3304 = vunpack.c.l.b16 %v2488
      %v3305 = vunpack.c.l.b16 %v2490
      %v3306 = vunpack.c.l.b16 %v2491
      %v3307 = vunpack.c.l.b16 %v2493
      %v3308 = vunpack.c.l.b16 %v2494
      %v3309 = vunpack.c.l.b16 %v2496
      %v3310 = vunpack.c.l.b16 %v2497
      %v3311 = vunpack.c.l.b16 %v2499
      %v3312 = vunpack.c.l.b16 %v2500
      %v3313 = vpack.c.b16 %v3298, %v3297
      %v3314 = vpack.c.b16 %v3300, %v3299
      %v3315 = vpack.c.b16 %v3302, %v3301
      %v3316 = vpack.c.b16 %v3304, %v3303
      %v3317 = vpack.c.b16 %v3306, %v3305
      %v3318 = vpack.c.b16 %v3308, %v3307
      %v3319 = vpack.c.b16 %v3310, %v3309
      %v3320 = vpack.c.b16 %v3312, %v3311
      %3321 = vrot.lane.b32.xlu0 %v3313, 16
      %v3322 = vpop.permute.xlu0 %3321
      %3323 = vrot.lane.b32.xlu0 %v3314, 16
      %v3324 = vpop.permute.xlu0 %3323
      %3325 = vrot.lane.b32.xlu0 %v3315, 16
      %v3326 = vpop.permute.xlu0 %3325
      %3327 = vrot.lane.b32.xlu0 %v3316, 16
      %v3328 = vpop.permute.xlu0 %3327
      %3329 = vrot.lane.b32.xlu0 %v3317, 16
      %v3330 = vpop.permute.xlu0 %3329
      %3331 = vrot.lane.b32.xlu0 %v3318, 16
      %v3332 = vpop.permute.xlu0 %3331
      %3333 = vrot.lane.b32.xlu0 %v3319, 16
      %v3334 = vpop.permute.xlu0 %3333
      %3335 = vrot.lane.b32.xlu0 %v3320, 16
      %v3336 = vpop.permute.xlu0 %3335
      %v3337 = vunpack.c.l.b16 %v2690
      %v3338 = vunpack.c.l.b16 %v2698
      %v3339 = vunpack.c.l.b16 %v2704
      %v3340 = vunpack.c.l.b16 %v2712
      %v3341 = vunpack.c.l.b16 %v2718
      %v3342 = vunpack.c.l.b16 %v2726
      %v3343 = vunpack.c.l.b16 %v2732
      %v3344 = vunpack.c.l.b16 %v2740
      %v3345 = vunpack.c.l.b16 %v2746
      %v3346 = vunpack.c.l.b16 %v2754
      %v3347 = vunpack.c.l.b16 %v2760
      %v3348 = vunpack.c.l.b16 %v2768
      %v3349 = vunpack.c.l.b16 %v2774
      %v3350 = vunpack.c.l.b16 %v2782
      %v3351 = vunpack.c.l.b16 %v2788
      %v3352 = vunpack.c.l.b16 %v2796
      %v3353 = vpack.c.b16 %v3338, %v3337
      %v3354 = vpack.c.b16 %v3340, %v3339
      %v3355 = vpack.c.b16 %v3342, %v3341
      %v3356 = vpack.c.b16 %v3344, %v3343
      %v3357 = vpack.c.b16 %v3346, %v3345
      %v3358 = vpack.c.b16 %v3348, %v3347
      %v3359 = vpack.c.b16 %v3350, %v3349
      %v3360 = vpack.c.b16 %v3352, %v3351
      %3361 = vrot.lane.b32.xlu0 %v3353, 20
      %v3362 = vpop.permute.xlu0 %3361
      %3363 = vrot.lane.b32.xlu0 %v3354, 20
      %v3364 = vpop.permute.xlu0 %3363
      %3365 = vrot.lane.b32.xlu0 %v3355, 20
      %v3366 = vpop.permute.xlu0 %3365
      %3367 = vrot.lane.b32.xlu0 %v3356, 20
      %v3368 = vpop.permute.xlu0 %3367
      %3369 = vrot.lane.b32.xlu0 %v3357, 20
      %v3370 = vpop.permute.xlu0 %3369
      %3371 = vrot.lane.b32.xlu0 %v3358, 20
      %v3372 = vpop.permute.xlu0 %3371
      %3373 = vrot.lane.b32.xlu0 %v3359, 20
      %v3374 = vpop.permute.xlu0 %3373
      %3375 = vrot.lane.b32.xlu0 %v3360, 20
      %v3376 = vpop.permute.xlu0 %3375
      %v3377 = vunpack.c.l.b16 %v2837
      %v3378 = vunpack.c.l.b16 %v2846
      %v3379 = vunpack.c.l.b16 %v2859
      %v3380 = vunpack.c.l.b16 %v2868
      %v3381 = vunpack.c.l.b16 %v2881
      %v3382 = vunpack.c.l.b16 %v2890
      %v3383 = vunpack.c.l.b16 %v2903
      %v3384 = vunpack.c.l.b16 %v2912
      %v3385 = vunpack.c.l.b16 %v2925
      %v3386 = vunpack.c.l.b16 %v2934
      %v3387 = vunpack.c.l.b16 %v2947
      %v3388 = vunpack.c.l.b16 %v2956
      %v3389 = vunpack.c.l.b16 %v2969
      %v3390 = vunpack.c.l.b16 %v2978
      %v3391 = vunpack.c.l.b16 %v2991
      %v3392 = vunpack.c.l.b16 %v3000
      %v3393 = vpack.c.b16 %v3378, %v3377
      %v3394 = vpack.c.b16 %v3380, %v3379
      %v3395 = vpack.c.b16 %v3382, %v3381
      %v3396 = vpack.c.b16 %v3384, %v3383
      %v3397 = vpack.c.b16 %v3386, %v3385
      %v3398 = vpack.c.b16 %v3388, %v3387
      %v3399 = vpack.c.b16 %v3390, %v3389
      %v3400 = vpack.c.b16 %v3392, %v3391
      %3401 = vrot.lane.b32.xlu0 %v3393, 24
      %v3402 = vpop.permute.xlu0 %3401
      %3403 = vrot.lane.b32.xlu0 %v3394, 24
      %v3404 = vpop.permute.xlu0 %3403
      %3405 = vrot.lane.b32.xlu0 %v3395, 24
      %v3406 = vpop.permute.xlu0 %3405
      %3407 = vrot.lane.b32.xlu0 %v3396, 24
      %v3408 = vpop.permute.xlu0 %3407
      %3409 = vrot.lane.b32.xlu0 %v3397, 24
      %v3410 = vpop.permute.xlu0 %3409
      %3411 = vrot.lane.b32.xlu0 %v3398, 24
      %v3412 = vpop.permute.xlu0 %3411
      %3413 = vrot.lane.b32.xlu0 %v3399, 24
      %v3414 = vpop.permute.xlu0 %3413
      %3415 = vrot.lane.b32.xlu0 %v3400, 24
      %v3416 = vpop.permute.xlu0 %3415
      %v3433 = vunpack.c.l.b16 %v2802
      %v3434 = vunpack.c.l.b16 %v2803
      %v3435 = vunpack.c.l.b16 %v2805
      %v3436 = vunpack.c.l.b16 %v2806
      %v3437 = vunpack.c.l.b16 %v2808
      %v3438 = vunpack.c.l.b16 %v2809
      %v3439 = vunpack.c.l.b16 %v2811
      %v3440 = vunpack.c.l.b16 %v2812
      %v3441 = vunpack.c.l.b16 %v2814
      %v3442 = vunpack.c.l.b16 %v2815
      %v3443 = vunpack.c.l.b16 %v2817
      %v3444 = vunpack.c.l.b16 %v2818
      %v3445 = vunpack.c.l.b16 %v2820
      %v3446 = vunpack.c.l.b16 %v2821
      %v3447 = vunpack.c.l.b16 %v2823
      %v3448 = vunpack.c.l.b16 %v2824
      %v3449 = vpack.c.b16 %v3434, %v3433
      %v3450 = vpack.c.b16 %v3436, %v3435
      %v3451 = vpack.c.b16 %v3438, %v3437
      %v3452 = vpack.c.b16 %v3440, %v3439
      %v3453 = vpack.c.b16 %v3442, %v3441
      %v3454 = vpack.c.b16 %v3444, %v3443
      %v3455 = vpack.c.b16 %v3446, %v3445
      %v3456 = vpack.c.b16 %v3448, %v3447
      %3457 = vrot.lane.b32.xlu0 %v3449, 28
      %v3458 = vpop.permute.xlu0 %3457
      %3459 = vrot.lane.b32.xlu0 %v3450, 28
      %v3460 = vpop.permute.xlu0 %3459
      %3461 = vrot.lane.b32.xlu0 %v3451, 28
      %v3462 = vpop.permute.xlu0 %3461
      %3463 = vrot.lane.b32.xlu0 %v3452, 28
      %v3464 = vpop.permute.xlu0 %3463
      %3465 = vrot.lane.b32.xlu0 %v3453, 28
      %v3466 = vpop.permute.xlu0 %3465
      %3467 = vrot.lane.b32.xlu0 %v3454, 28
      %v3468 = vpop.permute.xlu0 %3467
      %3469 = vrot.lane.b32.xlu0 %v3455, 28
      %v3470 = vpop.permute.xlu0 %3469
      %3471 = vrot.lane.b32.xlu0 %v3456, 28
      %v3472 = vpop.permute.xlu0 %3471
      %v3473 = vunpack.c.l.b16 %v3014
      %v3474 = vunpack.c.l.b16 %v3022
      %v3475 = vunpack.c.l.b16 %v3028
      %v3476 = vunpack.c.l.b16 %v3036
      %v3477 = vunpack.c.l.b16 %v3042
      %v3478 = vunpack.c.l.b16 %v3050
      %v3479 = vunpack.c.l.b16 %v3056
      %v3480 = vunpack.c.l.b16 %v3064
      %v3481 = vunpack.c.l.b16 %v3070
      %v3482 = vunpack.c.l.b16 %v3078
      %v3483 = vunpack.c.l.b16 %v3084
      %v3484 = vunpack.c.l.b16 %v3092
      %v3485 = vunpack.c.l.b16 %v3098
      %v3486 = vunpack.c.l.b16 %v3106
      %v3487 = vunpack.c.l.b16 %v3112
      %v3488 = vunpack.c.l.b16 %v3120
      %v3489 = vpack.c.b16 %v3474, %v3473
      %v3490 = vpack.c.b16 %v3476, %v3475
      %v3491 = vpack.c.b16 %v3478, %v3477
      %v3492 = vpack.c.b16 %v3480, %v3479
      %v3493 = vpack.c.b16 %v3482, %v3481
      %v3494 = vpack.c.b16 %v3484, %v3483
      %v3495 = vpack.c.b16 %v3486, %v3485
      %v3496 = vpack.c.b16 %v3488, %v3487
      %3497 = vrot.lane.b32.xlu0 %v3489, 32
      %v3498 = vpop.permute.xlu0 %3497
      %3499 = vrot.lane.b32.xlu0 %v3490, 32
      %v3500 = vpop.permute.xlu0 %3499
      %3501 = vrot.lane.b32.xlu0 %v3491, 32
      %v3502 = vpop.permute.xlu0 %3501
      %3503 = vrot.lane.b32.xlu0 %v3492, 32
      %v3504 = vpop.permute.xlu0 %3503
      %3505 = vrot.lane.b32.xlu0 %v3493, 32
      %v3506 = vpop.permute.xlu0 %3505
      %3507 = vrot.lane.b32.xlu0 %v3494, 32
      %v3508 = vpop.permute.xlu0 %3507
      %3509 = vrot.lane.b32.xlu0 %v3495, 32
      %v3510 = vpop.permute.xlu0 %3509
      %3511 = vrot.lane.b32.xlu0 %v3496, 32
      %v3512 = vpop.permute.xlu0 %3511
      %v3515 = vsel %vm1775, %v3137, %v3186
      %v3518 = vsel %vm1775, %v3138, %v3188
      %v3521 = vsel %vm1775, %v3139, %v3190
      %v3524 = vsel %vm1775, %v3140, %v3192
      %v3527 = vsel %vm1775, %v3141, %v3194
      %v3530 = vsel %vm1775, %v3142, %v3196
      %v3533 = vsel %vm1775, %v3143, %v3198
      %v3536 = vsel %vm1775, %v3144, %v3200
      %v3538 = vsel %vm1800, %v3515, %v3226
      %v3540 = vsel %vm1800, %v3518, %v3228
      %v3542 = vsel %vm1800, %v3521, %v3230
      %v3544 = vsel %vm1800, %v3524, %v3232
      %v3546 = vsel %vm1800, %v3527, %v3234
      %v3548 = vsel %vm1800, %v3530, %v3236
      %v3550 = vsel %vm1800, %v3533, %v3238
      %v3552 = vsel %vm1800, %v3536, %v3240
      %v3554 = vsel %vm1817, %v3538, %v3266
      %v3556 = vsel %vm1817, %v3540, %v3268
      %v3558 = vsel %vm1817, %v3542, %v3270
      %v3560 = vsel %vm1817, %v3544, %v3272
      %v3562 = vsel %vm1817, %v3546, %v3274
      %v3564 = vsel %vm1817, %v3548, %v3276
      %v3566 = vsel %vm1817, %v3550, %v3278
      %v3568 = vsel %vm1817, %v3552, %v3280
      %v3570 = vsel %vm1834, %v3554, %v3322
      %v3572 = vsel %vm1834, %v3556, %v3324
      %v3574 = vsel %vm1834, %v3558, %v3326
      %v3576 = vsel %vm1834, %v3560, %v3328
      %v3578 = vsel %vm1834, %v3562, %v3330
      %v3580 = vsel %vm1834, %v3564, %v3332
      %v3582 = vsel %vm1834, %v3566, %v3334
      %v3584 = vsel %vm1834, %v3568, %v3336
      %v3586 = vsel %vm1851, %v3570, %v3362
      %v3588 = vsel %vm1851, %v3572, %v3364
      %v3590 = vsel %vm1851, %v3574, %v3366
      %v3592 = vsel %vm1851, %v3576, %v3368
      %v3594 = vsel %vm1851, %v3578, %v3370
      %v3596 = vsel %vm1851, %v3580, %v3372
      %v3598 = vsel %vm1851, %v3582, %v3374
      %v3600 = vsel %vm1851, %v3584, %v3376
      %v3602 = vsel %vm1868, %v3586, %v3402
      %v3604 = vsel %vm1868, %v3588, %v3404
      %v3606 = vsel %vm1868, %v3590, %v3406
      %v3608 = vsel %vm1868, %v3592, %v3408
      %v3610 = vsel %vm1868, %v3594, %v3410
      %v3612 = vsel %vm1868, %v3596, %v3412
      %v3614 = vsel %vm1868, %v3598, %v3414
      %v3616 = vsel %vm1868, %v3600, %v3416
      %v3618 = vsel %vm1885, %v3602, %v3458
      %v3620 = vsel %vm1885, %v3604, %v3460
      %v3622 = vsel %vm1885, %v3606, %v3462
      %v3624 = vsel %vm1885, %v3608, %v3464
      %v3626 = vsel %vm1885, %v3610, %v3466
      %v3628 = vsel %vm1885, %v3612, %v3468
      %v3630 = vsel %vm1885, %v3614, %v3470
      %v3632 = vsel %vm1885, %v3616, %v3472
      %v3634 = vsel %vm1902, %v3618, %v3498
      %v3636 = vsel %vm1902, %v3620, %v3500
      %v3638 = vsel %vm1902, %v3622, %v3502
      %v3640 = vsel %vm1902, %v3624, %v3504
      %v3642 = vsel %vm1902, %v3626, %v3506
      %v3644 = vsel %vm1902, %v3628, %v3508
      %v3646 = vsel %vm1902, %v3630, %v3510
      %v3648 = vsel %vm1902, %v3632, %v3512
      %v3649 = vsel %vm1934, %v3634, 0
      %v3651 = vsel %vm1934, %v3636, 0
      %v3653 = vsel %vm1934, %v3638, 0
      %v3655 = vsel %vm1934, %v3640, 0
      %v3657 = vsel %vm1934, %v3642, 0
      %v3659 = vsel %vm1934, %v3644, 0
      %v3661 = vsel %vm1934, %v3646, 0
      %v3663 = vsel %vm1934, %v3648, 0
      %3665 = vmatprep.subr.bf16.mxu0 0
      %3666 = vmatpush1.bf16.msra.mxu0 0
      %3667 = vmatprep.subr.bf16.mxu0 0
      %3668 = vmatpush1.bf16.msra.mxu0 0
      %3669 = vmatprep.subr.bf16.mxu0 0
      %3670 = vmatpush1.bf16.msra.mxu0 0
      %3671 = vmatprep.subr.bf16.mxu0 0
      %3672 = vmatpush1.bf16.msra.mxu0 0
      %3673 = vmatprep.subr.bf16.mxu0 0
      %3674 = vmatpush1.bf16.msra.mxu0 0
      %3675 = vmatprep.subr.bf16.mxu0 0
      %3676 = vmatpush1.bf16.msra.mxu0 %v1953
      %3677 = vmatprep.subr.bf16.mxu0 0
      %3678 = vmatpush1.bf16.msra.mxu0 %v1930
      %3679 = vmatprep.subr.bf16.mxu0 0
      %3680 = vmatpush1.bf16.msra.mxu0 %v1929
      %3681 = vmatprep.subr.bf16.mxu0 0
      %3682 = vmatpush2.bf16.msra.mxu0 0
      %3683 = vmatprep.subr.bf16.mxu0 0
      %3684 = vmatpush2.bf16.msra.mxu0 0
      %3685 = vmatprep.subr.bf16.mxu0 0
      %3686 = vmatpush2.bf16.msra.mxu0 0
      %3687 = vmatprep.subr.bf16.mxu0 0
      %3688 = vmatpush2.bf16.msra.mxu0 0
      %3689 = vmatprep.subr.bf16.mxu0 0
      %3690 = vmatpush2.bf16.msra.mxu0 0
      %3691 = vmatprep.subr.bf16.mxu0 0
      %3692 = vmatpush2.bf16.msra.mxu0 0
      %3693 = vmatprep.subr.bf16.mxu0 0
      %3694 = vmatpush2.bf16.msra.mxu0 0
      %3695 = vmatprep.subr.bf16.mxu0 0
      %3696 = vmatpush2.bf16.msra.mxu0 0
      %3697 = vmatprep.mubr.bf16.mxu0 0
      %3698 = vmatmul.mubr.bf16.gmra.mxu0 %v3649
      %v3699 = vpop.f32.mrf.mxu0
      %v3700 = vadd.f32 %v397, %v3699
      %v3701 = vpop.f32.mrf.mxu0
      %v3702 = vpop.f32.mrf.mxu0
      %v3703 = vadd.f32 %v397, %v3702
      %v3704 = vpop.f32.mrf.mxu0
      %3705 = vmatprep.mubr.bf16.mxu0 0
      %3706 = vmatmul.mubr.bf16.gmra.mxu0 %v3651
      %v3707 = vpop.f32.mrf.mxu0
      %v3708 = vadd.f32 %v397, %v3707
      %v3709 = vpop.f32.mrf.mxu0
      %v3710 = vpop.f32.mrf.mxu0
      %v3711 = vadd.f32 %v397, %v3710
      %v3712 = vpop.f32.mrf.mxu0
      %3713 = vmatprep.mubr.bf16.mxu0 0
      %3714 = vmatmul.mubr.bf16.gmra.mxu0 %v3653
      %v3715 = vpop.f32.mrf.mxu0
      %v3716 = vadd.f32 %v397, %v3715
      %v3717 = vpop.f32.mrf.mxu0
      %v3718 = vpop.f32.mrf.mxu0
      %v3719 = vadd.f32 %v397, %v3718
      %v3720 = vpop.f32.mrf.mxu0
      %3721 = vmatprep.mubr.bf16.mxu0 0
      %3722 = vmatmul.mubr.bf16.gmra.mxu0 %v3655
      %v3723 = vpop.f32.mrf.mxu0
      %v3724 = vadd.f32 %v397, %v3723
      %v3725 = vpop.f32.mrf.mxu0
      %v3726 = vpop.f32.mrf.mxu0
      %v3727 = vadd.f32 %v397, %v3726
      %v3728 = vpop.f32.mrf.mxu0
      %3729 = vmatprep.mubr.bf16.mxu0 0
      %3730 = vmatmul.mubr.bf16.gmra.mxu0 %v3657
      %v3731 = vpop.f32.mrf.mxu0
      %v3732 = vadd.f32 %v397, %v3731
      %v3733 = vpop.f32.mrf.mxu0
      %v3734 = vpop.f32.mrf.mxu0
      %v3735 = vadd.f32 %v397, %v3734
      %v3736 = vpop.f32.mrf.mxu0
      %3737 = vmatprep.mubr.bf16.mxu0 0
      %3738 = vmatmul.mubr.bf16.gmra.mxu0 %v3659
      %v3739 = vpop.f32.mrf.mxu0
      %v3740 = vadd.f32 %v397, %v3739
      %v3741 = vpop.f32.mrf.mxu0
      %v3742 = vpop.f32.mrf.mxu0
      %v3743 = vadd.f32 %v397, %v3742
      %v3744 = vpop.f32.mrf.mxu0
      %3745 = vmatprep.mubr.bf16.mxu0 0
      %3746 = vmatmul.mubr.bf16.gmra.mxu0 %v3661
      %v3747 = vpop.f32.mrf.mxu0
      %v3748 = vadd.f32 %v397, %v3747
      %v3749 = vpop.f32.mrf.mxu0
      %v3750 = vpop.f32.mrf.mxu0
      %v3751 = vadd.f32 %v397, %v3750
      %v3752 = vpop.f32.mrf.mxu0
      %3753 = vmatprep.mubr.bf16.mxu0 0
      %3754 = vmatmul.mubr.bf16.gmra.mxu0 %v3663
      %v3755 = vpop.f32.mrf.mxu0
      %v3756 = vadd.f32 %v397, %v3755
      %v3757 = vpop.f32.mrf.mxu0
      %v3758 = vpop.f32.mrf.mxu0
      %v3759 = vadd.f32 %v397, %v3758
      %v3760 = vpop.f32.mrf.mxu0
      %3761 = vdwg.mxu0
      %v3762 = vmax.f32 %v3700, 0.0
      %v3763 = vmax.f32 %v3703, 0.0
      %v3764 = vmax.f32 %v3708, 0.0
      %v3765 = vmax.f32 %v3711, 0.0
      %v3766 = vmax.f32 %v3716, 0.0
      %v3767 = vmax.f32 %v3719, 0.0
      %v3768 = vmax.f32 %v3724, 0.0
      %v3769 = vmax.f32 %v3727, 0.0
      %v3770 = vmax.f32 %v3732, 0.0
      %v3771 = vmax.f32 %v3735, 0.0
      %v3772 = vmax.f32 %v3740, 0.0
      %v3773 = vmax.f32 %v3743, 0.0
      %v3774 = vmax.f32 %v3748, 0.0
      %v3775 = vmax.f32 %v3751, 0.0
      %v3776 = vmax.f32 %v3756, 0.0
      %v3777 = vmax.f32 %v3759, 0.0
      %v3778 = vpack.c.bf16 %v3763, %v3762
      %v3779 = vpack.c.bf16 %v3765, %v3764
      %v3780 = vpack.c.bf16 %v3767, %v3766
      %v3781 = vpack.c.bf16 %v3769, %v3768
      %v3782 = vpack.c.bf16 %v3771, %v3770
      %v3783 = vpack.c.bf16 %v3773, %v3772
      %v3784 = vpack.c.bf16 %v3775, %v3774
      %v3785 = vpack.c.bf16 %v3777, %v3776
      %v3794 = vunpack.c.l.b16 %v3778
      %v3795 = vunpack.c.h.b16 %v3778
      %v3796 = vunpack.c.l.b16 %v3779
      %v3797 = vunpack.c.h.b16 %v3779
      %v3798 = vunpack.c.l.b16 %v3780
      %v3799 = vunpack.c.h.b16 %v3780
      %v3800 = vunpack.c.l.b16 %v3781
      %v3801 = vunpack.c.h.b16 %v3781
      %v3802 = vunpack.c.l.b16 %v3782
      %v3803 = vunpack.c.h.b16 %v3782
      %v3804 = vunpack.c.l.b16 %v3783
      %v3805 = vunpack.c.h.b16 %v3783
      %v3806 = vunpack.c.l.b16 %v3784
      %v3807 = vunpack.c.h.b16 %v3784
      %v3808 = vunpack.c.l.b16 %v3785
      %v3809 = vunpack.c.h.b16 %v3785
      %v3810 = vpack.c.b16 %v3794, %v3794
      %v3811 = vpack.c.b16 %v3795, %v3795
      %v3812 = vpack.c.b16 %v3796, %v3796
      %v3813 = vpack.c.b16 %v3797, %v3797
      %v3814 = vpack.c.b16 %v3798, %v3798
      %v3815 = vpack.c.b16 %v3799, %v3799
      %v3816 = vpack.c.b16 %v3800, %v3800
      %v3817 = vpack.c.b16 %v3801, %v3801
      %v3818 = vpack.c.b16 %v3802, %v3802
      %v3819 = vpack.c.b16 %v3803, %v3803
      %v3820 = vpack.c.b16 %v3804, %v3804
      %v3821 = vpack.c.b16 %v3805, %v3805
      %v3822 = vpack.c.b16 %v3806, %v3806
      %v3823 = vpack.c.b16 %v3807, %v3807
      %v3824 = vpack.c.b16 %v3808, %v3808
      %v3825 = vpack.c.b16 %v3809, %v3809
      %s3842 = smul.addr %s2474, 4
      %s3843 = scalar_lea.vmem [#allocation3], %s3842
      %3844 = vst.msk [vmem:[%s3843 + $0x4] sm:$0xf] %vm226, %v3810
      %3845 = vst.msk [vmem:[%s3843 + $0x8] sm:$0xf] %vm226, %v3811
      %3846 = vst.msk [vmem:[%s3843 + $0x14] sm:$0xf] %vm226, %v3812
      %3847 = vst.msk [vmem:[%s3843 + $0x18] sm:$0xf] %vm226, %v3813
      %3848 = vst.msk [vmem:[%s3843 + $0x24] sm:$0xf] %vm226, %v3814
      %3849 = vst.msk [vmem:[%s3843 + $0x28] sm:$0xf] %vm226, %v3815
      %3850 = vst.msk [vmem:[%s3843 + $0x34] sm:$0xf] %vm226, %v3816
      %3851 = vst.msk [vmem:[%s3843 + $0x38] sm:$0xf] %vm226, %v3817
      %3852 = vst.msk [vmem:[%s3843 + $0x44] sm:$0xf] %vm226, %v3818
      %3853 = vst.msk [vmem:[%s3843 + $0x48] sm:$0xf] %vm226, %v3819
      %3854 = vst.msk [vmem:[%s3843 + $0x54] sm:$0xf] %vm226, %v3820
      %3855 = vst.msk [vmem:[%s3843 + $0x58] sm:$0xf] %vm226, %v3821
      %3856 = vst.msk [vmem:[%s3843 + $0x64] sm:$0xf] %vm226, %v3822
      %3857 = vst.msk [vmem:[%s3843 + $0x68] sm:$0xf] %vm226, %v3823
      %3858 = vst.msk [vmem:[%s3843 + $0x74] sm:$0xf] %vm226, %v3824
      %3859 = vst.msk [vmem:[%s3843 + $0x78] sm:$0xf] %vm226, %v3825
      %s3860 = smul.addr %s406, 4
      %s3861 = scalar_lea.vmem [#allocation3], %s3860
      %v3862 = vld [vmem:[%s3861] sm:$0x8]
      %v3863 = vld [vmem:[%s3861 + $0x4] sm:$0xf]
      %v3864 = vld [vmem:[%s3861 + $0x8] sm:$0xf]
      %v3865 = vld [vmem:[%s3861 + $0x10] sm:$0x8]
      %v3866 = vld [vmem:[%s3861 + $0x14] sm:$0xf]
      %v3867 = vld [vmem:[%s3861 + $0x18] sm:$0xf]
      %v3868 = vld [vmem:[%s3861 + $0x20] sm:$0x8]
      %v3869 = vld [vmem:[%s3861 + $0x24] sm:$0xf]
      %v3870 = vld [vmem:[%s3861 + $0x28] sm:$0xf]
      %v3871 = vld [vmem:[%s3861 + $0x30] sm:$0x8]
      %v3872 = vld [vmem:[%s3861 + $0x34] sm:$0xf]
      %v3873 = vld [vmem:[%s3861 + $0x38] sm:$0xf]
      %v3874 = vld [vmem:[%s3861 + $0x40] sm:$0x8]
      %v3875 = vld [vmem:[%s3861 + $0x44] sm:$0xf]
      %v3876 = vld [vmem:[%s3861 + $0x48] sm:$0xf]
      %v3877 = vld [vmem:[%s3861 + $0x50] sm:$0x8]
      %v3878 = vld [vmem:[%s3861 + $0x54] sm:$0xf]
      %v3879 = vld [vmem:[%s3861 + $0x58] sm:$0xf]
      %v3880 = vld [vmem:[%s3861 + $0x60] sm:$0x8]
      %v3881 = vld [vmem:[%s3861 + $0x64] sm:$0xf]
      %v3882 = vld [vmem:[%s3861 + $0x68] sm:$0xf]
      %v3883 = vld [vmem:[%s3861 + $0x70] sm:$0x8]
      %v3884 = vld [vmem:[%s3861 + $0x74] sm:$0xf]
      %v3885 = vld [vmem:[%s3861 + $0x78] sm:$0xf]
      %v3887 = vshrl.u32 %v3862, 16
      %v3889 = vrot.slane %v3887, 7
      %v3890 = vrot.slane %v3889, 4
      %v3892 = vshrl.u32 %v3863, 16
      %v3894 = vrot.slane %v3892, 7
      %v3895 = vshll.u32 %v3863, 16
      %v3897 = vor.u32 %v3894, %v3895
      %v3898 = vsel %vm435, %v3890, %v3897
      %v3899 = vrot.slane %v3894, 4
      %v3901 = vshrl.u32 %v3864, 16
      %v3903 = vrot.slane %v3901, 7
      %v3904 = vshll.u32 %v3864, 16
      %v3906 = vor.u32 %v3903, %v3904
      %v3907 = vsel %vm435, %v3899, %v3906
      %v3909 = vshrl.u32 %v3865, 16
      %v3911 = vrot.slane %v3909, 7
      %v3912 = vrot.slane %v3911, 4
      %v3914 = vshrl.u32 %v3866, 16
      %v3916 = vrot.slane %v3914, 7
      %v3917 = vshll.u32 %v3866, 16
      %v3919 = vor.u32 %v3916, %v3917
      %v3920 = vsel %vm435, %v3912, %v3919
      %v3921 = vrot.slane %v3916, 4
      %v3923 = vshrl.u32 %v3867, 16
      %v3925 = vrot.slane %v3923, 7
      %v3926 = vshll.u32 %v3867, 16
      %v3928 = vor.u32 %v3925, %v3926
      %v3929 = vsel %vm435, %v3921, %v3928
      %v3931 = vshrl.u32 %v3868, 16
      %v3933 = vrot.slane %v3931, 7
      %v3934 = vrot.slane %v3933, 4
      %v3936 = vshrl.u32 %v3869, 16
      %v3938 = vrot.slane %v3936, 7
      %v3939 = vshll.u32 %v3869, 16
      %v3941 = vor.u32 %v3938, %v3939
      %v3942 = vsel %vm435, %v3934, %v3941
      %v3943 = vrot.slane %v3938, 4
      %v3945 = vshrl.u32 %v3870, 16
      %v3947 = vrot.slane %v3945, 7
      %v3948 = vshll.u32 %v3870, 16
      %v3950 = vor.u32 %v3947, %v3948
      %v3951 = vsel %vm435, %v3943, %v3950
      %v3953 = vshrl.u32 %v3871, 16
      %v3955 = vrot.slane %v3953, 7
      %v3956 = vrot.slane %v3955, 4
      %v3958 = vshrl.u32 %v3872, 16
      %v3960 = vrot.slane %v3958, 7
      %v3961 = vshll.u32 %v3872, 16
      %v3963 = vor.u32 %v3960, %v3961
      %v3964 = vsel %vm435, %v3956, %v3963
      %v3965 = vrot.slane %v3960, 4
      %v3967 = vshrl.u32 %v3873, 16
      %v3969 = vrot.slane %v3967, 7
      %v3970 = vshll.u32 %v3873, 16
      %v3972 = vor.u32 %v3969, %v3970
      %v3973 = vsel %vm435, %v3965, %v3972
      %v3975 = vshrl.u32 %v3874, 16
      %v3977 = vrot.slane %v3975, 7
      %v3978 = vrot.slane %v3977, 4
      %v3980 = vshrl.u32 %v3875, 16
      %v3982 = vrot.slane %v3980, 7
      %v3983 = vshll.u32 %v3875, 16
      %v3985 = vor.u32 %v3982, %v3983
      %v3986 = vsel %vm435, %v3978, %v3985
      %v3987 = vrot.slane %v3982, 4
      %v3989 = vshrl.u32 %v3876, 16
      %v3991 = vrot.slane %v3989, 7
      %v3992 = vshll.u32 %v3876, 16
      %v3994 = vor.u32 %v3991, %v3992
      %v3995 = vsel %vm435, %v3987, %v3994
      %v3997 = vshrl.u32 %v3877, 16
      %v3999 = vrot.slane %v3997, 7
      %v4000 = vrot.slane %v3999, 4
      %v4002 = vshrl.u32 %v3878, 16
      %v4004 = vrot.slane %v4002, 7
      %v4005 = vshll.u32 %v3878, 16
      %v4007 = vor.u32 %v4004, %v4005
      %v4008 = vsel %vm435, %v4000, %v4007
      %v4009 = vrot.slane %v4004, 4
      %v4011 = vshrl.u32 %v3879, 16
      %v4013 = vrot.slane %v4011, 7
      %v4014 = vshll.u32 %v3879, 16
      %v4016 = vor.u32 %v4013, %v4014
      %v4017 = vsel %vm435, %v4009, %v4016
      %v4019 = vshrl.u32 %v3880, 16
      %v4021 = vrot.slane %v4019, 7
      %v4022 = vrot.slane %v4021, 4
      %v4024 = vshrl.u32 %v3881, 16
      %v4026 = vrot.slane %v4024, 7
      %v4027 = vshll.u32 %v3881, 16
      %v4029 = vor.u32 %v4026, %v4027
      %v4030 = vsel %vm435, %v4022, %v4029
      %v4031 = vrot.slane %v4026, 4
      %v4033 = vshrl.u32 %v3882, 16
      %v4035 = vrot.slane %v4033, 7
      %v4036 = vshll.u32 %v3882, 16
      %v4038 = vor.u32 %v4035, %v4036
      %v4039 = vsel %vm435, %v4031, %v4038
      %v4041 = vshrl.u32 %v3883, 16
      %v4043 = vrot.slane %v4041, 7
      %v4044 = vrot.slane %v4043, 4
      %v4046 = vshrl.u32 %v3884, 16
      %v4048 = vrot.slane %v4046, 7
      %v4049 = vshll.u32 %v3884, 16
      %v4051 = vor.u32 %v4048, %v4049
      %v4052 = vsel %vm435, %v4044, %v4051
      %v4053 = vrot.slane %v4048, 4
      %v4055 = vshrl.u32 %v3885, 16
      %v4057 = vrot.slane %v4055, 7
      %v4058 = vshll.u32 %v3885, 16
      %v4060 = vor.u32 %v4057, %v4058
      %v4061 = vsel %vm435, %v4053, %v4060
      %v4062 = vld [vmem:[%s3861 + $0xc] sm:$0x1]
      %v4063 = vld [vmem:[%s3861 + $0x1c] sm:$0x1]
      %v4064 = vld [vmem:[%s3861 + $0x2c] sm:$0x1]
      %v4065 = vld [vmem:[%s3861 + $0x3c] sm:$0x1]
      %v4066 = vld [vmem:[%s3861 + $0x4c] sm:$0x1]
      %v4067 = vld [vmem:[%s3861 + $0x5c] sm:$0x1]
      %v4068 = vld [vmem:[%s3861 + $0x6c] sm:$0x1]
      %v4069 = vld [vmem:[%s3861 + $0x7c] sm:$0x1]
      %v4070 = vrot.slane %v3892, 4
      %v4071 = vrot.slane %v3895, 5
      %v4072 = vor.u32 %v4070, %v4071
      %v4073 = vrot.slane %v4072, 4
      %v4074 = vrot.slane %v3904, 5
      %v4075 = vsel %vm622, %v4073, %v4074
      %v4076 = vrot.slane %v3901, 4
      %v4077 = vor.u32 %v4076, %v4074
      %v4078 = vrot.slane %v4077, 4
      %v4080 = vshll.u32 %v4062, 16
      %v4082 = vrot.slane %v4080, 5
      %v4083 = vsel %vm622, %v4078, %v4082
      %v4084 = vrot.slane %v3914, 4
      %v4085 = vrot.slane %v3917, 5
      %v4086 = vor.u32 %v4084, %v4085
      %v4087 = vrot.slane %v4086, 4
      %v4088 = vrot.slane %v3926, 5
      %v4089 = vsel %vm622, %v4087, %v4088
      %v4090 = vrot.slane %v3923, 4
      %v4091 = vor.u32 %v4090, %v4088
      %v4092 = vrot.slane %v4091, 4
      %v4094 = vshll.u32 %v4063, 16
      %v4096 = vrot.slane %v4094, 5
      %v4097 = vsel %vm622, %v4092, %v4096
      %v4098 = vrot.slane %v3936, 4
      %v4099 = vrot.slane %v3939, 5
      %v4100 = vor.u32 %v4098, %v4099
      %v4101 = vrot.slane %v4100, 4
      %v4102 = vrot.slane %v3948, 5
      %v4103 = vsel %vm622, %v4101, %v4102
      %v4104 = vrot.slane %v3945, 4
      %v4105 = vor.u32 %v4104, %v4102
      %v4106 = vrot.slane %v4105, 4
      %v4108 = vshll.u32 %v4064, 16
      %v4110 = vrot.slane %v4108, 5
      %v4111 = vsel %vm622, %v4106, %v4110
      %v4112 = vrot.slane %v3958, 4
      %v4113 = vrot.slane %v3961, 5
      %v4114 = vor.u32 %v4112, %v4113
      %v4115 = vrot.slane %v4114, 4
      %v4116 = vrot.slane %v3970, 5
      %v4117 = vsel %vm622, %v4115, %v4116
      %v4118 = vrot.slane %v3967, 4
      %v4119 = vor.u32 %v4118, %v4116
      %v4120 = vrot.slane %v4119, 4
      %v4122 = vshll.u32 %v4065, 16
      %v4124 = vrot.slane %v4122, 5
      %v4125 = vsel %vm622, %v4120, %v4124
      %v4126 = vrot.slane %v3980, 4
      %v4127 = vrot.slane %v3983, 5
      %v4128 = vor.u32 %v4126, %v4127
      %v4129 = vrot.slane %v4128, 4
      %v4130 = vrot.slane %v3992, 5
      %v4131 = vsel %vm622, %v4129, %v4130
      %v4132 = vrot.slane %v3989, 4
      %v4133 = vor.u32 %v4132, %v4130
      %v4134 = vrot.slane %v4133, 4
      %v4136 = vshll.u32 %v4066, 16
      %v4138 = vrot.slane %v4136, 5
      %v4139 = vsel %vm622, %v4134, %v4138
      %v4140 = vrot.slane %v4002, 4
      %v4141 = vrot.slane %v4005, 5
      %v4142 = vor.u32 %v4140, %v4141
      %v4143 = vrot.slane %v4142, 4
      %v4144 = vrot.slane %v4014, 5
      %v4145 = vsel %vm622, %v4143, %v4144
      %v4146 = vrot.slane %v4011, 4
      %v4147 = vor.u32 %v4146, %v4144
      %v4148 = vrot.slane %v4147, 4
      %v4150 = vshll.u32 %v4067, 16
      %v4152 = vrot.slane %v4150, 5
      %v4153 = vsel %vm622, %v4148, %v4152
      %v4154 = vrot.slane %v4024, 4
      %v4155 = vrot.slane %v4027, 5
      %v4156 = vor.u32 %v4154, %v4155
      %v4157 = vrot.slane %v4156, 4
      %v4158 = vrot.slane %v4036, 5
      %v4159 = vsel %vm622, %v4157, %v4158
      %v4160 = vrot.slane %v4033, 4
      %v4161 = vor.u32 %v4160, %v4158
      %v4162 = vrot.slane %v4161, 4
      %v4164 = vshll.u32 %v4068, 16
      %v4166 = vrot.slane %v4164, 5
      %v4167 = vsel %vm622, %v4162, %v4166
      %v4168 = vrot.slane %v4046, 4
      %v4169 = vrot.slane %v4049, 5
      %v4170 = vor.u32 %v4168, %v4169
      %v4171 = vrot.slane %v4170, 4
      %v4172 = vrot.slane %v4058, 5
      %v4173 = vsel %vm622, %v4171, %v4172
      %v4174 = vrot.slane %v4055, 4
      %v4175 = vor.u32 %v4174, %v4172
      %v4176 = vrot.slane %v4175, 4
      %v4178 = vshll.u32 %v4069, 16
      %v4180 = vrot.slane %v4178, 5
      %v4181 = vsel %vm622, %v4176, %v4180
      %v4182 = vld [vmem:[%s2133] sm:$0x8]
      %v4183 = vld [vmem:[%s2133 + $0x4] sm:$0xf]
      %v4184 = vld [vmem:[%s2133 + $0x8] sm:$0xf]
      %v4185 = vld [vmem:[%s2133 + $0x10] sm:$0x8]
      %v4186 = vld [vmem:[%s2133 + $0x14] sm:$0xf]
      %v4187 = vld [vmem:[%s2133 + $0x18] sm:$0xf]
      %v4188 = vld [vmem:[%s2133 + $0x20] sm:$0x8]
      %v4189 = vld [vmem:[%s2133 + $0x24] sm:$0xf]
      %v4190 = vld [vmem:[%s2133 + $0x28] sm:$0xf]
      %v4191 = vld [vmem:[%s2133 + $0x30] sm:$0x8]
      %v4192 = vld [vmem:[%s2133 + $0x34] sm:$0xf]
      %v4193 = vld [vmem:[%s2133 + $0x38] sm:$0xf]
      %v4194 = vld [vmem:[%s2133 + $0x40] sm:$0x8]
      %v4195 = vld [vmem:[%s2133 + $0x44] sm:$0xf]
      %v4196 = vld [vmem:[%s2133 + $0x48] sm:$0xf]
      %v4197 = vld [vmem:[%s2133 + $0x50] sm:$0x8]
      %v4198 = vld [vmem:[%s2133 + $0x54] sm:$0xf]
      %v4199 = vld [vmem:[%s2133 + $0x58] sm:$0xf]
      %v4200 = vld [vmem:[%s2133 + $0x60] sm:$0x8]
      %v4201 = vld [vmem:[%s2133 + $0x64] sm:$0xf]
      %v4202 = vld [vmem:[%s2133 + $0x68] sm:$0xf]
      %v4203 = vld [vmem:[%s2133 + $0x70] sm:$0x8]
      %v4204 = vld [vmem:[%s2133 + $0x74] sm:$0xf]
      %v4205 = vld [vmem:[%s2133 + $0x78] sm:$0xf]
      %v4207 = vshrl.u32 %v4182, 16
      %v4209 = vrot.slane %v4207, 7
      %v4210 = vrot.slane %v4209, 4
      %v4212 = vshrl.u32 %v4183, 16
      %v4214 = vrot.slane %v4212, 7
      %v4215 = vshll.u32 %v4183, 16
      %v4217 = vor.u32 %v4214, %v4215
      %v4218 = vsel %vm435, %v4210, %v4217
      %v4219 = vrot.slane %v4214, 4
      %v4221 = vshrl.u32 %v4184, 16
      %v4223 = vrot.slane %v4221, 7
      %v4224 = vshll.u32 %v4184, 16
      %v4226 = vor.u32 %v4223, %v4224
      %v4227 = vsel %vm435, %v4219, %v4226
      %v4229 = vshrl.u32 %v4185, 16
      %v4231 = vrot.slane %v4229, 7
      %v4232 = vrot.slane %v4231, 4
      %v4234 = vshrl.u32 %v4186, 16
      %v4236 = vrot.slane %v4234, 7
      %v4237 = vshll.u32 %v4186, 16
      %v4239 = vor.u32 %v4236, %v4237
      %v4240 = vsel %vm435, %v4232, %v4239
      %v4241 = vrot.slane %v4236, 4
      %v4243 = vshrl.u32 %v4187, 16
      %v4245 = vrot.slane %v4243, 7
      %v4246 = vshll.u32 %v4187, 16
      %v4248 = vor.u32 %v4245, %v4246
      %v4249 = vsel %vm435, %v4241, %v4248
      %v4251 = vshrl.u32 %v4188, 16
      %v4253 = vrot.slane %v4251, 7
      %v4254 = vrot.slane %v4253, 4
      %v4256 = vshrl.u32 %v4189, 16
      %v4258 = vrot.slane %v4256, 7
      %v4259 = vshll.u32 %v4189, 16
      %v4261 = vor.u32 %v4258, %v4259
      %v4262 = vsel %vm435, %v4254, %v4261
      %v4263 = vrot.slane %v4258, 4
      %v4265 = vshrl.u32 %v4190, 16
      %v4267 = vrot.slane %v4265, 7
      %v4268 = vshll.u32 %v4190, 16
      %v4270 = vor.u32 %v4267, %v4268
      %v4271 = vsel %vm435, %v4263, %v4270
      %v4273 = vshrl.u32 %v4191, 16
      %v4275 = vrot.slane %v4273, 7
      %v4276 = vrot.slane %v4275, 4
      %v4278 = vshrl.u32 %v4192, 16
      %v4280 = vrot.slane %v4278, 7
      %v4281 = vshll.u32 %v4192, 16
      %v4283 = vor.u32 %v4280, %v4281
      %v4284 = vsel %vm435, %v4276, %v4283
      %v4285 = vrot.slane %v4280, 4
      %v4287 = vshrl.u32 %v4193, 16
      %v4289 = vrot.slane %v4287, 7
      %v4290 = vshll.u32 %v4193, 16
      %v4292 = vor.u32 %v4289, %v4290
      %v4293 = vsel %vm435, %v4285, %v4292
      %v4295 = vshrl.u32 %v4194, 16
      %v4297 = vrot.slane %v4295, 7
      %v4298 = vrot.slane %v4297, 4
      %v4300 = vshrl.u32 %v4195, 16
      %v4302 = vrot.slane %v4300, 7
      %v4303 = vshll.u32 %v4195, 16
      %v4305 = vor.u32 %v4302, %v4303
      %v4306 = vsel %vm435, %v4298, %v4305
      %v4307 = vrot.slane %v4302, 4
      %v4309 = vshrl.u32 %v4196, 16
      %v4311 = vrot.slane %v4309, 7
      %v4312 = vshll.u32 %v4196, 16
      %v4314 = vor.u32 %v4311, %v4312
      %v4315 = vsel %vm435, %v4307, %v4314
      %v4317 = vshrl.u32 %v4197, 16
      %v4319 = vrot.slane %v4317, 7
      %v4320 = vrot.slane %v4319, 4
      %v4322 = vshrl.u32 %v4198, 16
      %v4324 = vrot.slane %v4322, 7
      %v4325 = vshll.u32 %v4198, 16
      %v4327 = vor.u32 %v4324, %v4325
      %v4328 = vsel %vm435, %v4320, %v4327
      %v4329 = vrot.slane %v4324, 4
      %v4331 = vshrl.u32 %v4199, 16
      %v4333 = vrot.slane %v4331, 7
      %v4334 = vshll.u32 %v4199, 16
      %v4336 = vor.u32 %v4333, %v4334
      %v4337 = vsel %vm435, %v4329, %v4336
      %v4339 = vshrl.u32 %v4200, 16
      %v4341 = vrot.slane %v4339, 7
      %v4342 = vrot.slane %v4341, 4
      %v4344 = vshrl.u32 %v4201, 16
      %v4346 = vrot.slane %v4344, 7
      %v4347 = vshll.u32 %v4201, 16
      %v4349 = vor.u32 %v4346, %v4347
      %v4350 = vsel %vm435, %v4342, %v4349
      %v4351 = vrot.slane %v4346, 4
      %v4353 = vshrl.u32 %v4202, 16
      %v4355 = vrot.slane %v4353, 7
      %v4356 = vshll.u32 %v4202, 16
      %v4358 = vor.u32 %v4355, %v4356
      %v4359 = vsel %vm435, %v4351, %v4358
      %v4361 = vshrl.u32 %v4203, 16
      %v4363 = vrot.slane %v4361, 7
      %v4364 = vrot.slane %v4363, 4
      %v4366 = vshrl.u32 %v4204, 16
      %v4368 = vrot.slane %v4366, 7
      %v4369 = vshll.u32 %v4204, 16
      %v4371 = vor.u32 %v4368, %v4369
      %v4372 = vsel %vm435, %v4364, %v4371
      %v4373 = vrot.slane %v4368, 4
      %v4375 = vshrl.u32 %v4205, 16
      %v4377 = vrot.slane %v4375, 7
      %v4378 = vshll.u32 %v4205, 16
      %v4380 = vor.u32 %v4377, %v4378
      %v4381 = vsel %vm435, %v4373, %v4380
      %v4382 = vld [vmem:[%s2133 + $0xc] sm:$0x1]
      %v4383 = vld [vmem:[%s2133 + $0x1c] sm:$0x1]
      %v4384 = vld [vmem:[%s2133 + $0x2c] sm:$0x1]
      %v4385 = vld [vmem:[%s2133 + $0x3c] sm:$0x1]
      %v4386 = vld [vmem:[%s2133 + $0x4c] sm:$0x1]
      %v4387 = vld [vmem:[%s2133 + $0x5c] sm:$0x1]
      %v4388 = vld [vmem:[%s2133 + $0x6c] sm:$0x1]
      %v4389 = vld [vmem:[%s2133 + $0x7c] sm:$0x1]
      %v4390 = vrot.slane %v4212, 4
      %v4391 = vrot.slane %v4215, 5
      %v4392 = vor.u32 %v4390, %v4391
      %v4393 = vrot.slane %v4392, 4
      %v4394 = vrot.slane %v4224, 5
      %v4395 = vsel %vm622, %v4393, %v4394
      %v4396 = vrot.slane %v4221, 4
      %v4397 = vor.u32 %v4396, %v4394
      %v4398 = vrot.slane %v4397, 4
      %v4400 = vshll.u32 %v4382, 16
      %v4402 = vrot.slane %v4400, 5
      %v4403 = vsel %vm622, %v4398, %v4402
      %v4404 = vrot.slane %v4234, 4
      %v4405 = vrot.slane %v4237, 5
      %v4406 = vor.u32 %v4404, %v4405
      %v4407 = vrot.slane %v4406, 4
      %v4408 = vrot.slane %v4246, 5
      %v4409 = vsel %vm622, %v4407, %v4408
      %v4410 = vrot.slane %v4243, 4
      %v4411 = vor.u32 %v4410, %v4408
      %v4412 = vrot.slane %v4411, 4
      %v4414 = vshll.u32 %v4383, 16
      %v4416 = vrot.slane %v4414, 5
      %v4417 = vsel %vm622, %v4412, %v4416
      %v4418 = vrot.slane %v4256, 4
      %v4419 = vrot.slane %v4259, 5
      %v4420 = vor.u32 %v4418, %v4419
      %v4421 = vrot.slane %v4420, 4
      %v4422 = vrot.slane %v4268, 5
      %v4423 = vsel %vm622, %v4421, %v4422
      %v4424 = vrot.slane %v4265, 4
      %v4425 = vor.u32 %v4424, %v4422
      %v4426 = vrot.slane %v4425, 4
      %v4428 = vshll.u32 %v4384, 16
      %v4430 = vrot.slane %v4428, 5
      %v4431 = vsel %vm622, %v4426, %v4430
      %v4432 = vrot.slane %v4278, 4
      %v4433 = vrot.slane %v4281, 5
      %v4434 = vor.u32 %v4432, %v4433
      %v4435 = vrot.slane %v4434, 4
      %v4436 = vrot.slane %v4290, 5
      %v4437 = vsel %vm622, %v4435, %v4436
      %v4438 = vrot.slane %v4287, 4
      %v4439 = vor.u32 %v4438, %v4436
      %v4440 = vrot.slane %v4439, 4
      %v4442 = vshll.u32 %v4385, 16
      %v4444 = vrot.slane %v4442, 5
      %v4445 = vsel %vm622, %v4440, %v4444
      %v4446 = vrot.slane %v4300, 4
      %v4447 = vrot.slane %v4303, 5
      %v4448 = vor.u32 %v4446, %v4447
      %v4449 = vrot.slane %v4448, 4
      %v4450 = vrot.slane %v4312, 5
      %v4451 = vsel %vm622, %v4449, %v4450
      %v4452 = vrot.slane %v4309, 4
      %v4453 = vor.u32 %v4452, %v4450
      %v4454 = vrot.slane %v4453, 4
      %v4456 = vshll.u32 %v4386, 16
      %v4458 = vrot.slane %v4456, 5
      %v4459 = vsel %vm622, %v4454, %v4458
      %v4460 = vrot.slane %v4322, 4
      %v4461 = vrot.slane %v4325, 5
      %v4462 = vor.u32 %v4460, %v4461
      %v4463 = vrot.slane %v4462, 4
      %v4464 = vrot.slane %v4334, 5
      %v4465 = vsel %vm622, %v4463, %v4464
      %v4466 = vrot.slane %v4331, 4
      %v4467 = vor.u32 %v4466, %v4464
      %v4468 = vrot.slane %v4467, 4
      %v4470 = vshll.u32 %v4387, 16
      %v4472 = vrot.slane %v4470, 5
      %v4473 = vsel %vm622, %v4468, %v4472
      %v4474 = vrot.slane %v4344, 4
      %v4475 = vrot.slane %v4347, 5
      %v4476 = vor.u32 %v4474, %v4475
      %v4477 = vrot.slane %v4476, 4
      %v4478 = vrot.slane %v4356, 5
      %v4479 = vsel %vm622, %v4477, %v4478
      %v4480 = vrot.slane %v4353, 4
      %v4481 = vor.u32 %v4480, %v4478
      %v4482 = vrot.slane %v4481, 4
      %v4484 = vshll.u32 %v4388, 16
      %v4486 = vrot.slane %v4484, 5
      %v4487 = vsel %vm622, %v4482, %v4486
      %v4488 = vrot.slane %v4366, 4
      %v4489 = vrot.slane %v4369, 5
      %v4490 = vor.u32 %v4488, %v4489
      %v4491 = vrot.slane %v4490, 4
      %v4492 = vrot.slane %v4378, 5
      %v4493 = vsel %vm622, %v4491, %v4492
      %v4494 = vrot.slane %v4375, 4
      %v4495 = vor.u32 %v4494, %v4492
      %v4496 = vrot.slane %v4495, 4
      %v4498 = vshll.u32 %v4389, 16
      %v4500 = vrot.slane %v4498, 5
      %v4501 = vsel %vm622, %v4496, %v4500
      %s4502 = smul.addr %s1060, 4
      %s4503 = scalar_lea.vmem [#allocation3], %s4502
      %v4504 = vld [vmem:[%s4503] sm:$0x8]
      %v4505 = vld [vmem:[%s4503 + $0x4] sm:$0xf]
      %v4506 = vld [vmem:[%s4503 + $0x8] sm:$0xf]
      %v4507 = vld [vmem:[%s4503 + $0x10] sm:$0x8]
      %v4508 = vld [vmem:[%s4503 + $0x14] sm:$0xf]
      %v4509 = vld [vmem:[%s4503 + $0x18] sm:$0xf]
      %v4510 = vld [vmem:[%s4503 + $0x20] sm:$0x8]
      %v4511 = vld [vmem:[%s4503 + $0x24] sm:$0xf]
      %v4512 = vld [vmem:[%s4503 + $0x28] sm:$0xf]
      %v4513 = vld [vmem:[%s4503 + $0x30] sm:$0x8]
      %v4514 = vld [vmem:[%s4503 + $0x34] sm:$0xf]
      %v4515 = vld [vmem:[%s4503 + $0x38] sm:$0xf]
      %v4516 = vld [vmem:[%s4503 + $0x40] sm:$0x8]
      %v4517 = vld [vmem:[%s4503 + $0x44] sm:$0xf]
      %v4518 = vld [vmem:[%s4503 + $0x48] sm:$0xf]
      %v4519 = vld [vmem:[%s4503 + $0x50] sm:$0x8]
      %v4520 = vld [vmem:[%s4503 + $0x54] sm:$0xf]
      %v4521 = vld [vmem:[%s4503 + $0x58] sm:$0xf]
      %v4522 = vld [vmem:[%s4503 + $0x60] sm:$0x8]
      %v4523 = vld [vmem:[%s4503 + $0x64] sm:$0xf]
      %v4524 = vld [vmem:[%s4503 + $0x68] sm:$0xf]
      %v4525 = vld [vmem:[%s4503 + $0x70] sm:$0x8]
      %v4526 = vld [vmem:[%s4503 + $0x74] sm:$0xf]
      %v4527 = vld [vmem:[%s4503 + $0x78] sm:$0xf]
      %v4529 = vshrl.u32 %v4504, 16
      %v4531 = vrot.slane %v4529, 7
      %v4532 = vrot.slane %v4531, 4
      %v4534 = vshrl.u32 %v4505, 16
      %v4536 = vrot.slane %v4534, 7
      %v4537 = vshll.u32 %v4505, 16
      %v4539 = vor.u32 %v4536, %v4537
      %v4540 = vsel %vm435, %v4532, %v4539
      %v4541 = vrot.slane %v4536, 4
      %v4543 = vshrl.u32 %v4506, 16
      %v4545 = vrot.slane %v4543, 7
      %v4546 = vshll.u32 %v4506, 16
      %v4548 = vor.u32 %v4545, %v4546
      %v4549 = vsel %vm435, %v4541, %v4548
      %v4551 = vshrl.u32 %v4507, 16
      %v4553 = vrot.slane %v4551, 7
      %v4554 = vrot.slane %v4553, 4
      %v4556 = vshrl.u32 %v4508, 16
      %v4558 = vrot.slane %v4556, 7
      %v4559 = vshll.u32 %v4508, 16
      %v4561 = vor.u32 %v4558, %v4559
      %v4562 = vsel %vm435, %v4554, %v4561
      %v4563 = vrot.slane %v4558, 4
      %v4565 = vshrl.u32 %v4509, 16
      %v4567 = vrot.slane %v4565, 7
      %v4568 = vshll.u32 %v4509, 16
      %v4570 = vor.u32 %v4567, %v4568
      %v4571 = vsel %vm435, %v4563, %v4570
      %v4573 = vshrl.u32 %v4510, 16
      %v4575 = vrot.slane %v4573, 7
      %v4576 = vrot.slane %v4575, 4
      %v4578 = vshrl.u32 %v4511, 16
      %v4580 = vrot.slane %v4578, 7
      %v4581 = vshll.u32 %v4511, 16
      %v4583 = vor.u32 %v4580, %v4581
      %v4584 = vsel %vm435, %v4576, %v4583
      %v4585 = vrot.slane %v4580, 4
      %v4587 = vshrl.u32 %v4512, 16
      %v4589 = vrot.slane %v4587, 7
      %v4590 = vshll.u32 %v4512, 16
      %v4592 = vor.u32 %v4589, %v4590
      %v4593 = vsel %vm435, %v4585, %v4592
      %v4595 = vshrl.u32 %v4513, 16
      %v4597 = vrot.slane %v4595, 7
      %v4598 = vrot.slane %v4597, 4
      %v4600 = vshrl.u32 %v4514, 16
      %v4602 = vrot.slane %v4600, 7
      %v4603 = vshll.u32 %v4514, 16
      %v4605 = vor.u32 %v4602, %v4603
      %v4606 = vsel %vm435, %v4598, %v4605
      %v4607 = vrot.slane %v4602, 4
      %v4609 = vshrl.u32 %v4515, 16
      %v4611 = vrot.slane %v4609, 7
      %v4612 = vshll.u32 %v4515, 16
      %v4614 = vor.u32 %v4611, %v4612
      %v4615 = vsel %vm435, %v4607, %v4614
      %v4617 = vshrl.u32 %v4516, 16
      %v4619 = vrot.slane %v4617, 7
      %v4620 = vrot.slane %v4619, 4
      %v4622 = vshrl.u32 %v4517, 16
      %v4624 = vrot.slane %v4622, 7
      %v4625 = vshll.u32 %v4517, 16
      %v4627 = vor.u32 %v4624, %v4625
      %v4628 = vsel %vm435, %v4620, %v4627
      %v4629 = vrot.slane %v4624, 4
      %v4631 = vshrl.u32 %v4518, 16
      %v4633 = vrot.slane %v4631, 7
      %v4634 = vshll.u32 %v4518, 16
      %v4636 = vor.u32 %v4633, %v4634
      %v4637 = vsel %vm435, %v4629, %v4636
      %v4639 = vshrl.u32 %v4519, 16
      %v4641 = vrot.slane %v4639, 7
      %v4642 = vrot.slane %v4641, 4
      %v4644 = vshrl.u32 %v4520, 16
      %v4646 = vrot.slane %v4644, 7
      %v4647 = vshll.u32 %v4520, 16
      %v4649 = vor.u32 %v4646, %v4647
      %v4650 = vsel %vm435, %v4642, %v4649
      %v4651 = vrot.slane %v4646, 4
      %v4653 = vshrl.u32 %v4521, 16
      %v4655 = vrot.slane %v4653, 7
      %v4656 = vshll.u32 %v4521, 16
      %v4658 = vor.u32 %v4655, %v4656
      %v4659 = vsel %vm435, %v4651, %v4658
      %v4661 = vshrl.u32 %v4522, 16
      %v4663 = vrot.slane %v4661, 7
      %v4664 = vrot.slane %v4663, 4
      %v4666 = vshrl.u32 %v4523, 16
      %v4668 = vrot.slane %v4666, 7
      %v4669 = vshll.u32 %v4523, 16
      %v4671 = vor.u32 %v4668, %v4669
      %v4672 = vsel %vm435, %v4664, %v4671
      %v4673 = vrot.slane %v4668, 4
      %v4675 = vshrl.u32 %v4524, 16
      %v4677 = vrot.slane %v4675, 7
      %v4678 = vshll.u32 %v4524, 16
      %v4680 = vor.u32 %v4677, %v4678
      %v4681 = vsel %vm435, %v4673, %v4680
      %v4683 = vshrl.u32 %v4525, 16
      %v4685 = vrot.slane %v4683, 7
      %v4686 = vrot.slane %v4685, 4
      %v4688 = vshrl.u32 %v4526, 16
      %v4690 = vrot.slane %v4688, 7
      %v4691 = vshll.u32 %v4526, 16
      %v4693 = vor.u32 %v4690, %v4691
      %v4694 = vsel %vm435, %v4686, %v4693
      %v4695 = vrot.slane %v4690, 4
      %v4697 = vshrl.u32 %v4527, 16
      %v4699 = vrot.slane %v4697, 7
      %v4700 = vshll.u32 %v4527, 16
      %v4702 = vor.u32 %v4699, %v4700
      %v4703 = vsel %vm435, %v4695, %v4702
      %v4704 = vld [vmem:[%s4503 + $0xc] sm:$0x1]
      %v4705 = vld [vmem:[%s4503 + $0x1c] sm:$0x1]
      %v4706 = vld [vmem:[%s4503 + $0x2c] sm:$0x1]
      %v4707 = vld [vmem:[%s4503 + $0x3c] sm:$0x1]
      %v4708 = vld [vmem:[%s4503 + $0x4c] sm:$0x1]
      %v4709 = vld [vmem:[%s4503 + $0x5c] sm:$0x1]
      %v4710 = vld [vmem:[%s4503 + $0x6c] sm:$0x1]
      %v4711 = vld [vmem:[%s4503 + $0x7c] sm:$0x1]
      %v4712 = vrot.slane %v4534, 4
      %v4713 = vrot.slane %v4537, 5
      %v4714 = vor.u32 %v4712, %v4713
      %v4715 = vrot.slane %v4714, 4
      %v4716 = vrot.slane %v4546, 5
      %v4717 = vsel %vm622, %v4715, %v4716
      %v4718 = vrot.slane %v4543, 4
      %v4719 = vor.u32 %v4718, %v4716
      %v4720 = vrot.slane %v4719, 4
      %v4722 = vshll.u32 %v4704, 16
      %v4724 = vrot.slane %v4722, 5
      %v4725 = vsel %vm622, %v4720, %v4724
      %v4726 = vrot.slane %v4556, 4
      %v4727 = vrot.slane %v4559, 5
      %v4728 = vor.u32 %v4726, %v4727
      %v4729 = vrot.slane %v4728, 4
      %v4730 = vrot.slane %v4568, 5
      %v4731 = vsel %vm622, %v4729, %v4730
      %v4732 = vrot.slane %v4565, 4
      %v4733 = vor.u32 %v4732, %v4730
      %v4734 = vrot.slane %v4733, 4
      %v4736 = vshll.u32 %v4705, 16
      %v4738 = vrot.slane %v4736, 5
      %v4739 = vsel %vm622, %v4734, %v4738
      %v4740 = vrot.slane %v4578, 4
      %v4741 = vrot.slane %v4581, 5
      %v4742 = vor.u32 %v4740, %v4741
      %v4743 = vrot.slane %v4742, 4
      %v4744 = vrot.slane %v4590, 5
      %v4745 = vsel %vm622, %v4743, %v4744
      %v4746 = vrot.slane %v4587, 4
      %v4747 = vor.u32 %v4746, %v4744
      %v4748 = vrot.slane %v4747, 4
      %v4750 = vshll.u32 %v4706, 16
      %v4752 = vrot.slane %v4750, 5
      %v4753 = vsel %vm622, %v4748, %v4752
      %v4754 = vrot.slane %v4600, 4
      %v4755 = vrot.slane %v4603, 5
      %v4756 = vor.u32 %v4754, %v4755
      %v4757 = vrot.slane %v4756, 4
      %v4758 = vrot.slane %v4612, 5
      %v4759 = vsel %vm622, %v4757, %v4758
      %v4760 = vrot.slane %v4609, 4
      %v4761 = vor.u32 %v4760, %v4758
      %v4762 = vrot.slane %v4761, 4
      %v4764 = vshll.u32 %v4707, 16
      %v4766 = vrot.slane %v4764, 5
      %v4767 = vsel %vm622, %v4762, %v4766
      %v4768 = vrot.slane %v4622, 4
      %v4769 = vrot.slane %v4625, 5
      %v4770 = vor.u32 %v4768, %v4769
      %v4771 = vrot.slane %v4770, 4
      %v4772 = vrot.slane %v4634, 5
      %v4773 = vsel %vm622, %v4771, %v4772
      %v4774 = vrot.slane %v4631, 4
      %v4775 = vor.u32 %v4774, %v4772
      %v4776 = vrot.slane %v4775, 4
      %v4778 = vshll.u32 %v4708, 16
      %v4780 = vrot.slane %v4778, 5
      %v4781 = vsel %vm622, %v4776, %v4780
      %v4782 = vrot.slane %v4644, 4
      %v4783 = vrot.slane %v4647, 5
      %v4784 = vor.u32 %v4782, %v4783
      %v4785 = vrot.slane %v4784, 4
      %v4786 = vrot.slane %v4656, 5
      %v4787 = vsel %vm622, %v4785, %v4786
      %v4788 = vrot.slane %v4653, 4
      %v4789 = vor.u32 %v4788, %v4786
      %v4790 = vrot.slane %v4789, 4
      %v4792 = vshll.u32 %v4709, 16
      %v4794 = vrot.slane %v4792, 5
      %v4795 = vsel %vm622, %v4790, %v4794
      %v4796 = vrot.slane %v4666, 4
      %v4797 = vrot.slane %v4669, 5
      %v4798 = vor.u32 %v4796, %v4797
      %v4799 = vrot.slane %v4798, 4
      %v4800 = vrot.slane %v4678, 5
      %v4801 = vsel %vm622, %v4799, %v4800
      %v4802 = vrot.slane %v4675, 4
      %v4803 = vor.u32 %v4802, %v4800
      %v4804 = vrot.slane %v4803, 4
      %v4806 = vshll.u32 %v4710, 16
      %v4808 = vrot.slane %v4806, 5
      %v4809 = vsel %vm622, %v4804, %v4808
      %v4810 = vrot.slane %v4688, 4
      %v4811 = vrot.slane %v4691, 5
      %v4812 = vor.u32 %v4810, %v4811
      %v4813 = vrot.slane %v4812, 4
      %v4814 = vrot.slane %v4700, 5
      %v4815 = vsel %vm622, %v4813, %v4814
      %v4816 = vrot.slane %v4697, 4
      %v4817 = vor.u32 %v4816, %v4814
      %v4818 = vrot.slane %v4817, 4
      %v4820 = vshll.u32 %v4711, 16
      %v4822 = vrot.slane %v4820, 5
      %v4823 = vsel %vm622, %v4818, %v4822
      %v4824 = vunpack.c.l.b16 %v3898
      %v4825 = vunpack.c.l.b16 %v3907
      %v4826 = vunpack.c.l.b16 %v3920
      %v4827 = vunpack.c.l.b16 %v3929
      %v4828 = vunpack.c.l.b16 %v3942
      %v4829 = vunpack.c.l.b16 %v3951
      %v4830 = vunpack.c.l.b16 %v3964
      %v4831 = vunpack.c.l.b16 %v3973
      %v4832 = vunpack.c.l.b16 %v3986
      %v4833 = vunpack.c.l.b16 %v3995
      %v4834 = vunpack.c.l.b16 %v4008
      %v4835 = vunpack.c.l.b16 %v4017
      %v4836 = vunpack.c.l.b16 %v4030
      %v4837 = vunpack.c.l.b16 %v4039
      %v4838 = vunpack.c.l.b16 %v4052
      %v4839 = vunpack.c.l.b16 %v4061
      %v4840 = vpack.c.b16 %v4825, %v4824
      %v4841 = vpack.c.b16 %v4827, %v4826
      %v4842 = vpack.c.b16 %v4829, %v4828
      %v4843 = vpack.c.b16 %v4831, %v4830
      %v4844 = vpack.c.b16 %v4833, %v4832
      %v4845 = vpack.c.b16 %v4835, %v4834
      %v4846 = vpack.c.b16 %v4837, %v4836
      %v4847 = vpack.c.b16 %v4839, %v4838
      %v4864 = vunpack.c.l.b16 %v3863
      %v4865 = vunpack.c.l.b16 %v3864
      %v4866 = vunpack.c.l.b16 %v3866
      %v4867 = vunpack.c.l.b16 %v3867
      %v4868 = vunpack.c.l.b16 %v3869
      %v4869 = vunpack.c.l.b16 %v3870
      %v4870 = vunpack.c.l.b16 %v3872
      %v4871 = vunpack.c.l.b16 %v3873
      %v4872 = vunpack.c.l.b16 %v3875
      %v4873 = vunpack.c.l.b16 %v3876
      %v4874 = vunpack.c.l.b16 %v3878
      %v4875 = vunpack.c.l.b16 %v3879
      %v4876 = vunpack.c.l.b16 %v3881
      %v4877 = vunpack.c.l.b16 %v3882
      %v4878 = vunpack.c.l.b16 %v3884
      %v4879 = vunpack.c.l.b16 %v3885
      %v4880 = vpack.c.b16 %v4865, %v4864
      %v4881 = vpack.c.b16 %v4867, %v4866
      %v4882 = vpack.c.b16 %v4869, %v4868
      %v4883 = vpack.c.b16 %v4871, %v4870
      %v4884 = vpack.c.b16 %v4873, %v4872
      %v4885 = vpack.c.b16 %v4875, %v4874
      %v4886 = vpack.c.b16 %v4877, %v4876
      %v4887 = vpack.c.b16 %v4879, %v4878
      %4888 = vrot.lane.b32.xlu0 %v4880, 4
      %v4889 = vpop.permute.xlu0 %4888
      %4890 = vrot.lane.b32.xlu0 %v4881, 4
      %v4891 = vpop.permute.xlu0 %4890
      %4892 = vrot.lane.b32.xlu0 %v4882, 4
      %v4893 = vpop.permute.xlu0 %4892
      %4894 = vrot.lane.b32.xlu0 %v4883, 4
      %v4895 = vpop.permute.xlu0 %4894
      %4896 = vrot.lane.b32.xlu0 %v4884, 4
      %v4897 = vpop.permute.xlu0 %4896
      %4898 = vrot.lane.b32.xlu0 %v4885, 4
      %v4899 = vpop.permute.xlu0 %4898
      %4900 = vrot.lane.b32.xlu0 %v4886, 4
      %v4901 = vpop.permute.xlu0 %4900
      %4902 = vrot.lane.b32.xlu0 %v4887, 4
      %v4903 = vpop.permute.xlu0 %4902
      %v4904 = vunpack.c.l.b16 %v4075
      %v4905 = vunpack.c.l.b16 %v4083
      %v4906 = vunpack.c.l.b16 %v4089
      %v4907 = vunpack.c.l.b16 %v4097
      %v4908 = vunpack.c.l.b16 %v4103
      %v4909 = vunpack.c.l.b16 %v4111
      %v4910 = vunpack.c.l.b16 %v4117
      %v4911 = vunpack.c.l.b16 %v4125
      %v4912 = vunpack.c.l.b16 %v4131
      %v4913 = vunpack.c.l.b16 %v4139
      %v4914 = vunpack.c.l.b16 %v4145
      %v4915 = vunpack.c.l.b16 %v4153
      %v4916 = vunpack.c.l.b16 %v4159
      %v4917 = vunpack.c.l.b16 %v4167
      %v4918 = vunpack.c.l.b16 %v4173
      %v4919 = vunpack.c.l.b16 %v4181
      %v4920 = vpack.c.b16 %v4905, %v4904
      %v4921 = vpack.c.b16 %v4907, %v4906
      %v4922 = vpack.c.b16 %v4909, %v4908
      %v4923 = vpack.c.b16 %v4911, %v4910
      %v4924 = vpack.c.b16 %v4913, %v4912
      %v4925 = vpack.c.b16 %v4915, %v4914
      %v4926 = vpack.c.b16 %v4917, %v4916
      %v4927 = vpack.c.b16 %v4919, %v4918
      %4928 = vrot.lane.b32.xlu0 %v4920, 8
      %v4929 = vpop.permute.xlu0 %4928
      %4930 = vrot.lane.b32.xlu0 %v4921, 8
      %v4931 = vpop.permute.xlu0 %4930
      %4932 = vrot.lane.b32.xlu0 %v4922, 8
      %v4933 = vpop.permute.xlu0 %4932
      %4934 = vrot.lane.b32.xlu0 %v4923, 8
      %v4935 = vpop.permute.xlu0 %4934
      %4936 = vrot.lane.b32.xlu0 %v4924, 8
      %v4937 = vpop.permute.xlu0 %4936
      %4938 = vrot.lane.b32.xlu0 %v4925, 8
      %v4939 = vpop.permute.xlu0 %4938
      %4940 = vrot.lane.b32.xlu0 %v4926, 8
      %v4941 = vpop.permute.xlu0 %4940
      %4942 = vrot.lane.b32.xlu0 %v4927, 8
      %v4943 = vpop.permute.xlu0 %4942
      %v4944 = vunpack.c.l.b16 %v4218
      %v4945 = vunpack.c.l.b16 %v4227
      %v4946 = vunpack.c.l.b16 %v4240
      %v4947 = vunpack.c.l.b16 %v4249
      %v4948 = vunpack.c.l.b16 %v4262
      %v4949 = vunpack.c.l.b16 %v4271
      %v4950 = vunpack.c.l.b16 %v4284
      %v4951 = vunpack.c.l.b16 %v4293
      %v4952 = vunpack.c.l.b16 %v4306
      %v4953 = vunpack.c.l.b16 %v4315
      %v4954 = vunpack.c.l.b16 %v4328
      %v4955 = vunpack.c.l.b16 %v4337
      %v4956 = vunpack.c.l.b16 %v4350
      %v4957 = vunpack.c.l.b16 %v4359
      %v4958 = vunpack.c.l.b16 %v4372
      %v4959 = vunpack.c.l.b16 %v4381
      %v4960 = vpack.c.b16 %v4945, %v4944
      %v4961 = vpack.c.b16 %v4947, %v4946
      %v4962 = vpack.c.b16 %v4949, %v4948
      %v4963 = vpack.c.b16 %v4951, %v4950
      %v4964 = vpack.c.b16 %v4953, %v4952
      %v4965 = vpack.c.b16 %v4955, %v4954
      %v4966 = vpack.c.b16 %v4957, %v4956
      %v4967 = vpack.c.b16 %v4959, %v4958
      %4968 = vrot.lane.b32.xlu0 %v4960, 12
      %v4969 = vpop.permute.xlu0 %4968
      %4970 = vrot.lane.b32.xlu0 %v4961, 12
      %v4971 = vpop.permute.xlu0 %4970
      %4972 = vrot.lane.b32.xlu0 %v4962, 12
      %v4973 = vpop.permute.xlu0 %4972
      %4974 = vrot.lane.b32.xlu0 %v4963, 12
      %v4975 = vpop.permute.xlu0 %4974
      %4976 = vrot.lane.b32.xlu0 %v4964, 12
      %v4977 = vpop.permute.xlu0 %4976
      %4978 = vrot.lane.b32.xlu0 %v4965, 12
      %v4979 = vpop.permute.xlu0 %4978
      %4980 = vrot.lane.b32.xlu0 %v4966, 12
      %v4981 = vpop.permute.xlu0 %4980
      %4982 = vrot.lane.b32.xlu0 %v4967, 12
      %v4983 = vpop.permute.xlu0 %4982
      %v5000 = vunpack.c.l.b16 %v4183
      %v5001 = vunpack.c.l.b16 %v4184
      %v5002 = vunpack.c.l.b16 %v4186
      %v5003 = vunpack.c.l.b16 %v4187
      %v5004 = vunpack.c.l.b16 %v4189
      %v5005 = vunpack.c.l.b16 %v4190
      %v5006 = vunpack.c.l.b16 %v4192
      %v5007 = vunpack.c.l.b16 %v4193
      %v5008 = vunpack.c.l.b16 %v4195
      %v5009 = vunpack.c.l.b16 %v4196
      %v5010 = vunpack.c.l.b16 %v4198
      %v5011 = vunpack.c.l.b16 %v4199
      %v5012 = vunpack.c.l.b16 %v4201
      %v5013 = vunpack.c.l.b16 %v4202
      %v5014 = vunpack.c.l.b16 %v4204
      %v5015 = vunpack.c.l.b16 %v4205
      %v5016 = vpack.c.b16 %v5001, %v5000
      %v5017 = vpack.c.b16 %v5003, %v5002
      %v5018 = vpack.c.b16 %v5005, %v5004
      %v5019 = vpack.c.b16 %v5007, %v5006
      %v5020 = vpack.c.b16 %v5009, %v5008
      %v5021 = vpack.c.b16 %v5011, %v5010
      %v5022 = vpack.c.b16 %v5013, %v5012
      %v5023 = vpack.c.b16 %v5015, %v5014
      %5024 = vrot.lane.b32.xlu0 %v5016, 16
      %v5025 = vpop.permute.xlu0 %5024
      %5026 = vrot.lane.b32.xlu0 %v5017, 16
      %v5027 = vpop.permute.xlu0 %5026
      %5028 = vrot.lane.b32.xlu0 %v5018, 16
      %v5029 = vpop.permute.xlu0 %5028
      %5030 = vrot.lane.b32.xlu0 %v5019, 16
      %v5031 = vpop.permute.xlu0 %5030
      %5032 = vrot.lane.b32.xlu0 %v5020, 16
      %v5033 = vpop.permute.xlu0 %5032
      %5034 = vrot.lane.b32.xlu0 %v5021, 16
      %v5035 = vpop.permute.xlu0 %5034
      %5036 = vrot.lane.b32.xlu0 %v5022, 16
      %v5037 = vpop.permute.xlu0 %5036
      %5038 = vrot.lane.b32.xlu0 %v5023, 16
      %v5039 = vpop.permute.xlu0 %5038
      %v5040 = vunpack.c.l.b16 %v4395
      %v5041 = vunpack.c.l.b16 %v4403
      %v5042 = vunpack.c.l.b16 %v4409
      %v5043 = vunpack.c.l.b16 %v4417
      %v5044 = vunpack.c.l.b16 %v4423
      %v5045 = vunpack.c.l.b16 %v4431
      %v5046 = vunpack.c.l.b16 %v4437
      %v5047 = vunpack.c.l.b16 %v4445
      %v5048 = vunpack.c.l.b16 %v4451
      %v5049 = vunpack.c.l.b16 %v4459
      %v5050 = vunpack.c.l.b16 %v4465
      %v5051 = vunpack.c.l.b16 %v4473
      %v5052 = vunpack.c.l.b16 %v4479
      %v5053 = vunpack.c.l.b16 %v4487
      %v5054 = vunpack.c.l.b16 %v4493
      %v5055 = vunpack.c.l.b16 %v4501
      %v5056 = vpack.c.b16 %v5041, %v5040
      %v5057 = vpack.c.b16 %v5043, %v5042
      %v5058 = vpack.c.b16 %v5045, %v5044
      %v5059 = vpack.c.b16 %v5047, %v5046
      %v5060 = vpack.c.b16 %v5049, %v5048
      %v5061 = vpack.c.b16 %v5051, %v5050
      %v5062 = vpack.c.b16 %v5053, %v5052
      %v5063 = vpack.c.b16 %v5055, %v5054
      %5064 = vrot.lane.b32.xlu0 %v5056, 20
      %v5065 = vpop.permute.xlu0 %5064
      %5066 = vrot.lane.b32.xlu0 %v5057, 20
      %v5067 = vpop.permute.xlu0 %5066
      %5068 = vrot.lane.b32.xlu0 %v5058, 20
      %v5069 = vpop.permute.xlu0 %5068
      %5070 = vrot.lane.b32.xlu0 %v5059, 20
      %v5071 = vpop.permute.xlu0 %5070
      %5072 = vrot.lane.b32.xlu0 %v5060, 20
      %v5073 = vpop.permute.xlu0 %5072
      %5074 = vrot.lane.b32.xlu0 %v5061, 20
      %v5075 = vpop.permute.xlu0 %5074
      %5076 = vrot.lane.b32.xlu0 %v5062, 20
      %v5077 = vpop.permute.xlu0 %5076
      %5078 = vrot.lane.b32.xlu0 %v5063, 20
      %v5079 = vpop.permute.xlu0 %5078
      %v5080 = vunpack.c.l.b16 %v4540
      %v5081 = vunpack.c.l.b16 %v4549
      %v5082 = vunpack.c.l.b16 %v4562
      %v5083 = vunpack.c.l.b16 %v4571
      %v5084 = vunpack.c.l.b16 %v4584
      %v5085 = vunpack.c.l.b16 %v4593
      %v5086 = vunpack.c.l.b16 %v4606
      %v5087 = vunpack.c.l.b16 %v4615
      %v5088 = vunpack.c.l.b16 %v4628
      %v5089 = vunpack.c.l.b16 %v4637
      %v5090 = vunpack.c.l.b16 %v4650
      %v5091 = vunpack.c.l.b16 %v4659
      %v5092 = vunpack.c.l.b16 %v4672
      %v5093 = vunpack.c.l.b16 %v4681
      %v5094 = vunpack.c.l.b16 %v4694
      %v5095 = vunpack.c.l.b16 %v4703
      %v5096 = vpack.c.b16 %v5081, %v5080
      %v5097 = vpack.c.b16 %v5083, %v5082
      %v5098 = vpack.c.b16 %v5085, %v5084
      %v5099 = vpack.c.b16 %v5087, %v5086
      %v5100 = vpack.c.b16 %v5089, %v5088
      %v5101 = vpack.c.b16 %v5091, %v5090
      %v5102 = vpack.c.b16 %v5093, %v5092
      %v5103 = vpack.c.b16 %v5095, %v5094
      %5104 = vrot.lane.b32.xlu0 %v5096, 24
      %v5105 = vpop.permute.xlu0 %5104
      %5106 = vrot.lane.b32.xlu0 %v5097, 24
      %v5107 = vpop.permute.xlu0 %5106
      %5108 = vrot.lane.b32.xlu0 %v5098, 24
      %v5109 = vpop.permute.xlu0 %5108
      %5110 = vrot.lane.b32.xlu0 %v5099, 24
      %v5111 = vpop.permute.xlu0 %5110
      %5112 = vrot.lane.b32.xlu0 %v5100, 24
      %v5113 = vpop.permute.xlu0 %5112
      %5114 = vrot.lane.b32.xlu0 %v5101, 24
      %v5115 = vpop.permute.xlu0 %5114
      %5116 = vrot.lane.b32.xlu0 %v5102, 24
      %v5117 = vpop.permute.xlu0 %5116
      %5118 = vrot.lane.b32.xlu0 %v5103, 24
      %v5119 = vpop.permute.xlu0 %5118
      %v5136 = vunpack.c.l.b16 %v4505
      %v5137 = vunpack.c.l.b16 %v4506
      %v5138 = vunpack.c.l.b16 %v4508
      %v5139 = vunpack.c.l.b16 %v4509
      %v5140 = vunpack.c.l.b16 %v4511
      %v5141 = vunpack.c.l.b16 %v4512
      %v5142 = vunpack.c.l.b16 %v4514
      %v5143 = vunpack.c.l.b16 %v4515
      %v5144 = vunpack.c.l.b16 %v4517
      %v5145 = vunpack.c.l.b16 %v4518
      %v5146 = vunpack.c.l.b16 %v4520
      %v5147 = vunpack.c.l.b16 %v4521
      %v5148 = vunpack.c.l.b16 %v4523
      %v5149 = vunpack.c.l.b16 %v4524
      %v5150 = vunpack.c.l.b16 %v4526
      %v5151 = vunpack.c.l.b16 %v4527
      %v5152 = vpack.c.b16 %v5137, %v5136
      %v5153 = vpack.c.b16 %v5139, %v5138
      %v5154 = vpack.c.b16 %v5141, %v5140
      %v5155 = vpack.c.b16 %v5143, %v5142
      %v5156 = vpack.c.b16 %v5145, %v5144
      %v5157 = vpack.c.b16 %v5147, %v5146
      %v5158 = vpack.c.b16 %v5149, %v5148
      %v5159 = vpack.c.b16 %v5151, %v5150
      %5160 = vrot.lane.b32.xlu0 %v5152, 28
      %v5161 = vpop.permute.xlu0 %5160
      %5162 = vrot.lane.b32.xlu0 %v5153, 28
      %v5163 = vpop.permute.xlu0 %5162
      %5164 = vrot.lane.b32.xlu0 %v5154, 28
      %v5165 = vpop.permute.xlu0 %5164
      %5166 = vrot.lane.b32.xlu0 %v5155, 28
      %v5167 = vpop.permute.xlu0 %5166
      %5168 = vrot.lane.b32.xlu0 %v5156, 28
      %v5169 = vpop.permute.xlu0 %5168
      %5170 = vrot.lane.b32.xlu0 %v5157, 28
      %v5171 = vpop.permute.xlu0 %5170
      %5172 = vrot.lane.b32.xlu0 %v5158, 28
      %v5173 = vpop.permute.xlu0 %5172
      %5174 = vrot.lane.b32.xlu0 %v5159, 28
      %v5175 = vpop.permute.xlu0 %5174
      %v5176 = vunpack.c.l.b16 %v4717
      %v5177 = vunpack.c.l.b16 %v4725
      %v5178 = vunpack.c.l.b16 %v4731
      %v5179 = vunpack.c.l.b16 %v4739
      %v5180 = vunpack.c.l.b16 %v4745
      %v5181 = vunpack.c.l.b16 %v4753
      %v5182 = vunpack.c.l.b16 %v4759
      %v5183 = vunpack.c.l.b16 %v4767
      %v5184 = vunpack.c.l.b16 %v4773
      %v5185 = vunpack.c.l.b16 %v4781
      %v5186 = vunpack.c.l.b16 %v4787
      %v5187 = vunpack.c.l.b16 %v4795
      %v5188 = vunpack.c.l.b16 %v4801
      %v5189 = vunpack.c.l.b16 %v4809
      %v5190 = vunpack.c.l.b16 %v4815
      %v5191 = vunpack.c.l.b16 %v4823
      %v5192 = vpack.c.b16 %v5177, %v5176
      %v5193 = vpack.c.b16 %v5179, %v5178
      %v5194 = vpack.c.b16 %v5181, %v5180
      %v5195 = vpack.c.b16 %v5183, %v5182
      %v5196 = vpack.c.b16 %v5185, %v5184
      %v5197 = vpack.c.b16 %v5187, %v5186
      %v5198 = vpack.c.b16 %v5189, %v5188
      %v5199 = vpack.c.b16 %v5191, %v5190
      %5200 = vrot.lane.b32.xlu0 %v5192, 32
      %v5201 = vpop.permute.xlu0 %5200
      %5202 = vrot.lane.b32.xlu0 %v5193, 32
      %v5203 = vpop.permute.xlu0 %5202
      %5204 = vrot.lane.b32.xlu0 %v5194, 32
      %v5205 = vpop.permute.xlu0 %5204
      %5206 = vrot.lane.b32.xlu0 %v5195, 32
      %v5207 = vpop.permute.xlu0 %5206
      %5208 = vrot.lane.b32.xlu0 %v5196, 32
      %v5209 = vpop.permute.xlu0 %5208
      %5210 = vrot.lane.b32.xlu0 %v5197, 32
      %v5211 = vpop.permute.xlu0 %5210
      %5212 = vrot.lane.b32.xlu0 %v5198, 32
      %v5213 = vpop.permute.xlu0 %5212
      %5214 = vrot.lane.b32.xlu0 %v5199, 32
      %v5215 = vpop.permute.xlu0 %5214
      %v5218 = vsel %vm1775, %v4840, %v4889
      %v5221 = vsel %vm1775, %v4841, %v4891
      %v5224 = vsel %vm1775, %v4842, %v4893
      %v5227 = vsel %vm1775, %v4843, %v4895
      %v5230 = vsel %vm1775, %v4844, %v4897
      %v5233 = vsel %vm1775, %v4845, %v4899
      %v5236 = vsel %vm1775, %v4846, %v4901
      %v5239 = vsel %vm1775, %v4847, %v4903
      %v5241 = vsel %vm1800, %v5218, %v4929
      %v5243 = vsel %vm1800, %v5221, %v4931
      %v5245 = vsel %vm1800, %v5224, %v4933
      %v5247 = vsel %vm1800, %v5227, %v4935
      %v5249 = vsel %vm1800, %v5230, %v4937
      %v5251 = vsel %vm1800, %v5233, %v4939
      %v5253 = vsel %vm1800, %v5236, %v4941
      %v5255 = vsel %vm1800, %v5239, %v4943
      %v5257 = vsel %vm1817, %v5241, %v4969
      %v5259 = vsel %vm1817, %v5243, %v4971
      %v5261 = vsel %vm1817, %v5245, %v4973
      %v5263 = vsel %vm1817, %v5247, %v4975
      %v5265 = vsel %vm1817, %v5249, %v4977
      %v5267 = vsel %vm1817, %v5251, %v4979
      %v5269 = vsel %vm1817, %v5253, %v4981
      %v5271 = vsel %vm1817, %v5255, %v4983
      %v5273 = vsel %vm1834, %v5257, %v5025
      %v5275 = vsel %vm1834, %v5259, %v5027
      %v5277 = vsel %vm1834, %v5261, %v5029
      %v5279 = vsel %vm1834, %v5263, %v5031
      %v5281 = vsel %vm1834, %v5265, %v5033
      %v5283 = vsel %vm1834, %v5267, %v5035
      %v5285 = vsel %vm1834, %v5269, %v5037
      %v5287 = vsel %vm1834, %v5271, %v5039
      %v5289 = vsel %vm1851, %v5273, %v5065
      %v5291 = vsel %vm1851, %v5275, %v5067
      %v5293 = vsel %vm1851, %v5277, %v5069
      %v5295 = vsel %vm1851, %v5279, %v5071
      %v5297 = vsel %vm1851, %v5281, %v5073
      %v5299 = vsel %vm1851, %v5283, %v5075
      %v5301 = vsel %vm1851, %v5285, %v5077
      %v5303 = vsel %vm1851, %v5287, %v5079
      %v5305 = vsel %vm1868, %v5289, %v5105
      %v5307 = vsel %vm1868, %v5291, %v5107
      %v5309 = vsel %vm1868, %v5293, %v5109
      %v5311 = vsel %vm1868, %v5295, %v5111
      %v5313 = vsel %vm1868, %v5297, %v5113
      %v5315 = vsel %vm1868, %v5299, %v5115
      %v5317 = vsel %vm1868, %v5301, %v5117
      %v5319 = vsel %vm1868, %v5303, %v5119
      %v5321 = vsel %vm1885, %v5305, %v5161
      %v5323 = vsel %vm1885, %v5307, %v5163
      %v5325 = vsel %vm1885, %v5309, %v5165
      %v5327 = vsel %vm1885, %v5311, %v5167
      %v5329 = vsel %vm1885, %v5313, %v5169
      %v5331 = vsel %vm1885, %v5315, %v5171
      %v5333 = vsel %vm1885, %v5317, %v5173
      %v5335 = vsel %vm1885, %v5319, %v5175
      %v5337 = vsel %vm1902, %v5321, %v5201
      %v5339 = vsel %vm1902, %v5323, %v5203
      %v5341 = vsel %vm1902, %v5325, %v5205
      %v5343 = vsel %vm1902, %v5327, %v5207
      %v5345 = vsel %vm1902, %v5329, %v5209
      %v5347 = vsel %vm1902, %v5331, %v5211
      %v5349 = vsel %vm1902, %v5333, %v5213
      %v5351 = vsel %vm1902, %v5335, %v5215
      %v5352 = vld [vmem:[%s738 + $0x4] sm:$0xf]
      %v5353 = vld [vmem:[%s738 + $0x8] sm:$0xf]
      %v5354 = vld [vmem:[%s738 + $0x14] sm:$0xf]
      %v5355 = vld [vmem:[%s738 + $0x18] sm:$0xf]
      %v5356 = vld [vmem:[%s738 + $0x24] sm:$0xf]
      %v5357 = vld [vmem:[%s738 + $0x28] sm:$0xf]
      %v5358 = vld [vmem:[%s738 + $0x34] sm:$0xf]
      %v5359 = vld [vmem:[%s738 + $0x38] sm:$0xf]
      %v5360 = vld [vmem:[%s738 + $0x44] sm:$0xf]
      %v5361 = vld [vmem:[%s738 + $0x48] sm:$0xf]
      %v5362 = vld [vmem:[%s738 + $0x54] sm:$0xf]
      %v5363 = vld [vmem:[%s738 + $0x58] sm:$0xf]
      %v5364 = vld [vmem:[%s738 + $0x64] sm:$0xf]
      %v5365 = vld [vmem:[%s738 + $0x68] sm:$0xf]
      %v5366 = vld [vmem:[%s738 + $0x74] sm:$0xf]
      %v5367 = vld [vmem:[%s738 + $0x78] sm:$0xf]
      %v5373 = vunpack.c.l.b16 %v387
      %v5374 = vunpack.c.l.b16 %v388
      %v5375 = vunpack.c.l.b16 %v389
      %v5376 = vunpack.c.l.b16 %v390
      %v5377 = vunpack.c.l.b16 %v391
      %v5378 = vpack.c.b16 %v5374, %v5373
      %v5379 = vpack.c.b16 %v5376, %v5375
      %v5380 = vpack.c.b16 %v5377, %v5377
      %v5383 = vsel %vm1934, %v5337, 0
      %v5385 = vsel %vm1934, %v5339, 0
      %v5387 = vsel %vm1934, %v5341, 0
      %v5389 = vsel %vm1934, %v5343, 0
      %v5391 = vsel %vm1934, %v5345, 0
      %v5393 = vsel %vm1934, %v5347, 0
      %v5395 = vsel %vm1934, %v5349, 0
      %v5397 = vsel %vm1934, %v5351, 0
      %v5400 = vsel %vm1951, %v5380, 0
      %5402 = vmatprep.subr.bf16.mxu0 0
      %5403 = vmatpush1.bf16.msra.mxu0 0
      %5404 = vmatprep.subr.bf16.mxu0 0
      %5405 = vmatpush1.bf16.msra.mxu0 0
      %5406 = vmatprep.subr.bf16.mxu0 0
      %5407 = vmatpush1.bf16.msra.mxu0 0
      %5408 = vmatprep.subr.bf16.mxu0 0
      %5409 = vmatpush1.bf16.msra.mxu0 0
      %5410 = vmatprep.subr.bf16.mxu0 0
      %5411 = vmatpush1.bf16.msra.mxu0 0
      %5412 = vmatprep.subr.bf16.mxu0 0
      %5413 = vmatpush1.bf16.msra.mxu0 %v5400
      %5414 = vmatprep.subr.bf16.mxu0 0
      %5415 = vmatpush1.bf16.msra.mxu0 %v5379
      %5416 = vmatprep.subr.bf16.mxu0 0
      %5417 = vmatpush1.bf16.msra.mxu0 %v5378
      %5418 = vmatprep.subr.bf16.mxu0 0
      %5419 = vmatpush2.bf16.msra.mxu0 0
      %5420 = vmatprep.subr.bf16.mxu0 0
      %5421 = vmatpush2.bf16.msra.mxu0 0
      %5422 = vmatprep.subr.bf16.mxu0 0
      %5423 = vmatpush2.bf16.msra.mxu0 0
      %5424 = vmatprep.subr.bf16.mxu0 0
      %5425 = vmatpush2.bf16.msra.mxu0 0
      %5426 = vmatprep.subr.bf16.mxu0 0
      %5427 = vmatpush2.bf16.msra.mxu0 0
      %5428 = vmatprep.subr.bf16.mxu0 0
      %5429 = vmatpush2.bf16.msra.mxu0 0
      %5430 = vmatprep.subr.bf16.mxu0 0
      %5431 = vmatpush2.bf16.msra.mxu0 0
      %5432 = vmatprep.subr.bf16.mxu0 0
      %5433 = vmatpush2.bf16.msra.mxu0 0
      %5434 = vmatprep.mubr.bf16.mxu0 0
      %5435 = vmatmul.mubr.bf16.gmra.mxu0 %v5383
      %v5436 = vpop.f32.mrf.mxu0
      %v5437 = vadd.f32 %v404, %v5436
      %v5438 = vpop.f32.mrf.mxu0
      %v5439 = vpop.f32.mrf.mxu0
      %v5440 = vadd.f32 %v404, %v5439
      %v5441 = vpop.f32.mrf.mxu0
      %5442 = vmatprep.mubr.bf16.mxu0 0
      %5443 = vmatmul.mubr.bf16.gmra.mxu0 %v5385
      %v5444 = vpop.f32.mrf.mxu0
      %v5445 = vadd.f32 %v404, %v5444
      %v5446 = vpop.f32.mrf.mxu0
      %v5447 = vpop.f32.mrf.mxu0
      %v5448 = vadd.f32 %v404, %v5447
      %v5449 = vpop.f32.mrf.mxu0
      %5450 = vmatprep.mubr.bf16.mxu0 0
      %5451 = vmatmul.mubr.bf16.gmra.mxu0 %v5387
      %v5452 = vpop.f32.mrf.mxu0
      %v5453 = vadd.f32 %v404, %v5452
      %v5454 = vpop.f32.mrf.mxu0
      %v5455 = vpop.f32.mrf.mxu0
      %v5456 = vadd.f32 %v404, %v5455
      %v5457 = vpop.f32.mrf.mxu0
      %5458 = vmatprep.mubr.bf16.mxu0 0
      %5459 = vmatmul.mubr.bf16.gmra.mxu0 %v5389
      %v5460 = vpop.f32.mrf.mxu0
      %v5461 = vadd.f32 %v404, %v5460
      %v5462 = vpop.f32.mrf.mxu0
      %v5463 = vpop.f32.mrf.mxu0
      %v5464 = vadd.f32 %v404, %v5463
      %v5465 = vpop.f32.mrf.mxu0
      %5466 = vmatprep.mubr.bf16.mxu0 0
      %5467 = vmatmul.mubr.bf16.gmra.mxu0 %v5391
      %v5468 = vpop.f32.mrf.mxu0
      %v5469 = vadd.f32 %v404, %v5468
      %v5470 = vpop.f32.mrf.mxu0
      %v5471 = vpop.f32.mrf.mxu0
      %v5472 = vadd.f32 %v404, %v5471
      %v5473 = vpop.f32.mrf.mxu0
      %5474 = vmatprep.mubr.bf16.mxu0 0
      %5475 = vmatmul.mubr.bf16.gmra.mxu0 %v5393
      %v5476 = vpop.f32.mrf.mxu0
      %v5477 = vadd.f32 %v404, %v5476
      %v5478 = vpop.f32.mrf.mxu0
      %v5479 = vpop.f32.mrf.mxu0
      %v5480 = vadd.f32 %v404, %v5479
      %v5481 = vpop.f32.mrf.mxu0
      %5482 = vmatprep.mubr.bf16.mxu0 0
      %5483 = vmatmul.mubr.bf16.gmra.mxu0 %v5395
      %v5484 = vpop.f32.mrf.mxu0
      %v5485 = vadd.f32 %v404, %v5484
      %v5486 = vpop.f32.mrf.mxu0
      %v5487 = vpop.f32.mrf.mxu0
      %v5488 = vadd.f32 %v404, %v5487
      %v5489 = vpop.f32.mrf.mxu0
      %5490 = vmatprep.mubr.bf16.mxu0 0
      %5491 = vmatmul.mubr.bf16.gmra.mxu0 %v5397
      %v5492 = vpop.f32.mrf.mxu0
      %v5493 = vadd.f32 %v404, %v5492
      %v5494 = vpop.f32.mrf.mxu0
      %v5495 = vpop.f32.mrf.mxu0
      %v5496 = vadd.f32 %v404, %v5495
      %v5497 = vpop.f32.mrf.mxu0
      %5498 = vdwg.mxu0
      %v5499 = vunpack.c.l.bf16 %v5352
      %v5500 = vunpack.c.l.bf16 %v5353
      %v5501 = vunpack.c.l.bf16 %v5354
      %v5502 = vunpack.c.l.bf16 %v5355
      %v5503 = vunpack.c.l.bf16 %v5356
      %v5504 = vunpack.c.l.bf16 %v5357
      %v5505 = vunpack.c.l.bf16 %v5358
      %v5506 = vunpack.c.l.bf16 %v5359
      %v5507 = vunpack.c.l.bf16 %v5360
      %v5508 = vunpack.c.l.bf16 %v5361
      %v5509 = vunpack.c.l.bf16 %v5362
      %v5510 = vunpack.c.l.bf16 %v5363
      %v5511 = vunpack.c.l.bf16 %v5364
      %v5512 = vunpack.c.l.bf16 %v5365
      %v5513 = vunpack.c.l.bf16 %v5366
      %v5514 = vunpack.c.l.bf16 %v5367
      %v5515 = vadd.f32 %v5437, %v5499
      %v5516 = vadd.f32 %v5440, %v5500
      %v5517 = vadd.f32 %v5445, %v5501
      %v5518 = vadd.f32 %v5448, %v5502
      %v5519 = vadd.f32 %v5453, %v5503
      %v5520 = vadd.f32 %v5456, %v5504
      %v5521 = vadd.f32 %v5461, %v5505
      %v5522 = vadd.f32 %v5464, %v5506
      %v5523 = vadd.f32 %v5469, %v5507
      %v5524 = vadd.f32 %v5472, %v5508
      %v5525 = vadd.f32 %v5477, %v5509
      %v5526 = vadd.f32 %v5480, %v5510
      %v5527 = vadd.f32 %v5485, %v5511
      %v5528 = vadd.f32 %v5488, %v5512
      %v5529 = vadd.f32 %v5493, %v5513
      %v5530 = vadd.f32 %v5496, %v5514
      %v5531 = vmax.f32 %v5515, 0.0
      %v5532 = vmax.f32 %v5516, 0.0
      %v5533 = vmax.f32 %v5517, 0.0
      %v5534 = vmax.f32 %v5518, 0.0
      %v5535 = vmax.f32 %v5519, 0.0
      %v5536 = vmax.f32 %v5520, 0.0
      %v5537 = vmax.f32 %v5521, 0.0
      %v5538 = vmax.f32 %v5522, 0.0
      %v5539 = vmax.f32 %v5523, 0.0
      %v5540 = vmax.f32 %v5524, 0.0
      %v5541 = vmax.f32 %v5525, 0.0
      %v5542 = vmax.f32 %v5526, 0.0
      %v5543 = vmax.f32 %v5527, 0.0
      %v5544 = vmax.f32 %v5528, 0.0
      %v5545 = vmax.f32 %v5529, 0.0
      %v5546 = vmax.f32 %v5530, 0.0
      %v5547 = vpack.c.bf16 %v5532, %v5531
      %v5548 = vpack.c.bf16 %v5534, %v5533
      %v5549 = vpack.c.bf16 %v5536, %v5535
      %v5550 = vpack.c.bf16 %v5538, %v5537
      %v5551 = vpack.c.bf16 %v5540, %v5539
      %v5552 = vpack.c.bf16 %v5542, %v5541
      %v5553 = vpack.c.bf16 %v5544, %v5543
      %v5554 = vpack.c.bf16 %v5546, %v5545
      %v5563 = vunpack.c.l.b16 %v5547
      %v5564 = vunpack.c.h.b16 %v5547
      %v5565 = vunpack.c.l.b16 %v5548
      %v5566 = vunpack.c.h.b16 %v5548
      %v5567 = vunpack.c.l.b16 %v5549
      %v5568 = vunpack.c.h.b16 %v5549
      %v5569 = vunpack.c.l.b16 %v5550
      %v5570 = vunpack.c.h.b16 %v5550
      %v5571 = vunpack.c.l.b16 %v5551
      %v5572 = vunpack.c.h.b16 %v5551
      %v5573 = vunpack.c.l.b16 %v5552
      %v5574 = vunpack.c.h.b16 %v5552
      %v5575 = vunpack.c.l.b16 %v5553
      %v5576 = vunpack.c.h.b16 %v5553
      %v5577 = vunpack.c.l.b16 %v5554
      %v5578 = vunpack.c.h.b16 %v5554
      %v5579 = vpack.c.b16 %v5563, %v5563
      %v5580 = vpack.c.b16 %v5564, %v5564
      %v5581 = vpack.c.b16 %v5565, %v5565
      %v5582 = vpack.c.b16 %v5566, %v5566
      %v5583 = vpack.c.b16 %v5567, %v5567
      %v5584 = vpack.c.b16 %v5568, %v5568
      %v5585 = vpack.c.b16 %v5569, %v5569
      %v5586 = vpack.c.b16 %v5570, %v5570
      %v5587 = vpack.c.b16 %v5571, %v5571
      %v5588 = vpack.c.b16 %v5572, %v5572
      %v5589 = vpack.c.b16 %v5573, %v5573
      %v5590 = vpack.c.b16 %v5574, %v5574
      %v5591 = vpack.c.b16 %v5575, %v5575
      %v5592 = vpack.c.b16 %v5576, %v5576
      %v5593 = vpack.c.b16 %v5577, %v5577
      %v5594 = vpack.c.b16 %v5578, %v5578
      %s5611 = smul.u32 0, 2
      %s5612 = smul.addr %s5611, 4
      %s5613 = scalar_lea.vmem %s224, %s5612
      %5614 = vst.msk [vmem:[%s5613] sm:$0xf] %vm226, %v5579
      %5615 = vst.msk [vmem:[%s5613 + $0x4] sm:$0xf] %vm226, %v5580
      %5616 = vst.msk [vmem:[%s5613 + $0x8] sm:$0xf] %vm226, %v5581
      %5617 = vst.msk [vmem:[%s5613 + $0xc] sm:$0xf] %vm226, %v5582
      %5618 = vst.msk [vmem:[%s5613 + $0x10] sm:$0xf] %vm226, %v5583
      %5619 = vst.msk [vmem:[%s5613 + $0x14] sm:$0xf] %vm226, %v5584
      %5620 = vst.msk [vmem:[%s5613 + $0x18] sm:$0xf] %vm226, %v5585
      %5621 = vst.msk [vmem:[%s5613 + $0x1c] sm:$0xf] %vm226, %v5586
      %5622 = vst.msk [vmem:[%s5613 + $0x20] sm:$0xf] %vm226, %v5587
      %5623 = vst.msk [vmem:[%s5613 + $0x24] sm:$0xf] %vm226, %v5588
      %5624 = vst.msk [vmem:[%s5613 + $0x28] sm:$0xf] %vm226, %v5589
      %5625 = vst.msk [vmem:[%s5613 + $0x2c] sm:$0xf] %vm226, %v5590
      %5626 = vst.msk [vmem:[%s5613 + $0x30] sm:$0xf] %vm226, %v5591
      %5627 = vst.msk [vmem:[%s5613 + $0x34] sm:$0xf] %vm226, %v5592
      %5628 = vst.msk [vmem:[%s5613 + $0x38] sm:$0xf] %vm226, %v5593
      %5629 = vst.msk [vmem:[%s5613 + $0x3c] sm:$0xf] %vm226, %v5594
      %s5630 = smul.addr %s2150, 4
      %s5631 = scalar_lea.vmem [#allocation3], %s5630
      %v5632 = vld [vmem:[%s5631] sm:$0x8]
      %v5633 = vld [vmem:[%s5631 + $0x4] sm:$0xf]
      %v5634 = vld [vmem:[%s5631 + $0x8] sm:$0xf]
      %v5635 = vld [vmem:[%s5631 + $0x10] sm:$0x8]
      %v5636 = vld [vmem:[%s5631 + $0x14] sm:$0xf]
      %v5637 = vld [vmem:[%s5631 + $0x18] sm:$0xf]
      %v5638 = vld [vmem:[%s5631 + $0x20] sm:$0x8]
      %v5639 = vld [vmem:[%s5631 + $0x24] sm:$0xf]
      %v5640 = vld [vmem:[%s5631 + $0x28] sm:$0xf]
      %v5641 = vld [vmem:[%s5631 + $0x30] sm:$0x8]
      %v5642 = vld [vmem:[%s5631 + $0x34] sm:$0xf]
      %v5643 = vld [vmem:[%s5631 + $0x38] sm:$0xf]
      %v5644 = vld [vmem:[%s5631 + $0x40] sm:$0x8]
      %v5645 = vld [vmem:[%s5631 + $0x44] sm:$0xf]
      %v5646 = vld [vmem:[%s5631 + $0x48] sm:$0xf]
      %v5647 = vld [vmem:[%s5631 + $0x50] sm:$0x8]
      %v5648 = vld [vmem:[%s5631 + $0x54] sm:$0xf]
      %v5649 = vld [vmem:[%s5631 + $0x58] sm:$0xf]
      %v5650 = vld [vmem:[%s5631 + $0x60] sm:$0x8]
      %v5651 = vld [vmem:[%s5631 + $0x64] sm:$0xf]
      %v5652 = vld [vmem:[%s5631 + $0x68] sm:$0xf]
      %v5653 = vld [vmem:[%s5631 + $0x70] sm:$0x8]
      %v5654 = vld [vmem:[%s5631 + $0x74] sm:$0xf]
      %v5655 = vld [vmem:[%s5631 + $0x78] sm:$0xf]
      %v5657 = vshrl.u32 %v5632, 16
      %v5659 = vrot.slane %v5657, 7
      %v5660 = vrot.slane %v5659, 4
      %v5662 = vshrl.u32 %v5633, 16
      %v5664 = vrot.slane %v5662, 7
      %v5665 = vshll.u32 %v5633, 16
      %v5667 = vor.u32 %v5664, %v5665
      %v5668 = vsel %vm435, %v5660, %v5667
      %v5669 = vrot.slane %v5664, 4
      %v5671 = vshrl.u32 %v5634, 16
      %v5673 = vrot.slane %v5671, 7
      %v5674 = vshll.u32 %v5634, 16
      %v5676 = vor.u32 %v5673, %v5674
      %v5677 = vsel %vm435, %v5669, %v5676
      %v5679 = vshrl.u32 %v5635, 16
      %v5681 = vrot.slane %v5679, 7
      %v5682 = vrot.slane %v5681, 4
      %v5684 = vshrl.u32 %v5636, 16
      %v5686 = vrot.slane %v5684, 7
      %v5687 = vshll.u32 %v5636, 16
      %v5689 = vor.u32 %v5686, %v5687
      %v5690 = vsel %vm435, %v5682, %v5689
      %v5691 = vrot.slane %v5686, 4
      %v5693 = vshrl.u32 %v5637, 16
      %v5695 = vrot.slane %v5693, 7
      %v5696 = vshll.u32 %v5637, 16
      %v5698 = vor.u32 %v5695, %v5696
      %v5699 = vsel %vm435, %v5691, %v5698
      %v5701 = vshrl.u32 %v5638, 16
      %v5703 = vrot.slane %v5701, 7
      %v5704 = vrot.slane %v5703, 4
      %v5706 = vshrl.u32 %v5639, 16
      %v5708 = vrot.slane %v5706, 7
      %v5709 = vshll.u32 %v5639, 16
      %v5711 = vor.u32 %v5708, %v5709
      %v5712 = vsel %vm435, %v5704, %v5711
      %v5713 = vrot.slane %v5708, 4
      %v5715 = vshrl.u32 %v5640, 16
      %v5717 = vrot.slane %v5715, 7
      %v5718 = vshll.u32 %v5640, 16
      %v5720 = vor.u32 %v5717, %v5718
      %v5721 = vsel %vm435, %v5713, %v5720
      %v5723 = vshrl.u32 %v5641, 16
      %v5725 = vrot.slane %v5723, 7
      %v5726 = vrot.slane %v5725, 4
      %v5728 = vshrl.u32 %v5642, 16
      %v5730 = vrot.slane %v5728, 7
      %v5731 = vshll.u32 %v5642, 16
      %v5733 = vor.u32 %v5730, %v5731
      %v5734 = vsel %vm435, %v5726, %v5733
      %v5735 = vrot.slane %v5730, 4
      %v5737 = vshrl.u32 %v5643, 16
      %v5739 = vrot.slane %v5737, 7
      %v5740 = vshll.u32 %v5643, 16
      %v5742 = vor.u32 %v5739, %v5740
      %v5743 = vsel %vm435, %v5735, %v5742
      %v5745 = vshrl.u32 %v5644, 16
      %v5747 = vrot.slane %v5745, 7
      %v5748 = vrot.slane %v5747, 4
      %v5750 = vshrl.u32 %v5645, 16
      %v5752 = vrot.slane %v5750, 7
      %v5753 = vshll.u32 %v5645, 16
      %v5755 = vor.u32 %v5752, %v5753
      %v5756 = vsel %vm435, %v5748, %v5755
      %v5757 = vrot.slane %v5752, 4
      %v5759 = vshrl.u32 %v5646, 16
      %v5761 = vrot.slane %v5759, 7
      %v5762 = vshll.u32 %v5646, 16
      %v5764 = vor.u32 %v5761, %v5762
      %v5765 = vsel %vm435, %v5757, %v5764
      %v5767 = vshrl.u32 %v5647, 16
      %v5769 = vrot.slane %v5767, 7
      %v5770 = vrot.slane %v5769, 4
      %v5772 = vshrl.u32 %v5648, 16
      %v5774 = vrot.slane %v5772, 7
      %v5775 = vshll.u32 %v5648, 16
      %v5777 = vor.u32 %v5774, %v5775
      %v5778 = vsel %vm435, %v5770, %v5777
      %v5779 = vrot.slane %v5774, 4
      %v5781 = vshrl.u32 %v5649, 16
      %v5783 = vrot.slane %v5781, 7
      %v5784 = vshll.u32 %v5649, 16
      %v5786 = vor.u32 %v5783, %v5784
      %v5787 = vsel %vm435, %v5779, %v5786
      %v5789 = vshrl.u32 %v5650, 16
      %v5791 = vrot.slane %v5789, 7
      %v5792 = vrot.slane %v5791, 4
      %v5794 = vshrl.u32 %v5651, 16
      %v5796 = vrot.slane %v5794, 7
      %v5797 = vshll.u32 %v5651, 16
      %v5799 = vor.u32 %v5796, %v5797
      %v5800 = vsel %vm435, %v5792, %v5799
      %v5801 = vrot.slane %v5796, 4
      %v5803 = vshrl.u32 %v5652, 16
      %v5805 = vrot.slane %v5803, 7
      %v5806 = vshll.u32 %v5652, 16
      %v5808 = vor.u32 %v5805, %v5806
      %v5809 = vsel %vm435, %v5801, %v5808
      %v5811 = vshrl.u32 %v5653, 16
      %v5813 = vrot.slane %v5811, 7
      %v5814 = vrot.slane %v5813, 4
      %v5816 = vshrl.u32 %v5654, 16
      %v5818 = vrot.slane %v5816, 7
      %v5819 = vshll.u32 %v5654, 16
      %v5821 = vor.u32 %v5818, %v5819
      %v5822 = vsel %vm435, %v5814, %v5821
      %v5823 = vrot.slane %v5818, 4
      %v5825 = vshrl.u32 %v5655, 16
      %v5827 = vrot.slane %v5825, 7
      %v5828 = vshll.u32 %v5655, 16
      %v5830 = vor.u32 %v5827, %v5828
      %v5831 = vsel %vm435, %v5823, %v5830
      %v5832 = vld [vmem:[%s5631 + $0xc] sm:$0x1]
      %v5833 = vld [vmem:[%s5631 + $0x1c] sm:$0x1]
      %v5834 = vld [vmem:[%s5631 + $0x2c] sm:$0x1]
      %v5835 = vld [vmem:[%s5631 + $0x3c] sm:$0x1]
      %v5836 = vld [vmem:[%s5631 + $0x4c] sm:$0x1]
      %v5837 = vld [vmem:[%s5631 + $0x5c] sm:$0x1]
      %v5838 = vld [vmem:[%s5631 + $0x6c] sm:$0x1]
      %v5839 = vld [vmem:[%s5631 + $0x7c] sm:$0x1]
      %v5840 = vrot.slane %v5662, 4
      %v5841 = vrot.slane %v5665, 5
      %v5842 = vor.u32 %v5840, %v5841
      %v5843 = vrot.slane %v5842, 4
      %v5844 = vrot.slane %v5674, 5
      %v5845 = vsel %vm622, %v5843, %v5844
      %v5846 = vrot.slane %v5671, 4
      %v5847 = vor.u32 %v5846, %v5844
      %v5848 = vrot.slane %v5847, 4
      %v5850 = vshll.u32 %v5832, 16
      %v5852 = vrot.slane %v5850, 5
      %v5853 = vsel %vm622, %v5848, %v5852
      %v5854 = vrot.slane %v5684, 4
      %v5855 = vrot.slane %v5687, 5
      %v5856 = vor.u32 %v5854, %v5855
      %v5857 = vrot.slane %v5856, 4
      %v5858 = vrot.slane %v5696, 5
      %v5859 = vsel %vm622, %v5857, %v5858
      %v5860 = vrot.slane %v5693, 4
      %v5861 = vor.u32 %v5860, %v5858
      %v5862 = vrot.slane %v5861, 4
      %v5864 = vshll.u32 %v5833, 16
      %v5866 = vrot.slane %v5864, 5
      %v5867 = vsel %vm622, %v5862, %v5866
      %v5868 = vrot.slane %v5706, 4
      %v5869 = vrot.slane %v5709, 5
      %v5870 = vor.u32 %v5868, %v5869
      %v5871 = vrot.slane %v5870, 4
      %v5872 = vrot.slane %v5718, 5
      %v5873 = vsel %vm622, %v5871, %v5872
      %v5874 = vrot.slane %v5715, 4
      %v5875 = vor.u32 %v5874, %v5872
      %v5876 = vrot.slane %v5875, 4
      %v5878 = vshll.u32 %v5834, 16
      %v5880 = vrot.slane %v5878, 5
      %v5881 = vsel %vm622, %v5876, %v5880
      %v5882 = vrot.slane %v5728, 4
      %v5883 = vrot.slane %v5731, 5
      %v5884 = vor.u32 %v5882, %v5883
      %v5885 = vrot.slane %v5884, 4
      %v5886 = vrot.slane %v5740, 5
      %v5887 = vsel %vm622, %v5885, %v5886
      %v5888 = vrot.slane %v5737, 4
      %v5889 = vor.u32 %v5888, %v5886
      %v5890 = vrot.slane %v5889, 4
      %v5892 = vshll.u32 %v5835, 16
      %v5894 = vrot.slane %v5892, 5
      %v5895 = vsel %vm622, %v5890, %v5894
      %v5896 = vrot.slane %v5750, 4
      %v5897 = vrot.slane %v5753, 5
      %v5898 = vor.u32 %v5896, %v5897
      %v5899 = vrot.slane %v5898, 4
      %v5900 = vrot.slane %v5762, 5
      %v5901 = vsel %vm622, %v5899, %v5900
      %v5902 = vrot.slane %v5759, 4
      %v5903 = vor.u32 %v5902, %v5900
      %v5904 = vrot.slane %v5903, 4
      %v5906 = vshll.u32 %v5836, 16
      %v5908 = vrot.slane %v5906, 5
      %v5909 = vsel %vm622, %v5904, %v5908
      %v5910 = vrot.slane %v5772, 4
      %v5911 = vrot.slane %v5775, 5
      %v5912 = vor.u32 %v5910, %v5911
      %v5913 = vrot.slane %v5912, 4
      %v5914 = vrot.slane %v5784, 5
      %v5915 = vsel %vm622, %v5913, %v5914
      %v5916 = vrot.slane %v5781, 4
      %v5917 = vor.u32 %v5916, %v5914
      %v5918 = vrot.slane %v5917, 4
      %v5920 = vshll.u32 %v5837, 16
      %v5922 = vrot.slane %v5920, 5
      %v5923 = vsel %vm622, %v5918, %v5922
      %v5924 = vrot.slane %v5794, 4
      %v5925 = vrot.slane %v5797, 5
      %v5926 = vor.u32 %v5924, %v5925
      %v5927 = vrot.slane %v5926, 4
      %v5928 = vrot.slane %v5806, 5
      %v5929 = vsel %vm622, %v5927, %v5928
      %v5930 = vrot.slane %v5803, 4
      %v5931 = vor.u32 %v5930, %v5928
      %v5932 = vrot.slane %v5931, 4
      %v5934 = vshll.u32 %v5838, 16
      %v5936 = vrot.slane %v5934, 5
      %v5937 = vsel %vm622, %v5932, %v5936
      %v5938 = vrot.slane %v5816, 4
      %v5939 = vrot.slane %v5819, 5
      %v5940 = vor.u32 %v5938, %v5939
      %v5941 = vrot.slane %v5940, 4
      %v5942 = vrot.slane %v5828, 5
      %v5943 = vsel %vm622, %v5941, %v5942
      %v5944 = vrot.slane %v5825, 4
      %v5945 = vor.u32 %v5944, %v5942
      %v5946 = vrot.slane %v5945, 4
      %v5948 = vshll.u32 %v5839, 16
      %v5950 = vrot.slane %v5948, 5
      %v5951 = vsel %vm622, %v5946, %v5950
      %v5952 = vld [vmem:[%s3843] sm:$0x8]
      %v5953 = vld [vmem:[%s3843 + $0x4] sm:$0xf]
      %v5954 = vld [vmem:[%s3843 + $0x8] sm:$0xf]
      %v5955 = vld [vmem:[%s3843 + $0x10] sm:$0x8]
      %v5956 = vld [vmem:[%s3843 + $0x14] sm:$0xf]
      %v5957 = vld [vmem:[%s3843 + $0x18] sm:$0xf]
      %v5958 = vld [vmem:[%s3843 + $0x20] sm:$0x8]
      %v5959 = vld [vmem:[%s3843 + $0x24] sm:$0xf]
      %v5960 = vld [vmem:[%s3843 + $0x28] sm:$0xf]
      %v5961 = vld [vmem:[%s3843 + $0x30] sm:$0x8]
      %v5962 = vld [vmem:[%s3843 + $0x34] sm:$0xf]
      %v5963 = vld [vmem:[%s3843 + $0x38] sm:$0xf]
      %v5964 = vld [vmem:[%s3843 + $0x40] sm:$0x8]
      %v5965 = vld [vmem:[%s3843 + $0x44] sm:$0xf]
      %v5966 = vld [vmem:[%s3843 + $0x48] sm:$0xf]
      %v5967 = vld [vmem:[%s3843 + $0x50] sm:$0x8]
      %v5968 = vld [vmem:[%s3843 + $0x54] sm:$0xf]
      %v5969 = vld [vmem:[%s3843 + $0x58] sm:$0xf]
      %v5970 = vld [vmem:[%s3843 + $0x60] sm:$0x8]
      %v5971 = vld [vmem:[%s3843 + $0x64] sm:$0xf]
      %v5972 = vld [vmem:[%s3843 + $0x68] sm:$0xf]
      %v5973 = vld [vmem:[%s3843 + $0x70] sm:$0x8]
      %v5974 = vld [vmem:[%s3843 + $0x74] sm:$0xf]
      %v5975 = vld [vmem:[%s3843 + $0x78] sm:$0xf]
      %v5977 = vshrl.u32 %v5952, 16
      %v5979 = vrot.slane %v5977, 7
      %v5980 = vrot.slane %v5979, 4
      %v5982 = vshrl.u32 %v5953, 16
      %v5984 = vrot.slane %v5982, 7
      %v5985 = vshll.u32 %v5953, 16
      %v5987 = vor.u32 %v5984, %v5985
      %v5988 = vsel %vm435, %v5980, %v5987
      %v5989 = vrot.slane %v5984, 4
      %v5991 = vshrl.u32 %v5954, 16
      %v5993 = vrot.slane %v5991, 7
      %v5994 = vshll.u32 %v5954, 16
      %v5996 = vor.u32 %v5993, %v5994
      %v5997 = vsel %vm435, %v5989, %v5996
      %v5999 = vshrl.u32 %v5955, 16
      %v6001 = vrot.slane %v5999, 7
      %v6002 = vrot.slane %v6001, 4
      %v6004 = vshrl.u32 %v5956, 16
      %v6006 = vrot.slane %v6004, 7
      %v6007 = vshll.u32 %v5956, 16
      %v6009 = vor.u32 %v6006, %v6007
      %v6010 = vsel %vm435, %v6002, %v6009
      %v6011 = vrot.slane %v6006, 4
      %v6013 = vshrl.u32 %v5957, 16
      %v6015 = vrot.slane %v6013, 7
      %v6016 = vshll.u32 %v5957, 16
      %v6018 = vor.u32 %v6015, %v6016
      %v6019 = vsel %vm435, %v6011, %v6018
      %v6021 = vshrl.u32 %v5958, 16
      %v6023 = vrot.slane %v6021, 7
      %v6024 = vrot.slane %v6023, 4
      %v6026 = vshrl.u32 %v5959, 16
      %v6028 = vrot.slane %v6026, 7
      %v6029 = vshll.u32 %v5959, 16
      %v6031 = vor.u32 %v6028, %v6029
      %v6032 = vsel %vm435, %v6024, %v6031
      %v6033 = vrot.slane %v6028, 4
      %v6035 = vshrl.u32 %v5960, 16
      %v6037 = vrot.slane %v6035, 7
      %v6038 = vshll.u32 %v5960, 16
      %v6040 = vor.u32 %v6037, %v6038
      %v6041 = vsel %vm435, %v6033, %v6040
      %v6043 = vshrl.u32 %v5961, 16
      %v6045 = vrot.slane %v6043, 7
      %v6046 = vrot.slane %v6045, 4
      %v6048 = vshrl.u32 %v5962, 16
      %v6050 = vrot.slane %v6048, 7
      %v6051 = vshll.u32 %v5962, 16
      %v6053 = vor.u32 %v6050, %v6051
      %v6054 = vsel %vm435, %v6046, %v6053
      %v6055 = vrot.slane %v6050, 4
      %v6057 = vshrl.u32 %v5963, 16
      %v6059 = vrot.slane %v6057, 7
      %v6060 = vshll.u32 %v5963, 16
      %v6062 = vor.u32 %v6059, %v6060
      %v6063 = vsel %vm435, %v6055, %v6062
      %v6065 = vshrl.u32 %v5964, 16
      %v6067 = vrot.slane %v6065, 7
      %v6068 = vrot.slane %v6067, 4
      %v6070 = vshrl.u32 %v5965, 16
      %v6072 = vrot.slane %v6070, 7
      %v6073 = vshll.u32 %v5965, 16
      %v6075 = vor.u32 %v6072, %v6073
      %v6076 = vsel %vm435, %v6068, %v6075
      %v6077 = vrot.slane %v6072, 4
      %v6079 = vshrl.u32 %v5966, 16
      %v6081 = vrot.slane %v6079, 7
      %v6082 = vshll.u32 %v5966, 16
      %v6084 = vor.u32 %v6081, %v6082
      %v6085 = vsel %vm435, %v6077, %v6084
      %v6087 = vshrl.u32 %v5967, 16
      %v6089 = vrot.slane %v6087, 7
      %v6090 = vrot.slane %v6089, 4
      %v6092 = vshrl.u32 %v5968, 16
      %v6094 = vrot.slane %v6092, 7
      %v6095 = vshll.u32 %v5968, 16
      %v6097 = vor.u32 %v6094, %v6095
      %v6098 = vsel %vm435, %v6090, %v6097
      %v6099 = vrot.slane %v6094, 4
      %v6101 = vshrl.u32 %v5969, 16
      %v6103 = vrot.slane %v6101, 7
      %v6104 = vshll.u32 %v5969, 16
      %v6106 = vor.u32 %v6103, %v6104
      %v6107 = vsel %vm435, %v6099, %v6106
      %v6109 = vshrl.u32 %v5970, 16
      %v6111 = vrot.slane %v6109, 7
      %v6112 = vrot.slane %v6111, 4
      %v6114 = vshrl.u32 %v5971, 16
      %v6116 = vrot.slane %v6114, 7
      %v6117 = vshll.u32 %v5971, 16
      %v6119 = vor.u32 %v6116, %v6117
      %v6120 = vsel %vm435, %v6112, %v6119
      %v6121 = vrot.slane %v6116, 4
      %v6123 = vshrl.u32 %v5972, 16
      %v6125 = vrot.slane %v6123, 7
      %v6126 = vshll.u32 %v5972, 16
      %v6128 = vor.u32 %v6125, %v6126
      %v6129 = vsel %vm435, %v6121, %v6128
      %v6131 = vshrl.u32 %v5973, 16
      %v6133 = vrot.slane %v6131, 7
      %v6134 = vrot.slane %v6133, 4
      %v6136 = vshrl.u32 %v5974, 16
      %v6138 = vrot.slane %v6136, 7
      %v6139 = vshll.u32 %v5974, 16
      %v6141 = vor.u32 %v6138, %v6139
      %v6142 = vsel %vm435, %v6134, %v6141
      %v6143 = vrot.slane %v6138, 4
      %v6145 = vshrl.u32 %v5975, 16
      %v6147 = vrot.slane %v6145, 7
      %v6148 = vshll.u32 %v5975, 16
      %v6150 = vor.u32 %v6147, %v6148
      %v6151 = vsel %vm435, %v6143, %v6150
      %v6152 = vld [vmem:[%s3843 + $0xc] sm:$0x1]
      %v6153 = vld [vmem:[%s3843 + $0x1c] sm:$0x1]
      %v6154 = vld [vmem:[%s3843 + $0x2c] sm:$0x1]
      %v6155 = vld [vmem:[%s3843 + $0x3c] sm:$0x1]
      %v6156 = vld [vmem:[%s3843 + $0x4c] sm:$0x1]
      %v6157 = vld [vmem:[%s3843 + $0x5c] sm:$0x1]
      %v6158 = vld [vmem:[%s3843 + $0x6c] sm:$0x1]
      %v6159 = vld [vmem:[%s3843 + $0x7c] sm:$0x1]
      %v6160 = vrot.slane %v5982, 4
      %v6161 = vrot.slane %v5985, 5
      %v6162 = vor.u32 %v6160, %v6161
      %v6163 = vrot.slane %v6162, 4
      %v6164 = vrot.slane %v5994, 5
      %v6165 = vsel %vm622, %v6163, %v6164
      %v6166 = vrot.slane %v5991, 4
      %v6167 = vor.u32 %v6166, %v6164
      %v6168 = vrot.slane %v6167, 4
      %v6170 = vshll.u32 %v6152, 16
      %v6172 = vrot.slane %v6170, 5
      %v6173 = vsel %vm622, %v6168, %v6172
      %v6174 = vrot.slane %v6004, 4
      %v6175 = vrot.slane %v6007, 5
      %v6176 = vor.u32 %v6174, %v6175
      %v6177 = vrot.slane %v6176, 4
      %v6178 = vrot.slane %v6016, 5
      %v6179 = vsel %vm622, %v6177, %v6178
      %v6180 = vrot.slane %v6013, 4
      %v6181 = vor.u32 %v6180, %v6178
      %v6182 = vrot.slane %v6181, 4
      %v6184 = vshll.u32 %v6153, 16
      %v6186 = vrot.slane %v6184, 5
      %v6187 = vsel %vm622, %v6182, %v6186
      %v6188 = vrot.slane %v6026, 4
      %v6189 = vrot.slane %v6029, 5
      %v6190 = vor.u32 %v6188, %v6189
      %v6191 = vrot.slane %v6190, 4
      %v6192 = vrot.slane %v6038, 5
      %v6193 = vsel %vm622, %v6191, %v6192
      %v6194 = vrot.slane %v6035, 4
      %v6195 = vor.u32 %v6194, %v6192
      %v6196 = vrot.slane %v6195, 4
      %v6198 = vshll.u32 %v6154, 16
      %v6200 = vrot.slane %v6198, 5
      %v6201 = vsel %vm622, %v6196, %v6200
      %v6202 = vrot.slane %v6048, 4
      %v6203 = vrot.slane %v6051, 5
      %v6204 = vor.u32 %v6202, %v6203
      %v6205 = vrot.slane %v6204, 4
      %v6206 = vrot.slane %v6060, 5
      %v6207 = vsel %vm622, %v6205, %v6206
      %v6208 = vrot.slane %v6057, 4
      %v6209 = vor.u32 %v6208, %v6206
      %v6210 = vrot.slane %v6209, 4
      %v6212 = vshll.u32 %v6155, 16
      %v6214 = vrot.slane %v6212, 5
      %v6215 = vsel %vm622, %v6210, %v6214
      %v6216 = vrot.slane %v6070, 4
      %v6217 = vrot.slane %v6073, 5
      %v6218 = vor.u32 %v6216, %v6217
      %v6219 = vrot.slane %v6218, 4
      %v6220 = vrot.slane %v6082, 5
      %v6221 = vsel %vm622, %v6219, %v6220
      %v6222 = vrot.slane %v6079, 4
      %v6223 = vor.u32 %v6222, %v6220
      %v6224 = vrot.slane %v6223, 4
      %v6226 = vshll.u32 %v6156, 16
      %v6228 = vrot.slane %v6226, 5
      %v6229 = vsel %vm622, %v6224, %v6228
      %v6230 = vrot.slane %v6092, 4
      %v6231 = vrot.slane %v6095, 5
      %v6232 = vor.u32 %v6230, %v6231
      %v6233 = vrot.slane %v6232, 4
      %v6234 = vrot.slane %v6104, 5
      %v6235 = vsel %vm622, %v6233, %v6234
      %v6236 = vrot.slane %v6101, 4
      %v6237 = vor.u32 %v6236, %v6234
      %v6238 = vrot.slane %v6237, 4
      %v6240 = vshll.u32 %v6157, 16
      %v6242 = vrot.slane %v6240, 5
      %v6243 = vsel %vm622, %v6238, %v6242
      %v6244 = vrot.slane %v6114, 4
      %v6245 = vrot.slane %v6117, 5
      %v6246 = vor.u32 %v6244, %v6245
      %v6247 = vrot.slane %v6246, 4
      %v6248 = vrot.slane %v6126, 5
      %v6249 = vsel %vm622, %v6247, %v6248
      %v6250 = vrot.slane %v6123, 4
      %v6251 = vor.u32 %v6250, %v6248
      %v6252 = vrot.slane %v6251, 4
      %v6254 = vshll.u32 %v6158, 16
      %v6256 = vrot.slane %v6254, 5
      %v6257 = vsel %vm622, %v6252, %v6256
      %v6258 = vrot.slane %v6136, 4
      %v6259 = vrot.slane %v6139, 5
      %v6260 = vor.u32 %v6258, %v6259
      %v6261 = vrot.slane %v6260, 4
      %v6262 = vrot.slane %v6148, 5
      %v6263 = vsel %vm622, %v6261, %v6262
      %v6264 = vrot.slane %v6145, 4
      %v6265 = vor.u32 %v6264, %v6262
      %v6266 = vrot.slane %v6265, 4
      %v6268 = vshll.u32 %v6159, 16
      %v6270 = vrot.slane %v6268, 5
      %v6271 = vsel %vm622, %v6266, %v6270
      %s6272 = smul.addr %s2798, 4
      %s6273 = scalar_lea.vmem [#allocation3], %s6272
      %v6274 = vld [vmem:[%s6273] sm:$0x8]
      %v6275 = vld [vmem:[%s6273 + $0x4] sm:$0xf]
      %v6276 = vld [vmem:[%s6273 + $0x8] sm:$0xf]
      %v6277 = vld [vmem:[%s6273 + $0x10] sm:$0x8]
      %v6278 = vld [vmem:[%s6273 + $0x14] sm:$0xf]
      %v6279 = vld [vmem:[%s6273 + $0x18] sm:$0xf]
      %v6280 = vld [vmem:[%s6273 + $0x20] sm:$0x8]
      %v6281 = vld [vmem:[%s6273 + $0x24] sm:$0xf]
      %v6282 = vld [vmem:[%s6273 + $0x28] sm:$0xf]
      %v6283 = vld [vmem:[%s6273 + $0x30] sm:$0x8]
      %v6284 = vld [vmem:[%s6273 + $0x34] sm:$0xf]
      %v6285 = vld [vmem:[%s6273 + $0x38] sm:$0xf]
      %v6286 = vld [vmem:[%s6273 + $0x40] sm:$0x8]
      %v6287 = vld [vmem:[%s6273 + $0x44] sm:$0xf]
      %v6288 = vld [vmem:[%s6273 + $0x48] sm:$0xf]
      %v6289 = vld [vmem:[%s6273 + $0x50] sm:$0x8]
      %v6290 = vld [vmem:[%s6273 + $0x54] sm:$0xf]
      %v6291 = vld [vmem:[%s6273 + $0x58] sm:$0xf]
      %v6292 = vld [vmem:[%s6273 + $0x60] sm:$0x8]
      %v6293 = vld [vmem:[%s6273 + $0x64] sm:$0xf]
      %v6294 = vld [vmem:[%s6273 + $0x68] sm:$0xf]
      %v6295 = vld [vmem:[%s6273 + $0x70] sm:$0x8]
      %v6296 = vld [vmem:[%s6273 + $0x74] sm:$0xf]
      %v6297 = vld [vmem:[%s6273 + $0x78] sm:$0xf]
      %v6299 = vshrl.u32 %v6274, 16
      %v6301 = vrot.slane %v6299, 7
      %v6302 = vrot.slane %v6301, 4
      %v6304 = vshrl.u32 %v6275, 16
      %v6306 = vrot.slane %v6304, 7
      %v6307 = vshll.u32 %v6275, 16
      %v6309 = vor.u32 %v6306, %v6307
      %v6310 = vsel %vm435, %v6302, %v6309
      %v6311 = vrot.slane %v6306, 4
      %v6313 = vshrl.u32 %v6276, 16
      %v6315 = vrot.slane %v6313, 7
      %v6316 = vshll.u32 %v6276, 16
      %v6318 = vor.u32 %v6315, %v6316
      %v6319 = vsel %vm435, %v6311, %v6318
      %v6321 = vshrl.u32 %v6277, 16
      %v6323 = vrot.slane %v6321, 7
      %v6324 = vrot.slane %v6323, 4
      %v6326 = vshrl.u32 %v6278, 16
      %v6328 = vrot.slane %v6326, 7
      %v6329 = vshll.u32 %v6278, 16
      %v6331 = vor.u32 %v6328, %v6329
      %v6332 = vsel %vm435, %v6324, %v6331
      %v6333 = vrot.slane %v6328, 4
      %v6335 = vshrl.u32 %v6279, 16
      %v6337 = vrot.slane %v6335, 7
      %v6338 = vshll.u32 %v6279, 16
      %v6340 = vor.u32 %v6337, %v6338
      %v6341 = vsel %vm435, %v6333, %v6340
      %v6343 = vshrl.u32 %v6280, 16
      %v6345 = vrot.slane %v6343, 7
      %v6346 = vrot.slane %v6345, 4
      %v6348 = vshrl.u32 %v6281, 16
      %v6350 = vrot.slane %v6348, 7
      %v6351 = vshll.u32 %v6281, 16
      %v6353 = vor.u32 %v6350, %v6351
      %v6354 = vsel %vm435, %v6346, %v6353
      %v6355 = vrot.slane %v6350, 4
      %v6357 = vshrl.u32 %v6282, 16
      %v6359 = vrot.slane %v6357, 7
      %v6360 = vshll.u32 %v6282, 16
      %v6362 = vor.u32 %v6359, %v6360
      %v6363 = vsel %vm435, %v6355, %v6362
      %v6365 = vshrl.u32 %v6283, 16
      %v6367 = vrot.slane %v6365, 7
      %v6368 = vrot.slane %v6367, 4
      %v6370 = vshrl.u32 %v6284, 16
      %v6372 = vrot.slane %v6370, 7
      %v6373 = vshll.u32 %v6284, 16
      %v6375 = vor.u32 %v6372, %v6373
      %v6376 = vsel %vm435, %v6368, %v6375
      %v6377 = vrot.slane %v6372, 4
      %v6379 = vshrl.u32 %v6285, 16
      %v6381 = vrot.slane %v6379, 7
      %v6382 = vshll.u32 %v6285, 16
      %v6384 = vor.u32 %v6381, %v6382
      %v6385 = vsel %vm435, %v6377, %v6384
      %v6387 = vshrl.u32 %v6286, 16
      %v6389 = vrot.slane %v6387, 7
      %v6390 = vrot.slane %v6389, 4
      %v6392 = vshrl.u32 %v6287, 16
      %v6394 = vrot.slane %v6392, 7
      %v6395 = vshll.u32 %v6287, 16
      %v6397 = vor.u32 %v6394, %v6395
      %v6398 = vsel %vm435, %v6390, %v6397
      %v6399 = vrot.slane %v6394, 4
      %v6401 = vshrl.u32 %v6288, 16
      %v6403 = vrot.slane %v6401, 7
      %v6404 = vshll.u32 %v6288, 16
      %v6406 = vor.u32 %v6403, %v6404
      %v6407 = vsel %vm435, %v6399, %v6406
      %v6409 = vshrl.u32 %v6289, 16
      %v6411 = vrot.slane %v6409, 7
      %v6412 = vrot.slane %v6411, 4
      %v6414 = vshrl.u32 %v6290, 16
      %v6416 = vrot.slane %v6414, 7
      %v6417 = vshll.u32 %v6290, 16
      %v6419 = vor.u32 %v6416, %v6417
      %v6420 = vsel %vm435, %v6412, %v6419
      %v6421 = vrot.slane %v6416, 4
      %v6423 = vshrl.u32 %v6291, 16
      %v6425 = vrot.slane %v6423, 7
      %v6426 = vshll.u32 %v6291, 16
      %v6428 = vor.u32 %v6425, %v6426
      %v6429 = vsel %vm435, %v6421, %v6428
      %v6431 = vshrl.u32 %v6292, 16
      %v6433 = vrot.slane %v6431, 7
      %v6434 = vrot.slane %v6433, 4
      %v6436 = vshrl.u32 %v6293, 16
      %v6438 = vrot.slane %v6436, 7
      %v6439 = vshll.u32 %v6293, 16
      %v6441 = vor.u32 %v6438, %v6439
      %v6442 = vsel %vm435, %v6434, %v6441
      %v6443 = vrot.slane %v6438, 4
      %v6445 = vshrl.u32 %v6294, 16
      %v6447 = vrot.slane %v6445, 7
      %v6448 = vshll.u32 %v6294, 16
      %v6450 = vor.u32 %v6447, %v6448
      %v6451 = vsel %vm435, %v6443, %v6450
      %v6453 = vshrl.u32 %v6295, 16
      %v6455 = vrot.slane %v6453, 7
      %v6456 = vrot.slane %v6455, 4
      %v6458 = vshrl.u32 %v6296, 16
      %v6460 = vrot.slane %v6458, 7
      %v6461 = vshll.u32 %v6296, 16
      %v6463 = vor.u32 %v6460, %v6461
      %v6464 = vsel %vm435, %v6456, %v6463
      %v6465 = vrot.slane %v6460, 4
      %v6467 = vshrl.u32 %v6297, 16
      %v6469 = vrot.slane %v6467, 7
      %v6470 = vshll.u32 %v6297, 16
      %v6472 = vor.u32 %v6469, %v6470
      %v6473 = vsel %vm435, %v6465, %v6472
      %v6474 = vld [vmem:[%s6273 + $0xc] sm:$0x1]
      %v6475 = vld [vmem:[%s6273 + $0x1c] sm:$0x1]
      %v6476 = vld [vmem:[%s6273 + $0x2c] sm:$0x1]
      %v6477 = vld [vmem:[%s6273 + $0x3c] sm:$0x1]
      %v6478 = vld [vmem:[%s6273 + $0x4c] sm:$0x1]
      %v6479 = vld [vmem:[%s6273 + $0x5c] sm:$0x1]
      %v6480 = vld [vmem:[%s6273 + $0x6c] sm:$0x1]
      %v6481 = vld [vmem:[%s6273 + $0x7c] sm:$0x1]
      %v6482 = vrot.slane %v6304, 4
      %v6483 = vrot.slane %v6307, 5
      %v6484 = vor.u32 %v6482, %v6483
      %v6485 = vrot.slane %v6484, 4
      %v6486 = vrot.slane %v6316, 5
      %v6487 = vsel %vm622, %v6485, %v6486
      %v6488 = vrot.slane %v6313, 4
      %v6489 = vor.u32 %v6488, %v6486
      %v6490 = vrot.slane %v6489, 4
      %v6492 = vshll.u32 %v6474, 16
      %v6494 = vrot.slane %v6492, 5
      %v6495 = vsel %vm622, %v6490, %v6494
      %v6496 = vrot.slane %v6326, 4
      %v6497 = vrot.slane %v6329, 5
      %v6498 = vor.u32 %v6496, %v6497
      %v6499 = vrot.slane %v6498, 4
      %v6500 = vrot.slane %v6338, 5
      %v6501 = vsel %vm622, %v6499, %v6500
      %v6502 = vrot.slane %v6335, 4
      %v6503 = vor.u32 %v6502, %v6500
      %v6504 = vrot.slane %v6503, 4
      %v6506 = vshll.u32 %v6475, 16
      %v6508 = vrot.slane %v6506, 5
      %v6509 = vsel %vm622, %v6504, %v6508
      %v6510 = vrot.slane %v6348, 4
      %v6511 = vrot.slane %v6351, 5
      %v6512 = vor.u32 %v6510, %v6511
      %v6513 = vrot.slane %v6512, 4
      %v6514 = vrot.slane %v6360, 5
      %v6515 = vsel %vm622, %v6513, %v6514
      %v6516 = vrot.slane %v6357, 4
      %v6517 = vor.u32 %v6516, %v6514
      %v6518 = vrot.slane %v6517, 4
      %v6520 = vshll.u32 %v6476, 16
      %v6522 = vrot.slane %v6520, 5
      %v6523 = vsel %vm622, %v6518, %v6522
      %v6524 = vrot.slane %v6370, 4
      %v6525 = vrot.slane %v6373, 5
      %v6526 = vor.u32 %v6524, %v6525
      %v6527 = vrot.slane %v6526, 4
      %v6528 = vrot.slane %v6382, 5
      %v6529 = vsel %vm622, %v6527, %v6528
      %v6530 = vrot.slane %v6379, 4
      %v6531 = vor.u32 %v6530, %v6528
      %v6532 = vrot.slane %v6531, 4
      %v6534 = vshll.u32 %v6477, 16
      %v6536 = vrot.slane %v6534, 5
      %v6537 = vsel %vm622, %v6532, %v6536
      %v6538 = vrot.slane %v6392, 4
      %v6539 = vrot.slane %v6395, 5
      %v6540 = vor.u32 %v6538, %v6539
      %v6541 = vrot.slane %v6540, 4
      %v6542 = vrot.slane %v6404, 5
      %v6543 = vsel %vm622, %v6541, %v6542
      %v6544 = vrot.slane %v6401, 4
      %v6545 = vor.u32 %v6544, %v6542
      %v6546 = vrot.slane %v6545, 4
      %v6548 = vshll.u32 %v6478, 16
      %v6550 = vrot.slane %v6548, 5
      %v6551 = vsel %vm622, %v6546, %v6550
      %v6552 = vrot.slane %v6414, 4
      %v6553 = vrot.slane %v6417, 5
      %v6554 = vor.u32 %v6552, %v6553
      %v6555 = vrot.slane %v6554, 4
      %v6556 = vrot.slane %v6426, 5
      %v6557 = vsel %vm622, %v6555, %v6556
      %v6558 = vrot.slane %v6423, 4
      %v6559 = vor.u32 %v6558, %v6556
      %v6560 = vrot.slane %v6559, 4
      %v6562 = vshll.u32 %v6479, 16
      %v6564 = vrot.slane %v6562, 5
      %v6565 = vsel %vm622, %v6560, %v6564
      %v6566 = vrot.slane %v6436, 4
      %v6567 = vrot.slane %v6439, 5
      %v6568 = vor.u32 %v6566, %v6567
      %v6569 = vrot.slane %v6568, 4
      %v6570 = vrot.slane %v6448, 5
      %v6571 = vsel %vm622, %v6569, %v6570
      %v6572 = vrot.slane %v6445, 4
      %v6573 = vor.u32 %v6572, %v6570
      %v6574 = vrot.slane %v6573, 4
      %v6576 = vshll.u32 %v6480, 16
      %v6578 = vrot.slane %v6576, 5
      %v6579 = vsel %vm622, %v6574, %v6578
      %v6580 = vrot.slane %v6458, 4
      %v6581 = vrot.slane %v6461, 5
      %v6582 = vor.u32 %v6580, %v6581
      %v6583 = vrot.slane %v6582, 4
      %v6584 = vrot.slane %v6470, 5
      %v6585 = vsel %vm622, %v6583, %v6584
      %v6586 = vrot.slane %v6467, 4
      %v6587 = vor.u32 %v6586, %v6584
      %v6588 = vrot.slane %v6587, 4
      %v6590 = vshll.u32 %v6481, 16
      %v6592 = vrot.slane %v6590, 5
      %v6593 = vsel %vm622, %v6588, %v6592
      %v6594 = vunpack.c.l.b16 %v5668
      %v6595 = vunpack.c.l.b16 %v5677
      %v6596 = vunpack.c.l.b16 %v5690
      %v6597 = vunpack.c.l.b16 %v5699
      %v6598 = vunpack.c.l.b16 %v5712
      %v6599 = vunpack.c.l.b16 %v5721
      %v6600 = vunpack.c.l.b16 %v5734
      %v6601 = vunpack.c.l.b16 %v5743
      %v6602 = vunpack.c.l.b16 %v5756
      %v6603 = vunpack.c.l.b16 %v5765
      %v6604 = vunpack.c.l.b16 %v5778
      %v6605 = vunpack.c.l.b16 %v5787
      %v6606 = vunpack.c.l.b16 %v5800
      %v6607 = vunpack.c.l.b16 %v5809
      %v6608 = vunpack.c.l.b16 %v5822
      %v6609 = vunpack.c.l.b16 %v5831
      %v6610 = vpack.c.b16 %v6595, %v6594
      %v6611 = vpack.c.b16 %v6597, %v6596
      %v6612 = vpack.c.b16 %v6599, %v6598
      %v6613 = vpack.c.b16 %v6601, %v6600
      %v6614 = vpack.c.b16 %v6603, %v6602
      %v6615 = vpack.c.b16 %v6605, %v6604
      %v6616 = vpack.c.b16 %v6607, %v6606
      %v6617 = vpack.c.b16 %v6609, %v6608
      %v6634 = vunpack.c.l.b16 %v5633
      %v6635 = vunpack.c.l.b16 %v5634
      %v6636 = vunpack.c.l.b16 %v5636
      %v6637 = vunpack.c.l.b16 %v5637
      %v6638 = vunpack.c.l.b16 %v5639
      %v6639 = vunpack.c.l.b16 %v5640
      %v6640 = vunpack.c.l.b16 %v5642
      %v6641 = vunpack.c.l.b16 %v5643
      %v6642 = vunpack.c.l.b16 %v5645
      %v6643 = vunpack.c.l.b16 %v5646
      %v6644 = vunpack.c.l.b16 %v5648
      %v6645 = vunpack.c.l.b16 %v5649
      %v6646 = vunpack.c.l.b16 %v5651
      %v6647 = vunpack.c.l.b16 %v5652
      %v6648 = vunpack.c.l.b16 %v5654
      %v6649 = vunpack.c.l.b16 %v5655
      %v6650 = vpack.c.b16 %v6635, %v6634
      %v6651 = vpack.c.b16 %v6637, %v6636
      %v6652 = vpack.c.b16 %v6639, %v6638
      %v6653 = vpack.c.b16 %v6641, %v6640
      %v6654 = vpack.c.b16 %v6643, %v6642
      %v6655 = vpack.c.b16 %v6645, %v6644
      %v6656 = vpack.c.b16 %v6647, %v6646
      %v6657 = vpack.c.b16 %v6649, %v6648
      %6658 = vrot.lane.b32.xlu0 %v6650, 4
      %v6659 = vpop.permute.xlu0 %6658
      %6660 = vrot.lane.b32.xlu0 %v6651, 4
      %v6661 = vpop.permute.xlu0 %6660
      %6662 = vrot.lane.b32.xlu0 %v6652, 4
      %v6663 = vpop.permute.xlu0 %6662
      %6664 = vrot.lane.b32.xlu0 %v6653, 4
      %v6665 = vpop.permute.xlu0 %6664
      %6666 = vrot.lane.b32.xlu0 %v6654, 4
      %v6667 = vpop.permute.xlu0 %6666
      %6668 = vrot.lane.b32.xlu0 %v6655, 4
      %v6669 = vpop.permute.xlu0 %6668
      %6670 = vrot.lane.b32.xlu0 %v6656, 4
      %v6671 = vpop.permute.xlu0 %6670
      %6672 = vrot.lane.b32.xlu0 %v6657, 4
      %v6673 = vpop.permute.xlu0 %6672
      %v6674 = vunpack.c.l.b16 %v5845
      %v6675 = vunpack.c.l.b16 %v5853
      %v6676 = vunpack.c.l.b16 %v5859
      %v6677 = vunpack.c.l.b16 %v5867
      %v6678 = vunpack.c.l.b16 %v5873
      %v6679 = vunpack.c.l.b16 %v5881
      %v6680 = vunpack.c.l.b16 %v5887
      %v6681 = vunpack.c.l.b16 %v5895
      %v6682 = vunpack.c.l.b16 %v5901
      %v6683 = vunpack.c.l.b16 %v5909
      %v6684 = vunpack.c.l.b16 %v5915
      %v6685 = vunpack.c.l.b16 %v5923
      %v6686 = vunpack.c.l.b16 %v5929
      %v6687 = vunpack.c.l.b16 %v5937
      %v6688 = vunpack.c.l.b16 %v5943
      %v6689 = vunpack.c.l.b16 %v5951
      %v6690 = vpack.c.b16 %v6675, %v6674
      %v6691 = vpack.c.b16 %v6677, %v6676
      %v6692 = vpack.c.b16 %v6679, %v6678
      %v6693 = vpack.c.b16 %v6681, %v6680
      %v6694 = vpack.c.b16 %v6683, %v6682
      %v6695 = vpack.c.b16 %v6685, %v6684
      %v6696 = vpack.c.b16 %v6687, %v6686
      %v6697 = vpack.c.b16 %v6689, %v6688
      %6698 = vrot.lane.b32.xlu0 %v6690, 8
      %v6699 = vpop.permute.xlu0 %6698
      %6700 = vrot.lane.b32.xlu0 %v6691, 8
      %v6701 = vpop.permute.xlu0 %6700
      %6702 = vrot.lane.b32.xlu0 %v6692, 8
      %v6703 = vpop.permute.xlu0 %6702
      %6704 = vrot.lane.b32.xlu0 %v6693, 8
      %v6705 = vpop.permute.xlu0 %6704
      %6706 = vrot.lane.b32.xlu0 %v6694, 8
      %v6707 = vpop.permute.xlu0 %6706
      %6708 = vrot.lane.b32.xlu0 %v6695, 8
      %v6709 = vpop.permute.xlu0 %6708
      %6710 = vrot.lane.b32.xlu0 %v6696, 8
      %v6711 = vpop.permute.xlu0 %6710
      %6712 = vrot.lane.b32.xlu0 %v6697, 8
      %v6713 = vpop.permute.xlu0 %6712
      %v6714 = vunpack.c.l.b16 %v5988
      %v6715 = vunpack.c.l.b16 %v5997
      %v6716 = vunpack.c.l.b16 %v6010
      %v6717 = vunpack.c.l.b16 %v6019
      %v6718 = vunpack.c.l.b16 %v6032
      %v6719 = vunpack.c.l.b16 %v6041
      %v6720 = vunpack.c.l.b16 %v6054
      %v6721 = vunpack.c.l.b16 %v6063
      %v6722 = vunpack.c.l.b16 %v6076
      %v6723 = vunpack.c.l.b16 %v6085
      %v6724 = vunpack.c.l.b16 %v6098
      %v6725 = vunpack.c.l.b16 %v6107
      %v6726 = vunpack.c.l.b16 %v6120
      %v6727 = vunpack.c.l.b16 %v6129
      %v6728 = vunpack.c.l.b16 %v6142
      %v6729 = vunpack.c.l.b16 %v6151
      %v6730 = vpack.c.b16 %v6715, %v6714
      %v6731 = vpack.c.b16 %v6717, %v6716
      %v6732 = vpack.c.b16 %v6719, %v6718
      %v6733 = vpack.c.b16 %v6721, %v6720
      %v6734 = vpack.c.b16 %v6723, %v6722
      %v6735 = vpack.c.b16 %v6725, %v6724
      %v6736 = vpack.c.b16 %v6727, %v6726
      %v6737 = vpack.c.b16 %v6729, %v6728
      %6738 = vrot.lane.b32.xlu0 %v6730, 12
      %v6739 = vpop.permute.xlu0 %6738
      %6740 = vrot.lane.b32.xlu0 %v6731, 12
      %v6741 = vpop.permute.xlu0 %6740
      %6742 = vrot.lane.b32.xlu0 %v6732, 12
      %v6743 = vpop.permute.xlu0 %6742
      %6744 = vrot.lane.b32.xlu0 %v6733, 12
      %v6745 = vpop.permute.xlu0 %6744
      %6746 = vrot.lane.b32.xlu0 %v6734, 12
      %v6747 = vpop.permute.xlu0 %6746
      %6748 = vrot.lane.b32.xlu0 %v6735, 12
      %v6749 = vpop.permute.xlu0 %6748
      %6750 = vrot.lane.b32.xlu0 %v6736, 12
      %v6751 = vpop.permute.xlu0 %6750
      %6752 = vrot.lane.b32.xlu0 %v6737, 12
      %v6753 = vpop.permute.xlu0 %6752
      %v6770 = vunpack.c.l.b16 %v5953
      %v6771 = vunpack.c.l.b16 %v5954
      %v6772 = vunpack.c.l.b16 %v5956
      %v6773 = vunpack.c.l.b16 %v5957
      %v6774 = vunpack.c.l.b16 %v5959
      %v6775 = vunpack.c.l.b16 %v5960
      %v6776 = vunpack.c.l.b16 %v5962
      %v6777 = vunpack.c.l.b16 %v5963
      %v6778 = vunpack.c.l.b16 %v5965
      %v6779 = vunpack.c.l.b16 %v5966
      %v6780 = vunpack.c.l.b16 %v5968
      %v6781 = vunpack.c.l.b16 %v5969
      %v6782 = vunpack.c.l.b16 %v5971
      %v6783 = vunpack.c.l.b16 %v5972
      %v6784 = vunpack.c.l.b16 %v5974
      %v6785 = vunpack.c.l.b16 %v5975
      %v6786 = vpack.c.b16 %v6771, %v6770
      %v6787 = vpack.c.b16 %v6773, %v6772
      %v6788 = vpack.c.b16 %v6775, %v6774
      %v6789 = vpack.c.b16 %v6777, %v6776
      %v6790 = vpack.c.b16 %v6779, %v6778
      %v6791 = vpack.c.b16 %v6781, %v6780
      %v6792 = vpack.c.b16 %v6783, %v6782
      %v6793 = vpack.c.b16 %v6785, %v6784
      %6794 = vrot.lane.b32.xlu0 %v6786, 16
      %v6795 = vpop.permute.xlu0 %6794
      %6796 = vrot.lane.b32.xlu0 %v6787, 16
      %v6797 = vpop.permute.xlu0 %6796
      %6798 = vrot.lane.b32.xlu0 %v6788, 16
      %v6799 = vpop.permute.xlu0 %6798
      %6800 = vrot.lane.b32.xlu0 %v6789, 16
      %v6801 = vpop.permute.xlu0 %6800
      %6802 = vrot.lane.b32.xlu0 %v6790, 16
      %v6803 = vpop.permute.xlu0 %6802
      %6804 = vrot.lane.b32.xlu0 %v6791, 16
      %v6805 = vpop.permute.xlu0 %6804
      %6806 = vrot.lane.b32.xlu0 %v6792, 16
      %v6807 = vpop.permute.xlu0 %6806
      %6808 = vrot.lane.b32.xlu0 %v6793, 16
      %v6809 = vpop.permute.xlu0 %6808
      %v6810 = vunpack.c.l.b16 %v6165
      %v6811 = vunpack.c.l.b16 %v6173
      %v6812 = vunpack.c.l.b16 %v6179
      %v6813 = vunpack.c.l.b16 %v6187
      %v6814 = vunpack.c.l.b16 %v6193
      %v6815 = vunpack.c.l.b16 %v6201
      %v6816 = vunpack.c.l.b16 %v6207
      %v6817 = vunpack.c.l.b16 %v6215
      %v6818 = vunpack.c.l.b16 %v6221
      %v6819 = vunpack.c.l.b16 %v6229
      %v6820 = vunpack.c.l.b16 %v6235
      %v6821 = vunpack.c.l.b16 %v6243
      %v6822 = vunpack.c.l.b16 %v6249
      %v6823 = vunpack.c.l.b16 %v6257
      %v6824 = vunpack.c.l.b16 %v6263
      %v6825 = vunpack.c.l.b16 %v6271
      %v6826 = vpack.c.b16 %v6811, %v6810
      %v6827 = vpack.c.b16 %v6813, %v6812
      %v6828 = vpack.c.b16 %v6815, %v6814
      %v6829 = vpack.c.b16 %v6817, %v6816
      %v6830 = vpack.c.b16 %v6819, %v6818
      %v6831 = vpack.c.b16 %v6821, %v6820
      %v6832 = vpack.c.b16 %v6823, %v6822
      %v6833 = vpack.c.b16 %v6825, %v6824
      %6834 = vrot.lane.b32.xlu0 %v6826, 20
      %v6835 = vpop.permute.xlu0 %6834
      %6836 = vrot.lane.b32.xlu0 %v6827, 20
      %v6837 = vpop.permute.xlu0 %6836
      %6838 = vrot.lane.b32.xlu0 %v6828, 20
      %v6839 = vpop.permute.xlu0 %6838
      %6840 = vrot.lane.b32.xlu0 %v6829, 20
      %v6841 = vpop.permute.xlu0 %6840
      %6842 = vrot.lane.b32.xlu0 %v6830, 20
      %v6843 = vpop.permute.xlu0 %6842
      %6844 = vrot.lane.b32.xlu0 %v6831, 20
      %v6845 = vpop.permute.xlu0 %6844
      %6846 = vrot.lane.b32.xlu0 %v6832, 20
      %v6847 = vpop.permute.xlu0 %6846
      %6848 = vrot.lane.b32.xlu0 %v6833, 20
      %v6849 = vpop.permute.xlu0 %6848
      %v6850 = vunpack.c.l.b16 %v6310
      %v6851 = vunpack.c.l.b16 %v6319
      %v6852 = vunpack.c.l.b16 %v6332
      %v6853 = vunpack.c.l.b16 %v6341
      %v6854 = vunpack.c.l.b16 %v6354
      %v6855 = vunpack.c.l.b16 %v6363
      %v6856 = vunpack.c.l.b16 %v6376
      %v6857 = vunpack.c.l.b16 %v6385
      %v6858 = vunpack.c.l.b16 %v6398
      %v6859 = vunpack.c.l.b16 %v6407
      %v6860 = vunpack.c.l.b16 %v6420
      %v6861 = vunpack.c.l.b16 %v6429
      %v6862 = vunpack.c.l.b16 %v6442
      %v6863 = vunpack.c.l.b16 %v6451
      %v6864 = vunpack.c.l.b16 %v6464
      %v6865 = vunpack.c.l.b16 %v6473
      %v6866 = vpack.c.b16 %v6851, %v6850
      %v6867 = vpack.c.b16 %v6853, %v6852
      %v6868 = vpack.c.b16 %v6855, %v6854
      %v6869 = vpack.c.b16 %v6857, %v6856
      %v6870 = vpack.c.b16 %v6859, %v6858
      %v6871 = vpack.c.b16 %v6861, %v6860
      %v6872 = vpack.c.b16 %v6863, %v6862
      %v6873 = vpack.c.b16 %v6865, %v6864
      %6874 = vrot.lane.b32.xlu0 %v6866, 24
      %v6875 = vpop.permute.xlu0 %6874
      %6876 = vrot.lane.b32.xlu0 %v6867, 24
      %v6877 = vpop.permute.xlu0 %6876
      %6878 = vrot.lane.b32.xlu0 %v6868, 24
      %v6879 = vpop.permute.xlu0 %6878
      %6880 = vrot.lane.b32.xlu0 %v6869, 24
      %v6881 = vpop.permute.xlu0 %6880
      %6882 = vrot.lane.b32.xlu0 %v6870, 24
      %v6883 = vpop.permute.xlu0 %6882
      %6884 = vrot.lane.b32.xlu0 %v6871, 24
      %v6885 = vpop.permute.xlu0 %6884
      %6886 = vrot.lane.b32.xlu0 %v6872, 24
      %v6887 = vpop.permute.xlu0 %6886
      %6888 = vrot.lane.b32.xlu0 %v6873, 24
      %v6889 = vpop.permute.xlu0 %6888
      %v6906 = vunpack.c.l.b16 %v6275
      %v6907 = vunpack.c.l.b16 %v6276
      %v6908 = vunpack.c.l.b16 %v6278
      %v6909 = vunpack.c.l.b16 %v6279
      %v6910 = vunpack.c.l.b16 %v6281
      %v6911 = vunpack.c.l.b16 %v6282
      %v6912 = vunpack.c.l.b16 %v6284
      %v6913 = vunpack.c.l.b16 %v6285
      %v6914 = vunpack.c.l.b16 %v6287
      %v6915 = vunpack.c.l.b16 %v6288
      %v6916 = vunpack.c.l.b16 %v6290
      %v6917 = vunpack.c.l.b16 %v6291
      %v6918 = vunpack.c.l.b16 %v6293
      %v6919 = vunpack.c.l.b16 %v6294
      %v6920 = vunpack.c.l.b16 %v6296
      %v6921 = vunpack.c.l.b16 %v6297
      %v6922 = vpack.c.b16 %v6907, %v6906
      %v6923 = vpack.c.b16 %v6909, %v6908
      %v6924 = vpack.c.b16 %v6911, %v6910
      %v6925 = vpack.c.b16 %v6913, %v6912
      %v6926 = vpack.c.b16 %v6915, %v6914
      %v6927 = vpack.c.b16 %v6917, %v6916
      %v6928 = vpack.c.b16 %v6919, %v6918
      %v6929 = vpack.c.b16 %v6921, %v6920
      %6930 = vrot.lane.b32.xlu0 %v6922, 28
      %v6931 = vpop.permute.xlu0 %6930
      %6932 = vrot.lane.b32.xlu0 %v6923, 28
      %v6933 = vpop.permute.xlu0 %6932
      %6934 = vrot.lane.b32.xlu0 %v6924, 28
      %v6935 = vpop.permute.xlu0 %6934
      %6936 = vrot.lane.b32.xlu0 %v6925, 28
      %v6937 = vpop.permute.xlu0 %6936
      %6938 = vrot.lane.b32.xlu0 %v6926, 28
      %v6939 = vpop.permute.xlu0 %6938
      %6940 = vrot.lane.b32.xlu0 %v6927, 28
      %v6941 = vpop.permute.xlu0 %6940
      %6942 = vrot.lane.b32.xlu0 %v6928, 28
      %v6943 = vpop.permute.xlu0 %6942
      %6944 = vrot.lane.b32.xlu0 %v6929, 28
      %v6945 = vpop.permute.xlu0 %6944
      %v6946 = vunpack.c.l.b16 %v6487
      %v6947 = vunpack.c.l.b16 %v6495
      %v6948 = vunpack.c.l.b16 %v6501
      %v6949 = vunpack.c.l.b16 %v6509
      %v6950 = vunpack.c.l.b16 %v6515
      %v6951 = vunpack.c.l.b16 %v6523
      %v6952 = vunpack.c.l.b16 %v6529
      %v6953 = vunpack.c.l.b16 %v6537
      %v6954 = vunpack.c.l.b16 %v6543
      %v6955 = vunpack.c.l.b16 %v6551
      %v6956 = vunpack.c.l.b16 %v6557
      %v6957 = vunpack.c.l.b16 %v6565
      %v6958 = vunpack.c.l.b16 %v6571
      %v6959 = vunpack.c.l.b16 %v6579
      %v6960 = vunpack.c.l.b16 %v6585
      %v6961 = vunpack.c.l.b16 %v6593
      %v6962 = vpack.c.b16 %v6947, %v6946
      %v6963 = vpack.c.b16 %v6949, %v6948
      %v6964 = vpack.c.b16 %v6951, %v6950
      %v6965 = vpack.c.b16 %v6953, %v6952
      %v6966 = vpack.c.b16 %v6955, %v6954
      %v6967 = vpack.c.b16 %v6957, %v6956
      %v6968 = vpack.c.b16 %v6959, %v6958
      %v6969 = vpack.c.b16 %v6961, %v6960
      %6970 = vrot.lane.b32.xlu0 %v6962, 32
      %v6971 = vpop.permute.xlu0 %6970
      %6972 = vrot.lane.b32.xlu0 %v6963, 32
      %v6973 = vpop.permute.xlu0 %6972
      %6974 = vrot.lane.b32.xlu0 %v6964, 32
      %v6975 = vpop.permute.xlu0 %6974
      %6976 = vrot.lane.b32.xlu0 %v6965, 32
      %v6977 = vpop.permute.xlu0 %6976
      %6978 = vrot.lane.b32.xlu0 %v6966, 32
      %v6979 = vpop.permute.xlu0 %6978
      %6980 = vrot.lane.b32.xlu0 %v6967, 32
      %v6981 = vpop.permute.xlu0 %6980
      %6982 = vrot.lane.b32.xlu0 %v6968, 32
      %v6983 = vpop.permute.xlu0 %6982
      %6984 = vrot.lane.b32.xlu0 %v6969, 32
      %v6985 = vpop.permute.xlu0 %6984
      %v6988 = vsel %vm1775, %v6610, %v6659
      %v6991 = vsel %vm1775, %v6611, %v6661
      %v6994 = vsel %vm1775, %v6612, %v6663
      %v6997 = vsel %vm1775, %v6613, %v6665
      %v7000 = vsel %vm1775, %v6614, %v6667
      %v7003 = vsel %vm1775, %v6615, %v6669
      %v7006 = vsel %vm1775, %v6616, %v6671
      %v7009 = vsel %vm1775, %v6617, %v6673
      %v7011 = vsel %vm1800, %v6988, %v6699
      %v7013 = vsel %vm1800, %v6991, %v6701
      %v7015 = vsel %vm1800, %v6994, %v6703
      %v7017 = vsel %vm1800, %v6997, %v6705
      %v7019 = vsel %vm1800, %v7000, %v6707
      %v7021 = vsel %vm1800, %v7003, %v6709
      %v7023 = vsel %vm1800, %v7006, %v6711
      %v7025 = vsel %vm1800, %v7009, %v6713
      %v7027 = vsel %vm1817, %v7011, %v6739
      %v7029 = vsel %vm1817, %v7013, %v6741
      %v7031 = vsel %vm1817, %v7015, %v6743
      %v7033 = vsel %vm1817, %v7017, %v6745
      %v7035 = vsel %vm1817, %v7019, %v6747
      %v7037 = vsel %vm1817, %v7021, %v6749
      %v7039 = vsel %vm1817, %v7023, %v6751
      %v7041 = vsel %vm1817, %v7025, %v6753
      %v7043 = vsel %vm1834, %v7027, %v6795
      %v7045 = vsel %vm1834, %v7029, %v6797
      %v7047 = vsel %vm1834, %v7031, %v6799
      %v7049 = vsel %vm1834, %v7033, %v6801
      %v7051 = vsel %vm1834, %v7035, %v6803
      %v7053 = vsel %vm1834, %v7037, %v6805
      %v7055 = vsel %vm1834, %v7039, %v6807
      %v7057 = vsel %vm1834, %v7041, %v6809
      %v7059 = vsel %vm1851, %v7043, %v6835
      %v7061 = vsel %vm1851, %v7045, %v6837
      %v7063 = vsel %vm1851, %v7047, %v6839
      %v7065 = vsel %vm1851, %v7049, %v6841
      %v7067 = vsel %vm1851, %v7051, %v6843
      %v7069 = vsel %vm1851, %v7053, %v6845
      %v7071 = vsel %vm1851, %v7055, %v6847
      %v7073 = vsel %vm1851, %v7057, %v6849
      %v7075 = vsel %vm1868, %v7059, %v6875
      %v7077 = vsel %vm1868, %v7061, %v6877
      %v7079 = vsel %vm1868, %v7063, %v6879
      %v7081 = vsel %vm1868, %v7065, %v6881
      %v7083 = vsel %vm1868, %v7067, %v6883
      %v7085 = vsel %vm1868, %v7069, %v6885
      %v7087 = vsel %vm1868, %v7071, %v6887
      %v7089 = vsel %vm1868, %v7073, %v6889
      %v7091 = vsel %vm1885, %v7075, %v6931
      %v7093 = vsel %vm1885, %v7077, %v6933
      %v7095 = vsel %vm1885, %v7079, %v6935
      %v7097 = vsel %vm1885, %v7081, %v6937
      %v7099 = vsel %vm1885, %v7083, %v6939
      %v7101 = vsel %vm1885, %v7085, %v6941
      %v7103 = vsel %vm1885, %v7087, %v6943
      %v7105 = vsel %vm1885, %v7089, %v6945
      %v7107 = vsel %vm1902, %v7091, %v6971
      %v7109 = vsel %vm1902, %v7093, %v6973
      %v7111 = vsel %vm1902, %v7095, %v6975
      %v7113 = vsel %vm1902, %v7097, %v6977
      %v7115 = vsel %vm1902, %v7099, %v6979
      %v7117 = vsel %vm1902, %v7101, %v6981
      %v7119 = vsel %vm1902, %v7103, %v6983
      %v7121 = vsel %vm1902, %v7105, %v6985
      %v7122 = vld [vmem:[%s2476 + $0x4] sm:$0xf]
      %v7123 = vld [vmem:[%s2476 + $0x8] sm:$0xf]
      %v7124 = vld [vmem:[%s2476 + $0x14] sm:$0xf]
      %v7125 = vld [vmem:[%s2476 + $0x18] sm:$0xf]
      %v7126 = vld [vmem:[%s2476 + $0x24] sm:$0xf]
      %v7127 = vld [vmem:[%s2476 + $0x28] sm:$0xf]
      %v7128 = vld [vmem:[%s2476 + $0x34] sm:$0xf]
      %v7129 = vld [vmem:[%s2476 + $0x38] sm:$0xf]
      %v7130 = vld [vmem:[%s2476 + $0x44] sm:$0xf]
      %v7131 = vld [vmem:[%s2476 + $0x48] sm:$0xf]
      %v7132 = vld [vmem:[%s2476 + $0x54] sm:$0xf]
      %v7133 = vld [vmem:[%s2476 + $0x58] sm:$0xf]
      %v7134 = vld [vmem:[%s2476 + $0x64] sm:$0xf]
      %v7135 = vld [vmem:[%s2476 + $0x68] sm:$0xf]
      %v7136 = vld [vmem:[%s2476 + $0x74] sm:$0xf]
      %v7137 = vld [vmem:[%s2476 + $0x78] sm:$0xf]
      %v7138 = vsel %vm1934, %v7107, 0
      %v7140 = vsel %vm1934, %v7109, 0
      %v7142 = vsel %vm1934, %v7111, 0
      %v7144 = vsel %vm1934, %v7113, 0
      %v7146 = vsel %vm1934, %v7115, 0
      %v7148 = vsel %vm1934, %v7117, 0
      %v7150 = vsel %vm1934, %v7119, 0
      %v7152 = vsel %vm1934, %v7121, 0
      %7154 = vmatprep.subr.bf16.mxu0 0
      %7155 = vmatpush1.bf16.msra.mxu0 0
      %7156 = vmatprep.subr.bf16.mxu0 0
      %7157 = vmatpush1.bf16.msra.mxu0 0
      %7158 = vmatprep.subr.bf16.mxu0 0
      %7159 = vmatpush1.bf16.msra.mxu0 0
      %7160 = vmatprep.subr.bf16.mxu0 0
      %7161 = vmatpush1.bf16.msra.mxu0 0
      %7162 = vmatprep.subr.bf16.mxu0 0
      %7163 = vmatpush1.bf16.msra.mxu0 0
      %7164 = vmatprep.subr.bf16.mxu0 0
      %7165 = vmatpush1.bf16.msra.mxu0 %v5400
      %7166 = vmatprep.subr.bf16.mxu0 0
      %7167 = vmatpush1.bf16.msra.mxu0 %v5379
      %7168 = vmatprep.subr.bf16.mxu0 0
      %7169 = vmatpush1.bf16.msra.mxu0 %v5378
      %7170 = vmatprep.subr.bf16.mxu0 0
      %7171 = vmatpush2.bf16.msra.mxu0 0
      %7172 = vmatprep.subr.bf16.mxu0 0
      %7173 = vmatpush2.bf16.msra.mxu0 0
      %7174 = vmatprep.subr.bf16.mxu0 0
      %7175 = vmatpush2.bf16.msra.mxu0 0
      %7176 = vmatprep.subr.bf16.mxu0 0
      %7177 = vmatpush2.bf16.msra.mxu0 0
      %7178 = vmatprep.subr.bf16.mxu0 0
      %7179 = vmatpush2.bf16.msra.mxu0 0
      %7180 = vmatprep.subr.bf16.mxu0 0
      %7181 = vmatpush2.bf16.msra.mxu0 0
      %7182 = vmatprep.subr.bf16.mxu0 0
      %7183 = vmatpush2.bf16.msra.mxu0 0
      %7184 = vmatprep.subr.bf16.mxu0 0
      %7185 = vmatpush2.bf16.msra.mxu0 0
      %7186 = vmatprep.mubr.bf16.mxu0 0
      %7187 = vmatmul.mubr.bf16.gmra.mxu0 %v7138
      %v7188 = vpop.f32.mrf.mxu0
      %v7189 = vadd.f32 %v404, %v7188
      %v7190 = vpop.f32.mrf.mxu0
      %v7191 = vpop.f32.mrf.mxu0
      %v7192 = vadd.f32 %v404, %v7191
      %v7193 = vpop.f32.mrf.mxu0
      %7194 = vmatprep.mubr.bf16.mxu0 0
      %7195 = vmatmul.mubr.bf16.gmra.mxu0 %v7140
      %v7196 = vpop.f32.mrf.mxu0
      %v7197 = vadd.f32 %v404, %v7196
      %v7198 = vpop.f32.mrf.mxu0
      %v7199 = vpop.f32.mrf.mxu0
      %v7200 = vadd.f32 %v404, %v7199
      %v7201 = vpop.f32.mrf.mxu0
      %7202 = vmatprep.mubr.bf16.mxu0 0
      %7203 = vmatmul.mubr.bf16.gmra.mxu0 %v7142
      %v7204 = vpop.f32.mrf.mxu0
      %v7205 = vadd.f32 %v404, %v7204
      %v7206 = vpop.f32.mrf.mxu0
      %v7207 = vpop.f32.mrf.mxu0
      %v7208 = vadd.f32 %v404, %v7207
      %v7209 = vpop.f32.mrf.mxu0
      %7210 = vmatprep.mubr.bf16.mxu0 0
      %7211 = vmatmul.mubr.bf16.gmra.mxu0 %v7144
      %v7212 = vpop.f32.mrf.mxu0
      %v7213 = vadd.f32 %v404, %v7212
      %v7214 = vpop.f32.mrf.mxu0
      %v7215 = vpop.f32.mrf.mxu0
      %v7216 = vadd.f32 %v404, %v7215
      %v7217 = vpop.f32.mrf.mxu0
      %7218 = vmatprep.mubr.bf16.mxu0 0
      %7219 = vmatmul.mubr.bf16.gmra.mxu0 %v7146
      %v7220 = vpop.f32.mrf.mxu0
      %v7221 = vadd.f32 %v404, %v7220
      %v7222 = vpop.f32.mrf.mxu0
      %v7223 = vpop.f32.mrf.mxu0
      %v7224 = vadd.f32 %v404, %v7223
      %v7225 = vpop.f32.mrf.mxu0
      %7226 = vmatprep.mubr.bf16.mxu0 0
      %7227 = vmatmul.mubr.bf16.gmra.mxu0 %v7148
      %v7228 = vpop.f32.mrf.mxu0
      %v7229 = vadd.f32 %v404, %v7228
      %v7230 = vpop.f32.mrf.mxu0
      %v7231 = vpop.f32.mrf.mxu0
      %v7232 = vadd.f32 %v404, %v7231
      %v7233 = vpop.f32.mrf.mxu0
      %7234 = vmatprep.mubr.bf16.mxu0 0
      %7235 = vmatmul.mubr.bf16.gmra.mxu0 %v7150
      %v7236 = vpop.f32.mrf.mxu0
      %v7237 = vadd.f32 %v404, %v7236
      %v7238 = vpop.f32.mrf.mxu0
      %v7239 = vpop.f32.mrf.mxu0
      %v7240 = vadd.f32 %v404, %v7239
      %v7241 = vpop.f32.mrf.mxu0
      %7242 = vmatprep.mubr.bf16.mxu0 0
      %7243 = vmatmul.mubr.bf16.gmra.mxu0 %v7152
      %v7244 = vpop.f32.mrf.mxu0
      %v7245 = vadd.f32 %v404, %v7244
      %v7246 = vpop.f32.mrf.mxu0
      %v7247 = vpop.f32.mrf.mxu0
      %v7248 = vadd.f32 %v404, %v7247
      %v7249 = vpop.f32.mrf.mxu0
      %7250 = vdwg.mxu0
      %v7251 = vunpack.c.l.bf16 %v7122
      %v7252 = vunpack.c.l.bf16 %v7123
      %v7253 = vunpack.c.l.bf16 %v7124
      %v7254 = vunpack.c.l.bf16 %v7125
      %v7255 = vunpack.c.l.bf16 %v7126
      %v7256 = vunpack.c.l.bf16 %v7127
      %v7257 = vunpack.c.l.bf16 %v7128
      %v7258 = vunpack.c.l.bf16 %v7129
      %v7259 = vunpack.c.l.bf16 %v7130
      %v7260 = vunpack.c.l.bf16 %v7131
      %v7261 = vunpack.c.l.bf16 %v7132
      %v7262 = vunpack.c.l.bf16 %v7133
      %v7263 = vunpack.c.l.bf16 %v7134
      %v7264 = vunpack.c.l.bf16 %v7135
      %v7265 = vunpack.c.l.bf16 %v7136
      %v7266 = vunpack.c.l.bf16 %v7137
      %v7267 = vadd.f32 %v7189, %v7251
      %v7268 = vadd.f32 %v7192, %v7252
      %v7269 = vadd.f32 %v7197, %v7253
      %v7270 = vadd.f32 %v7200, %v7254
      %v7271 = vadd.f32 %v7205, %v7255
      %v7272 = vadd.f32 %v7208, %v7256
      %v7273 = vadd.f32 %v7213, %v7257
      %v7274 = vadd.f32 %v7216, %v7258
      %v7275 = vadd.f32 %v7221, %v7259
      %v7276 = vadd.f32 %v7224, %v7260
      %v7277 = vadd.f32 %v7229, %v7261
      %v7278 = vadd.f32 %v7232, %v7262
      %v7279 = vadd.f32 %v7237, %v7263
      %v7280 = vadd.f32 %v7240, %v7264
      %v7281 = vadd.f32 %v7245, %v7265
      %v7282 = vadd.f32 %v7248, %v7266
      %v7283 = vmax.f32 %v7267, 0.0
      %v7284 = vmax.f32 %v7268, 0.0
      %v7285 = vmax.f32 %v7269, 0.0
      %v7286 = vmax.f32 %v7270, 0.0
      %v7287 = vmax.f32 %v7271, 0.0
      %v7288 = vmax.f32 %v7272, 0.0
      %v7289 = vmax.f32 %v7273, 0.0
      %v7290 = vmax.f32 %v7274, 0.0
      %v7291 = vmax.f32 %v7275, 0.0
      %v7292 = vmax.f32 %v7276, 0.0
      %v7293 = vmax.f32 %v7277, 0.0
      %v7294 = vmax.f32 %v7278, 0.0
      %v7295 = vmax.f32 %v7279, 0.0
      %v7296 = vmax.f32 %v7280, 0.0
      %v7297 = vmax.f32 %v7281, 0.0
      %v7298 = vmax.f32 %v7282, 0.0
      %v7299 = vpack.c.bf16 %v7284, %v7283
      %v7300 = vpack.c.bf16 %v7286, %v7285
      %v7301 = vpack.c.bf16 %v7288, %v7287
      %v7302 = vpack.c.bf16 %v7290, %v7289
      %v7303 = vpack.c.bf16 %v7292, %v7291
      %v7304 = vpack.c.bf16 %v7294, %v7293
      %v7305 = vpack.c.bf16 %v7296, %v7295
      %v7306 = vpack.c.bf16 %v7298, %v7297
      %v7315 = vunpack.c.l.b16 %v7299
      %v7316 = vunpack.c.h.b16 %v7299
      %v7317 = vunpack.c.l.b16 %v7300
      %v7318 = vunpack.c.h.b16 %v7300
      %v7319 = vunpack.c.l.b16 %v7301
      %v7320 = vunpack.c.h.b16 %v7301
      %v7321 = vunpack.c.l.b16 %v7302
      %v7322 = vunpack.c.h.b16 %v7302
      %v7323 = vunpack.c.l.b16 %v7303
      %v7324 = vunpack.c.h.b16 %v7303
      %v7325 = vunpack.c.l.b16 %v7304
      %v7326 = vunpack.c.h.b16 %v7304
      %v7327 = vunpack.c.l.b16 %v7305
      %v7328 = vunpack.c.h.b16 %v7305
      %v7329 = vunpack.c.l.b16 %v7306
      %v7330 = vunpack.c.h.b16 %v7306
      %v7331 = vpack.c.b16 %v7315, %v7315
      %v7332 = vpack.c.b16 %v7316, %v7316
      %v7333 = vpack.c.b16 %v7317, %v7317
      %v7334 = vpack.c.b16 %v7318, %v7318
      %v7335 = vpack.c.b16 %v7319, %v7319
      %v7336 = vpack.c.b16 %v7320, %v7320
      %v7337 = vpack.c.b16 %v7321, %v7321
      %v7338 = vpack.c.b16 %v7322, %v7322
      %v7339 = vpack.c.b16 %v7323, %v7323
      %v7340 = vpack.c.b16 %v7324, %v7324
      %v7341 = vpack.c.b16 %v7325, %v7325
      %v7342 = vpack.c.b16 %v7326, %v7326
      %v7343 = vpack.c.b16 %v7327, %v7327
      %v7344 = vpack.c.b16 %v7328, %v7328
      %v7345 = vpack.c.b16 %v7329, %v7329
      %v7346 = vpack.c.b16 %v7330, %v7330
      %s7363 = smul.u32 8, 2
      %s7364 = smul.addr %s7363, 4
      %s7365 = scalar_lea.vmem %s224, %s7364
      %7366 = vst.msk [vmem:[%s7365] sm:$0xf] %vm226, %v7331
      %7367 = vst.msk [vmem:[%s7365 + $0x4] sm:$0xf] %vm226, %v7332
      %7368 = vst.msk [vmem:[%s7365 + $0x8] sm:$0xf] %vm226, %v7333
      %7369 = vst.msk [vmem:[%s7365 + $0xc] sm:$0xf] %vm226, %v7334
      %7370 = vst.msk [vmem:[%s7365 + $0x10] sm:$0xf] %vm226, %v7335
      %7371 = vst.msk [vmem:[%s7365 + $0x14] sm:$0xf] %vm226, %v7336
      %7372 = vst.msk [vmem:[%s7365 + $0x18] sm:$0xf] %vm226, %v7337
      %7373 = vst.msk [vmem:[%s7365 + $0x1c] sm:$0xf] %vm226, %v7338
      %7374 = vst.msk [vmem:[%s7365 + $0x20] sm:$0xf] %vm226, %v7339
      %7375 = vst.msk [vmem:[%s7365 + $0x24] sm:$0xf] %vm226, %v7340
      %7376 = vst.msk [vmem:[%s7365 + $0x28] sm:$0xf] %vm226, %v7341
      %7377 = vst.msk [vmem:[%s7365 + $0x2c] sm:$0xf] %vm226, %v7342
      %7378 = vst.msk [vmem:[%s7365 + $0x30] sm:$0xf] %vm226, %v7343
      %7379 = vst.msk [vmem:[%s7365 + $0x34] sm:$0xf] %vm226, %v7344
      %7380 = vst.msk [vmem:[%s7365 + $0x38] sm:$0xf] %vm226, %v7345
      %7381 = vst.msk [vmem:[%s7365 + $0x3c] sm:$0xf] %vm226, %v7346
      %p7382 = scmp.lt.s32.totalorder %s16, 1
      %s7383 = scalar_select %p7382, %s16, 1
      %s7384 = smul.addr %s7383, 32
      %s7385 = smul.addr %s7384, 4
      %s7386 = scalar_lea.vmem %s5, %s7385
      // Predicated region
      $region41: #{tpu_custom_call.1} parent=39 // pred_check
        %p7387 = pneg %p144
      $region42: #{tpu_custom_call.1} parent=39 // pred_check_branch
        %7389 = sbr.rel (%p7387) target = $region44
      $region43: #{tpu_custom_call.1} parent=39 // pred_region
        _
      $region44: #{tpu_custom_call.1} parent=39 // pred_fallthru
        _
    $region40: #{tpu_custom_call.1} parent=5 // pred_fallthru
      _
    %p7390 = scmp.le.s32.totalorder 2, %s11
    // Predicated region
    $region45: #{tpu_custom_call.1} parent=5 // pred_check
      %p7391 = pneg %p7390
    $region46: #{tpu_custom_call.1} parent=5 // pred_check_branch
      %7393 = sbr.rel (%p7391) target = $region48
    $region47: #{tpu_custom_call.1} parent=5 // pred_region
      %s7394 = ssub.s32 %s11, 2
      // Predicated region
      $region49: #{tpu_custom_call.1} parent=47 // pred_check
        %p7395 = pneg %p150
      $region50: #{tpu_custom_call.1} parent=47 // pred_check_branch
        %7397 = sbr.rel (%p7395) target = $region52
      $region51: #{tpu_custom_call.1} parent=47 // pred_region
        %p7398 = scmp.lt.s32.totalorder %s17, 1
        %s7399 = scalar_select %p7398, %s17, 1
        %s7400 = smul.addr %s7399, 32
        %s7401 = smul.addr %s7400, 4
        %s7402 = scalar_lea.vmem %s5, %s7401
      $region52: #{tpu_custom_call.1} parent=47 // pred_fallthru
        _
    $region48: #{tpu_custom_call.1} parent=5 // pred_fallthru
      _
  $region6: #{tpu_custom_call.1} parent=0 // loop_footer
    %s15 = sadd.s32 1, %s11
  $region7: #{tpu_custom_call.1} parent=0 // loop_footer_branch
    %10 = sbr.rel target = $region3
  $region8: #{tpu_custom_call.1} parent=0 // loop_exit
    _

</llo_original>
